<compile_context>
chip_gen: v5e
topology: v5e:2x2
jax: 0.10.0
libtpu: 0.0.40
codegen_flags: <defaults>
</compile_context>

<pallas_src>
import jax
import jax.numpy as jnp
from jax.experimental import pallas as pl
from jax.experimental.pallas import tpu as pltpu


OUT_PAD = 128  # lane-dense padded logits width


# --------------------------- fused Pallas kernel --------------------------- #

def _fused_cnn_kernel(pat_ref, cw_ref, cb_ref, pool_ref, fw_ref, fb_ref, o_ref):
    """conv3x3(SAME)+bias+ReLU -> global-avg-pool -> fc, whole batch, one step."""
    hp = jax.lax.Precision.HIGHEST

    # conv as one im2col matmul over the whole batch:
    # (N*H*W, KH*KW*CIN) x (KH*KW*CIN, COUT) -> (N*H*W, COUT)
    acc = jnp.dot(pat_ref[...], cw_ref[...],
                  preferred_element_type=jnp.float32, precision=hp)
    acc = jnp.maximum(acc + cb_ref[...], 0.0)                  # bias + ReLU

    # global average pool folded into a matmul:
    # (N, N*H*W) x (N*H*W, COUT) -> (N, COUT)
    pooled = jnp.dot(pool_ref[...], acc,
                     preferred_element_type=jnp.float32, precision=hp)

    # fc with lane-padded (COUT, 128) weights -> lane-dense (N, 128) store
    y = jnp.dot(pooled, fw_ref[...],
                preferred_element_type=jnp.float32, precision=hp) + fb_ref[...]
    o_ref[...] = y.astype(o_ref.dtype)


def fused_cnn_forward(x_nchw, conv_w, conv_b, fc_w, fc_b):
    """Whole conv->relu->pool->flatten->fc network as a single pallas_call."""
    N, CIN, H, W = x_nchw.shape
    KH, KW, _, COUT = conv_w.shape
    OUT = fc_w.shape[1]
    NHW = N * H * W

    # ---- layout plumbing done by XLA in the jitted wrapper (tiny tensors) ----
    # SAME padding + tap extraction (im2col); column order (kh, kw, cin) matches
    # conv_w.reshape(KH*KW*CIN, COUT); row order is (n, h, w).
    xp = jnp.pad(x_nchw, ((0, 0), (0, 0), (1, 1), (1, 1)))
    taps = [xp[:, :, kh:kh + H, kw:kw + W]
            for kh in range(KH) for kw in range(KW)]           # each (N, CIN, H, W)
    pat = jnp.stack(taps, axis=0)                              # (KH*KW, N, CIN, H, W)
    pat = jnp.transpose(pat, (1, 3, 4, 0, 2)).reshape(NHW, KH * KW * CIN)

    cw = conv_w.reshape(KH * KW * CIN, COUT)                   # (9*CIN, COUT)
    cb = conv_b.reshape(1, COUT)

    # pooling matrix: P[n, j] = 1/(H*W) if pixel j belongs to image n else 0
    img_id = jnp.arange(NHW, dtype=jnp.int32) // (H * W)
    pool = (jnp.arange(N, dtype=jnp.int32)[:, None] == img_id[None, :])
    pool = pool.astype(x_nchw.dtype) / float(H * W)            # (N, N*H*W)

    # fc weights zero-padded to a 128-lane output slab
    fw = jnp.zeros((COUT, OUT_PAD), fc_w.dtype).at[:, :OUT].set(fc_w)
    fb = jnp.zeros((1, OUT_PAD), fc_b.dtype).at[0, :OUT].set(fc_b)

    vmem = lambda: pl.BlockSpec(memory_space=pltpu.MemorySpace.VMEM)
    out = pl.pallas_call(
        _fused_cnn_kernel,
        out_shape=jax.ShapeDtypeStruct((N, OUT_PAD), x_nchw.dtype),
        in_specs=[vmem() for _ in range(6)],
        out_specs=vmem(),
    )(pat, cw, cb, pool, fw, fb)
    return out[:, :OUT]


_forward_impl = jax.jit(fused_cnn_forward)


# ----------------------------- VerboseExecution ----------------------------- #

class VerboseExecution:
    """JAX/Pallas port of VerboseExecution.

    forward(x) runs the wrapped model (one fused Pallas kernel).  The
    register_forward_hook behaviour is emulated by printing each child's
    output shape (PyTorch NCHW convention); shapes are static so the prints
    stay outside the jitted / fused compute.
    """

    def __init__(self, params):
        self.params = params

    def forward(self, x_nchw):
        p = self.params
        N, _, H, W = x_nchw.shape
        COUT = p["conv_w"].shape[-1]
        OUT = p["fc_w"].shape[-1]

        y = _forward_impl(x_nchw, p["conv_w"], p["conv_b"], p["fc_w"], p["fc_b"])

        # forward-hook emulation ("<name>: <output.shape>")
        print(f"conv: {(N, COUT, H, W)}")
        print(f"relu: {(N, COUT, H, W)}")
        print(f"pool: {(N, COUT, 1, 1)}")
        print(f"flatten: {(N, COUT)}")
        print(f"fc: {(N, OUT)}")
        return y


# ---------------------------------- main ------------------------------------ #

if __name__ == "__main__":
    key = jax.random.PRNGKey(0)
    k_x, k_cw, k_cb, k_fw, k_fb = jax.random.split(key, 5)

    x = jax.random.normal(k_x, (2, 4, 16, 16), jnp.float32)     # NCHW, like PyTorch

    params = {
        "conv_w": jax.random.normal(k_cw, (3, 3, 4, 8), jnp.float32) * 0.1,  # HWIO
        "conv_b": jax.random.normal(k_cb, (8,), jnp.float32) * 0.1,
        "fc_w": jax.random.normal(k_fw, (8, 10), jnp.float32) * 0.1,
        "fc_b": jax.random.normal(k_fb, (10,), jnp.float32) * 0.1,
    }

    model = VerboseExecution(params)
    out = model.forward(x)
    out = jax.block_until_ready(out)
    assert out.shape == (2, 10) and out.dtype == jnp.float32

    # pure-JAX reference of the full forward path (tight tolerance: both sides
    # use f32 accumulation and HIGHEST matmul precision).
    x_nhwc = jnp.transpose(x, (0, 2, 3, 1))
    ref = jax.lax.conv_general_dilated(
        x_nhwc, params["conv_w"], window_strides=(1, 1), padding="SAME",
        dimension_numbers=("NHWC", "HWIO", "NHWC"),
        precision=jax.lax.Precision.HIGHEST) + params["conv_b"]
    ref = jnp.maximum(ref, 0.0)
    ref = jnp.mean(ref, axis=(1, 2))
    ref = jnp.dot(ref, params["fc_w"],
                  precision=jax.lax.Precision.HIGHEST) + params["fc_b"]
    err = jnp.max(jnp.abs(out - ref))
    assert jnp.allclose(out, ref, atol=1e-4, rtol=1e-4), f"max abs err {err}"

    print("KERNEL_OK")
</pallas_src>

<mosaic_0001>
module attributes {stable_mosaic.version = 11 : i64} {
  func.func @_fused_cnn_kernel(%arg0: memref<512x36xf32, #tpu.memory_space<vmem>>, %arg1: memref<36x8xf32, #tpu.memory_space<vmem>>, %arg2: memref<1x8xf32, #tpu.memory_space<vmem>>, %arg3: memref<2x512xf32, #tpu.memory_space<vmem>>, %arg4: memref<8x128xf32, #tpu.memory_space<vmem>>, %arg5: memref<1x128xf32, #tpu.memory_space<vmem>>, %arg6: memref<2x128xf32, #tpu.memory_space<vmem>>) attributes {dimension_semantics = [], scalar_prefetch = 0 : i64, scratch_operands = 0 : i64, tpu.core_type = #tpu.core_type<tc>} {
    %c0 = arith.constant 0 : index
    %c0_0 = arith.constant 0 : index
    %0 = vector.load %arg0[%c0, %c0_0] : memref<512x36xf32, #tpu.memory_space<vmem>>, vector<512x36xf32>
    %c0_1 = arith.constant 0 : index
    %c0_2 = arith.constant 0 : index
    %1 = vector.load %arg1[%c0_1, %c0_2] : memref<36x8xf32, #tpu.memory_space<vmem>>, vector<36x8xf32>
    %cst = arith.constant dense<0.000000e+00> : vector<512x8xf32>
    %2 = tpu.matmul %0, %1, %cst {dimension_numbers = #tpu.dot_dimension_numbers<[1], [0], [0], [1], [0, 0, 1, 1], [], []>, precision = #tpu.contract_precision<fp32>} : vector<512x36xf32>, vector<36x8xf32>, vector<512x8xf32> -> vector<512x8xf32>
    %c0_3 = arith.constant 0 : index
    %c0_4 = arith.constant 0 : index
    %3 = vector.load %arg2[%c0_3, %c0_4] : memref<1x8xf32, #tpu.memory_space<vmem>>, vector<1x8xf32>
    %4 = vector.broadcast %3 : vector<1x8xf32> to vector<512x8xf32>
    %5 = arith.addf %2, %4 : vector<512x8xf32>
    %cst_5 = arith.constant 0.000000e+00 : f32
    %6 = vector.broadcast %cst_5 : f32 to vector<512x8xf32>
    %7 = arith.maximumf %5, %6 : vector<512x8xf32>
    %c0_6 = arith.constant 0 : index
    %c0_7 = arith.constant 0 : index
    %8 = vector.load %arg3[%c0_6, %c0_7] : memref<2x512xf32, #tpu.memory_space<vmem>>, vector<2x512xf32>
    %cst_8 = arith.constant dense<0.000000e+00> : vector<2x8xf32>
    %9 = tpu.matmul %8, %7, %cst_8 {dimension_numbers = #tpu.dot_dimension_numbers<[1], [0], [0], [1], [0, 0, 1, 1], [], []>, precision = #tpu.contract_precision<fp32>} : vector<2x512xf32>, vector<512x8xf32>, vector<2x8xf32> -> vector<2x8xf32>
    %c0_9 = arith.constant 0 : index
    %c0_10 = arith.constant 0 : index
    %10 = vector.load %arg4[%c0_9, %c0_10] : memref<8x128xf32, #tpu.memory_space<vmem>>, vector<8x128xf32>
    %cst_11 = arith.constant dense<0.000000e+00> : vector<2x128xf32>
    %11 = tpu.matmul %9, %10, %cst_11 {dimension_numbers = #tpu.dot_dimension_numbers<[1], [0], [0], [1], [0, 0, 1, 1], [], []>, precision = #tpu.contract_precision<fp32>} : vector<2x8xf32>, vector<8x128xf32>, vector<2x128xf32> -> vector<2x128xf32>
    %c0_12 = arith.constant 0 : index
    %c0_13 = arith.constant 0 : index
    %12 = vector.load %arg5[%c0_12, %c0_13] : memref<1x128xf32, #tpu.memory_space<vmem>>, vector<1x128xf32>
    %13 = vector.broadcast %12 : vector<1x128xf32> to vector<2x128xf32>
    %14 = arith.addf %11, %13 : vector<2x128xf32>
    %c0_14 = arith.constant 0 : index
    %c0_15 = arith.constant 0 : index
    %15 = vector.load %arg6[%c0_14, %c0_15] : memref<2x128xf32, #tpu.memory_space<vmem>>, vector<2x128xf32>
    tpu.vector_store %arg6[%c0_14, %c0_15], %14 {strides = array<i32>} : memref<2x128xf32, #tpu.memory_space<vmem>>, vector<2x128xf32>,
    return
  }
}

</mosaic_0001>

<llo_original>
// kernel: fused_cnn_forward.1
$region0: #{fused_cnn_forward.1}
  #allocation0 [shape = 'u32[]', space=smem, size = 0x4, offset = 0x4, fixed_abs, tag = 'smem constant byte address 0x4 - core index']
  #allocation1 [shape = 'u32[72,128]{1,0:T(1,128)}', space=vmem, size = 0x9000, scoped, tag = 'internal scratch']
  %s0 = inlined_call_operand.vmem [shape: f32[512,36], index: 0, kind: input, shape index: {}]
  %s1 = inlined_call_operand.vmem [shape: f32[36,8], index: 1, kind: input, shape index: {}]
  %s2 = inlined_call_operand.vmem [shape: f32[1,8], index: 2, kind: input, shape index: {}]
  %s3 = inlined_call_operand.vmem [shape: f32[2,512], index: 3, kind: input, shape index: {}]
  %s4 = inlined_call_operand.vmem [shape: f32[8,128], index: 4, kind: input, shape index: {}]
  %s5 = inlined_call_operand.vmem [shape: f32[1,128], index: 5, kind: input, shape index: {}]
  %s6 = inlined_call_operand.hbm [shape: f32[2,128], index: 6, kind: output, shape index: {}]
  %s7 = sld [smem:[#allocation0]]
  $region34: #{fused_cnn_forward.1} parent=0
    _
  %s9 = ssub.s32 1, %s7
  %s10 = scalar_select 0, %s9, %s7
  $region1: #{fused_cnn_forward.1} parent=0
    #allocation2 [shape = 'u8[1024]{0}', space=vmem, size = 0x400, scoped, tag = 'output window, operand 0, single buffered']
    #allocation3 [shape = 's32[1]{0}', space=sflag, size = 0x4, scoped, tag = 'scoped memory for fused_cnn_forward.1']
    %11 = vsyncpa [#allocation3], 0
    // Predicated region
    $region2: #{fused_cnn_forward.1} parent=1 // pred_check
      _
    $region3: #{fused_cnn_forward.1} parent=1 // pred_check_branch
      %13 = sbr.rel (0) target = $region5
    $region4: #{fused_cnn_forward.1} parent=1 // pred_region
      _
    $region5: #{fused_cnn_forward.1} parent=1 // pred_fallthru
      _
    // Predicated region
    $region6: #{fused_cnn_forward.1} parent=1 // pred_check
      _
    $region7: #{fused_cnn_forward.1} parent=1 // pred_check_branch
      %15 = sbr.rel (0) target = $region9
    $region8: #{fused_cnn_forward.1} parent=1 // pred_region
      _
    $region9: #{fused_cnn_forward.1} parent=1 // pred_fallthru
      _
    // Predicated region
    $region10: #{fused_cnn_forward.1} parent=1 // pred_check
      _
    $region11: #{fused_cnn_forward.1} parent=1 // pred_check_branch
      %17 = sbr.rel (0) target = $region13
    $region12: #{fused_cnn_forward.1} parent=1 // pred_region
      _
    $region13: #{fused_cnn_forward.1} parent=1 // pred_fallthru
      _
    // Predicated region
    $region14: #{fused_cnn_forward.1} parent=1 // pred_check
      _
    $region15: #{fused_cnn_forward.1} parent=1 // pred_check_branch
      %19 = sbr.rel (0) target = $region17
    $region16: #{fused_cnn_forward.1} parent=1 // pred_region
      _
    $region17: #{fused_cnn_forward.1} parent=1 // pred_fallthru
      _
    // Predicated region
    $region18: #{fused_cnn_forward.1} parent=1 // pred_check
      _
    $region19: #{fused_cnn_forward.1} parent=1 // pred_check_branch
      %21 = sbr.rel (0) target = $region21
    $region20: #{fused_cnn_forward.1} parent=1 // pred_region
      _
    $region21: #{fused_cnn_forward.1} parent=1 // pred_fallthru
      _
    // Predicated region
    $region22: #{fused_cnn_forward.1} parent=1 // pred_check
      _
    $region23: #{fused_cnn_forward.1} parent=1 // pred_check_branch
      %23 = sbr.rel (0) target = $region25
    $region24: #{fused_cnn_forward.1} parent=1 // pred_region
      _
    $region25: #{fused_cnn_forward.1} parent=1 // pred_fallthru
      _
    %v24 = vld [vmem:[%s0] sm:$0xff]
    %v25 = vld [vmem:[%s0 + $0x8] sm:$0xff]
    %v26 = vld [vmem:[%s0 + $0x10] sm:$0xff]
    %v27 = vld [vmem:[%s0 + $0x18] sm:$0xff]
    %v28 = vld [vmem:[%s0 + $0x20] sm:$0xff]
    %v29 = vld [vmem:[%s0 + $0x28] sm:$0xff]
    %v30 = vld [vmem:[%s0 + $0x30] sm:$0xff]
    %v31 = vld [vmem:[%s0 + $0x38] sm:$0xff]
    %v32 = vld [vmem:[%s0 + $0x40] sm:$0xff]
    %v33 = vld [vmem:[%s0 + $0x48] sm:$0xff]
    %v34 = vld [vmem:[%s0 + $0x50] sm:$0xff]
    %v35 = vld [vmem:[%s0 + $0x58] sm:$0xff]
    %v36 = vld [vmem:[%s0 + $0x60] sm:$0xff]
    %v37 = vld [vmem:[%s0 + $0x68] sm:$0xff]
    %v38 = vld [vmem:[%s0 + $0x70] sm:$0xff]
    %v39 = vld [vmem:[%s0 + $0x78] sm:$0xff]
    %v40 = vld [vmem:[%s0 + $0x80] sm:$0xff]
    %v41 = vld [vmem:[%s0 + $0x88] sm:$0xff]
    %v42 = vld [vmem:[%s0 + $0x90] sm:$0xff]
    %v43 = vld [vmem:[%s0 + $0x98] sm:$0xff]
    %v44 = vld [vmem:[%s0 + $0xa0] sm:$0xff]
    %v45 = vld [vmem:[%s0 + $0xa8] sm:$0xff]
    %v46 = vld [vmem:[%s0 + $0xb0] sm:$0xff]
    %v47 = vld [vmem:[%s0 + $0xb8] sm:$0xff]
    %v48 = vld [vmem:[%s0 + $0xc0] sm:$0xff]
    %v49 = vld [vmem:[%s0 + $0xc8] sm:$0xff]
    %v50 = vld [vmem:[%s0 + $0xd0] sm:$0xff]
    %v51 = vld [vmem:[%s0 + $0xd8] sm:$0xff]
    %v52 = vld [vmem:[%s0 + $0xe0] sm:$0xff]
    %v53 = vld [vmem:[%s0 + $0xe8] sm:$0xff]
    %v54 = vld [vmem:[%s0 + $0xf0] sm:$0xff]
    %v55 = vld [vmem:[%s0 + $0xf8] sm:$0xff]
    %v56 = vld [vmem:[%s0 + $0x100] sm:$0xff]
    %v57 = vld [vmem:[%s0 + $0x108] sm:$0xff]
    %v58 = vld [vmem:[%s0 + $0x110] sm:$0xff]
    %v59 = vld [vmem:[%s0 + $0x118] sm:$0xff]
    %v60 = vld [vmem:[%s0 + $0x120] sm:$0xff]
    %v61 = vld [vmem:[%s0 + $0x128] sm:$0xff]
    %v62 = vld [vmem:[%s0 + $0x130] sm:$0xff]
    %v63 = vld [vmem:[%s0 + $0x138] sm:$0xff]
    %v64 = vld [vmem:[%s0 + $0x140] sm:$0xff]
    %v65 = vld [vmem:[%s0 + $0x148] sm:$0xff]
    %v66 = vld [vmem:[%s0 + $0x150] sm:$0xff]
    %v67 = vld [vmem:[%s0 + $0x158] sm:$0xff]
    %v68 = vld [vmem:[%s0 + $0x160] sm:$0xff]
    %v69 = vld [vmem:[%s0 + $0x168] sm:$0xff]
    %v70 = vld [vmem:[%s0 + $0x170] sm:$0xff]
    %v71 = vld [vmem:[%s0 + $0x178] sm:$0xff]
    %v72 = vld [vmem:[%s0 + $0x180] sm:$0xff]
    %v73 = vld [vmem:[%s0 + $0x188] sm:$0xff]
    %v74 = vld [vmem:[%s0 + $0x190] sm:$0xff]
    %v75 = vld [vmem:[%s0 + $0x198] sm:$0xff]
    %v76 = vld [vmem:[%s0 + $0x1a0] sm:$0xff]
    %v77 = vld [vmem:[%s0 + $0x1a8] sm:$0xff]
    %v78 = vld [vmem:[%s0 + $0x1b0] sm:$0xff]
    %v79 = vld [vmem:[%s0 + $0x1b8] sm:$0xff]
    %v80 = vld [vmem:[%s0 + $0x1c0] sm:$0xff]
    %v81 = vld [vmem:[%s0 + $0x1c8] sm:$0xff]
    %v82 = vld [vmem:[%s0 + $0x1d0] sm:$0xff]
    %v83 = vld [vmem:[%s0 + $0x1d8] sm:$0xff]
    %v84 = vld [vmem:[%s0 + $0x1e0] sm:$0xff]
    %v85 = vld [vmem:[%s0 + $0x1e8] sm:$0xff]
    %v86 = vld [vmem:[%s0 + $0x1f0] sm:$0xff]
    %v87 = vld [vmem:[%s0 + $0x1f8] sm:$0xff]
    %v88 = vld [vmem:[%s1] sm:$0xff]
    %v89 = vld [vmem:[%s1 + $0x8] sm:$0xff]
    %v90 = vld [vmem:[%s1 + $0x10] sm:$0xff]
    %v91 = vld [vmem:[%s1 + $0x18] sm:$0xff]
    %v92 = vld [vmem:[%s1 + $0x20] sm:$0xf]
    %v93 = vld [vmem:[%s2] sm:$0x1]
    %v95 = vperm.slane %v93, 0
    %vm97 = vcmask 293888
    %v99 = vsel %vm97, %v24, 0
    %v102 = vsel %vm97, %v25, 0
    %v105 = vsel %vm97, %v26, 0
    %v108 = vsel %vm97, %v27, 0
    %v111 = vsel %vm97, %v28, 0
    %v114 = vsel %vm97, %v29, 0
    %v117 = vsel %vm97, %v30, 0
    %v120 = vsel %vm97, %v31, 0
    %v123 = vsel %vm97, %v32, 0
    %v126 = vsel %vm97, %v33, 0
    %v129 = vsel %vm97, %v34, 0
    %v132 = vsel %vm97, %v35, 0
    %v135 = vsel %vm97, %v36, 0
    %v138 = vsel %vm97, %v37, 0
    %v141 = vsel %vm97, %v38, 0
    %v144 = vsel %vm97, %v39, 0
    %v147 = vsel %vm97, %v40, 0
    %v150 = vsel %vm97, %v41, 0
    %v153 = vsel %vm97, %v42, 0
    %v156 = vsel %vm97, %v43, 0
    %v159 = vsel %vm97, %v44, 0
    %v162 = vsel %vm97, %v45, 0
    %v165 = vsel %vm97, %v46, 0
    %v168 = vsel %vm97, %v47, 0
    %v171 = vsel %vm97, %v48, 0
    %v174 = vsel %vm97, %v49, 0
    %v177 = vsel %vm97, %v50, 0
    %v180 = vsel %vm97, %v51, 0
    %v183 = vsel %vm97, %v52, 0
    %v186 = vsel %vm97, %v53, 0
    %v189 = vsel %vm97, %v54, 0
    %v192 = vsel %vm97, %v55, 0
    %v195 = vsel %vm97, %v56, 0
    %v198 = vsel %vm97, %v57, 0
    %v201 = vsel %vm97, %v58, 0
    %v204 = vsel %vm97, %v59, 0
    %v207 = vsel %vm97, %v60, 0
    %v210 = vsel %vm97, %v61, 0
    %v213 = vsel %vm97, %v62, 0
    %v216 = vsel %vm97, %v63, 0
    %v219 = vsel %vm97, %v64, 0
    %v222 = vsel %vm97, %v65, 0
    %v225 = vsel %vm97, %v66, 0
    %v228 = vsel %vm97, %v67, 0
    %v231 = vsel %vm97, %v68, 0
    %v234 = vsel %vm97, %v69, 0
    %v237 = vsel %vm97, %v70, 0
    %v240 = vsel %vm97, %v71, 0
    %v243 = vsel %vm97, %v72, 0
    %v246 = vsel %vm97, %v73, 0
    %v249 = vsel %vm97, %v74, 0
    %v252 = vsel %vm97, %v75, 0
    %v255 = vsel %vm97, %v76, 0
    %v258 = vsel %vm97, %v77, 0
    %v261 = vsel %vm97, %v78, 0
    %v264 = vsel %vm97, %v79, 0
    %v267 = vsel %vm97, %v80, 0
    %v270 = vsel %vm97, %v81, 0
    %v273 = vsel %vm97, %v82, 0
    %v276 = vsel %vm97, %v83, 0
    %v279 = vsel %vm97, %v84, 0
    %v282 = vsel %vm97, %v85, 0
    %v285 = vsel %vm97, %v86, 0
    %v288 = vsel %vm97, %v87, 0
    %vm290 = vcmask 1043456
    %v292 = vsel %vm290, %v92, 0
    %294 = vmatpush.msra.mxu0 0.0
    %295 = vmatpush.msra.mxu0 0.0
    %296 = vmatpush.msra.mxu0 0.0
    %297 = vmatpush.msra.mxu0 0.0
    %298 = vmatpush.msra.mxu0 0.0
    %299 = vmatpush.msra.mxu0 0.0
    %300 = vmatpush.msra.mxu0 0.0
    %301 = vmatpush.msra.mxu0 0.0
    %302 = vmatpush.msra.mxu0 0.0
    %303 = vmatpush.msra.mxu0 0.0
    %304 = vmatpush.msra.mxu0 0.0
    %v305 = vand.u32 %v292, 4294901760
    %306 = vmatpush.msra.mxu0 %v305
    %v307 = vand.u32 %v91, 4294901760
    %308 = vmatpush.msra.mxu0 %v307
    %v309 = vand.u32 %v90, 4294901760
    %310 = vmatpush.msra.mxu0 %v309
    %v311 = vand.u32 %v89, 4294901760
    %312 = vmatpush.msra.mxu0 %v311
    %v313 = vand.u32 %v88, 4294901760
    %314 = vmatpush.msra.mxu0 %v313
    %v315 = vand.u32 %v99, 4294901760
    %v316 = vsub.f32 %v99, %v315
    %v317 = vand.u32 %v316, 4294901760
    %v318 = vsub.f32 %v316, %v317
    %v319 = vand.u32 %v318, 4294901760
    %320 = vmatmul.f32.gmra.mxu0 %v319
    %v321 = vpop.f32.mrf.mxu0
    %v322 = vadd.f32 %v95, %v321
    %v323 = vand.u32 %v102, 4294901760
    %v324 = vsub.f32 %v102, %v323
    %v325 = vand.u32 %v324, 4294901760
    %v326 = vsub.f32 %v324, %v325
    %v327 = vand.u32 %v326, 4294901760
    %328 = vmatmul.f32.gmra.mxu0 %v327
    %v329 = vpop.f32.mrf.mxu0
    %v330 = vadd.f32 %v95, %v329
    %v331 = vand.u32 %v105, 4294901760
    %v332 = vsub.f32 %v105, %v331
    %v333 = vand.u32 %v332, 4294901760
    %v334 = vsub.f32 %v332, %v333
    %v335 = vand.u32 %v334, 4294901760
    %336 = vmatmul.f32.gmra.mxu0 %v335
    %v337 = vpop.f32.mrf.mxu0
    %v338 = vadd.f32 %v95, %v337
    %v339 = vand.u32 %v108, 4294901760
    %v340 = vsub.f32 %v108, %v339
    %v341 = vand.u32 %v340, 4294901760
    %v342 = vsub.f32 %v340, %v341
    %v343 = vand.u32 %v342, 4294901760
    %344 = vmatmul.f32.gmra.mxu0 %v343
    %v345 = vpop.f32.mrf.mxu0
    %v346 = vadd.f32 %v95, %v345
    %v347 = vand.u32 %v111, 4294901760
    %v348 = vsub.f32 %v111, %v347
    %v349 = vand.u32 %v348, 4294901760
    %v350 = vsub.f32 %v348, %v349
    %v351 = vand.u32 %v350, 4294901760
    %352 = vmatmul.f32.gmra.mxu0 %v351
    %v353 = vpop.f32.mrf.mxu0
    %v354 = vadd.f32 %v95, %v353
    %v355 = vand.u32 %v114, 4294901760
    %v356 = vsub.f32 %v114, %v355
    %v357 = vand.u32 %v356, 4294901760
    %v358 = vsub.f32 %v356, %v357
    %v359 = vand.u32 %v358, 4294901760
    %360 = vmatmul.f32.gmra.mxu0 %v359
    %v361 = vpop.f32.mrf.mxu0
    %v362 = vadd.f32 %v95, %v361
    %v363 = vand.u32 %v117, 4294901760
    %v364 = vsub.f32 %v117, %v363
    %v365 = vand.u32 %v364, 4294901760
    %v366 = vsub.f32 %v364, %v365
    %v367 = vand.u32 %v366, 4294901760
    %368 = vmatmul.f32.gmra.mxu0 %v367
    %v369 = vpop.f32.mrf.mxu0
    %v370 = vadd.f32 %v95, %v369
    %v371 = vand.u32 %v120, 4294901760
    %v372 = vsub.f32 %v120, %v371
    %v373 = vand.u32 %v372, 4294901760
    %v374 = vsub.f32 %v372, %v373
    %v375 = vand.u32 %v374, 4294901760
    %376 = vmatmul.f32.gmra.mxu0 %v375
    %v377 = vpop.f32.mrf.mxu0
    %v378 = vadd.f32 %v95, %v377
    %v379 = vand.u32 %v123, 4294901760
    %v380 = vsub.f32 %v123, %v379
    %v381 = vand.u32 %v380, 4294901760
    %v382 = vsub.f32 %v380, %v381
    %v383 = vand.u32 %v382, 4294901760
    %384 = vmatmul.f32.gmra.mxu0 %v383
    %v385 = vpop.f32.mrf.mxu0
    %v386 = vadd.f32 %v95, %v385
    %v387 = vand.u32 %v126, 4294901760
    %v388 = vsub.f32 %v126, %v387
    %v389 = vand.u32 %v388, 4294901760
    %v390 = vsub.f32 %v388, %v389
    %v391 = vand.u32 %v390, 4294901760
    %392 = vmatmul.f32.gmra.mxu0 %v391
    %v393 = vpop.f32.mrf.mxu0
    %v394 = vadd.f32 %v95, %v393
    %v395 = vand.u32 %v129, 4294901760
    %v396 = vsub.f32 %v129, %v395
    %v397 = vand.u32 %v396, 4294901760
    %v398 = vsub.f32 %v396, %v397
    %v399 = vand.u32 %v398, 4294901760
    %400 = vmatmul.f32.gmra.mxu0 %v399
    %v401 = vpop.f32.mrf.mxu0
    %v402 = vadd.f32 %v95, %v401
    %v403 = vand.u32 %v132, 4294901760
    %v404 = vsub.f32 %v132, %v403
    %v405 = vand.u32 %v404, 4294901760
    %v406 = vsub.f32 %v404, %v405
    %v407 = vand.u32 %v406, 4294901760
    %408 = vmatmul.f32.gmra.mxu0 %v407
    %v409 = vpop.f32.mrf.mxu0
    %v410 = vadd.f32 %v95, %v409
    %v411 = vand.u32 %v135, 4294901760
    %v412 = vsub.f32 %v135, %v411
    %v413 = vand.u32 %v412, 4294901760
    %v414 = vsub.f32 %v412, %v413
    %v415 = vand.u32 %v414, 4294901760
    %416 = vmatmul.f32.gmra.mxu0 %v415
    %v417 = vpop.f32.mrf.mxu0
    %v418 = vadd.f32 %v95, %v417
    %v419 = vand.u32 %v138, 4294901760
    %v420 = vsub.f32 %v138, %v419
    %v421 = vand.u32 %v420, 4294901760
    %v422 = vsub.f32 %v420, %v421
    %v423 = vand.u32 %v422, 4294901760
    %424 = vmatmul.f32.gmra.mxu0 %v423
    %v425 = vpop.f32.mrf.mxu0
    %v426 = vadd.f32 %v95, %v425
    %v427 = vand.u32 %v141, 4294901760
    %v428 = vsub.f32 %v141, %v427
    %v429 = vand.u32 %v428, 4294901760
    %v430 = vsub.f32 %v428, %v429
    %v431 = vand.u32 %v430, 4294901760
    %432 = vmatmul.f32.gmra.mxu0 %v431
    %v433 = vpop.f32.mrf.mxu0
    %v434 = vadd.f32 %v95, %v433
    %v435 = vand.u32 %v144, 4294901760
    %v436 = vsub.f32 %v144, %v435
    %v437 = vand.u32 %v436, 4294901760
    %v438 = vsub.f32 %v436, %v437
    %v439 = vand.u32 %v438, 4294901760
    %440 = vmatmul.f32.gmra.mxu0 %v439
    %v441 = vpop.f32.mrf.mxu0
    %v442 = vadd.f32 %v95, %v441
    %v443 = vand.u32 %v147, 4294901760
    %v444 = vsub.f32 %v147, %v443
    %v445 = vand.u32 %v444, 4294901760
    %v446 = vsub.f32 %v444, %v445
    %v447 = vand.u32 %v446, 4294901760
    %448 = vmatmul.f32.gmra.mxu0 %v447
    %v449 = vpop.f32.mrf.mxu0
    %v450 = vadd.f32 %v95, %v449
    %v451 = vand.u32 %v150, 4294901760
    %v452 = vsub.f32 %v150, %v451
    %v453 = vand.u32 %v452, 4294901760
    %v454 = vsub.f32 %v452, %v453
    %v455 = vand.u32 %v454, 4294901760
    %456 = vmatmul.f32.gmra.mxu0 %v455
    %v457 = vpop.f32.mrf.mxu0
    %v458 = vadd.f32 %v95, %v457
    %v459 = vand.u32 %v153, 4294901760
    %v460 = vsub.f32 %v153, %v459
    %v461 = vand.u32 %v460, 4294901760
    %v462 = vsub.f32 %v460, %v461
    %v463 = vand.u32 %v462, 4294901760
    %464 = vmatmul.f32.gmra.mxu0 %v463
    %v465 = vpop.f32.mrf.mxu0
    %v466 = vadd.f32 %v95, %v465
    %v467 = vand.u32 %v156, 4294901760
    %v468 = vsub.f32 %v156, %v467
    %v469 = vand.u32 %v468, 4294901760
    %v470 = vsub.f32 %v468, %v469
    %v471 = vand.u32 %v470, 4294901760
    %472 = vmatmul.f32.gmra.mxu0 %v471
    %v473 = vpop.f32.mrf.mxu0
    %v474 = vadd.f32 %v95, %v473
    %v475 = vand.u32 %v159, 4294901760
    %v476 = vsub.f32 %v159, %v475
    %v477 = vand.u32 %v476, 4294901760
    %v478 = vsub.f32 %v476, %v477
    %v479 = vand.u32 %v478, 4294901760
    %480 = vmatmul.f32.gmra.mxu0 %v479
    %v481 = vpop.f32.mrf.mxu0
    %v482 = vadd.f32 %v95, %v481
    %v483 = vand.u32 %v162, 4294901760
    %v484 = vsub.f32 %v162, %v483
    %v485 = vand.u32 %v484, 4294901760
    %v486 = vsub.f32 %v484, %v485
    %v487 = vand.u32 %v486, 4294901760
    %488 = vmatmul.f32.gmra.mxu0 %v487
    %v489 = vpop.f32.mrf.mxu0
    %v490 = vadd.f32 %v95, %v489
    %v491 = vand.u32 %v165, 4294901760
    %v492 = vsub.f32 %v165, %v491
    %v493 = vand.u32 %v492, 4294901760
    %v494 = vsub.f32 %v492, %v493
    %v495 = vand.u32 %v494, 4294901760
    %496 = vmatmul.f32.gmra.mxu0 %v495
    %v497 = vpop.f32.mrf.mxu0
    %v498 = vadd.f32 %v95, %v497
    %v499 = vand.u32 %v168, 4294901760
    %v500 = vsub.f32 %v168, %v499
    %v501 = vand.u32 %v500, 4294901760
    %v502 = vsub.f32 %v500, %v501
    %v503 = vand.u32 %v502, 4294901760
    %504 = vmatmul.f32.gmra.mxu0 %v503
    %v505 = vpop.f32.mrf.mxu0
    %v506 = vadd.f32 %v95, %v505
    %v507 = vand.u32 %v171, 4294901760
    %v508 = vsub.f32 %v171, %v507
    %v509 = vand.u32 %v508, 4294901760
    %v510 = vsub.f32 %v508, %v509
    %v511 = vand.u32 %v510, 4294901760
    %512 = vmatmul.f32.gmra.mxu0 %v511
    %v513 = vpop.f32.mrf.mxu0
    %v514 = vadd.f32 %v95, %v513
    %v515 = vand.u32 %v174, 4294901760
    %v516 = vsub.f32 %v174, %v515
    %v517 = vand.u32 %v516, 4294901760
    %v518 = vsub.f32 %v516, %v517
    %v519 = vand.u32 %v518, 4294901760
    %520 = vmatmul.f32.gmra.mxu0 %v519
    %v521 = vpop.f32.mrf.mxu0
    %v522 = vadd.f32 %v95, %v521
    %v523 = vand.u32 %v177, 4294901760
    %v524 = vsub.f32 %v177, %v523
    %v525 = vand.u32 %v524, 4294901760
    %v526 = vsub.f32 %v524, %v525
    %v527 = vand.u32 %v526, 4294901760
    %528 = vmatmul.f32.gmra.mxu0 %v527
    %v529 = vpop.f32.mrf.mxu0
    %v530 = vadd.f32 %v95, %v529
    %v531 = vand.u32 %v180, 4294901760
    %v532 = vsub.f32 %v180, %v531
    %v533 = vand.u32 %v532, 4294901760
    %v534 = vsub.f32 %v532, %v533
    %v535 = vand.u32 %v534, 4294901760
    %536 = vmatmul.f32.gmra.mxu0 %v535
    %v537 = vpop.f32.mrf.mxu0
    %v538 = vadd.f32 %v95, %v537
    %v539 = vand.u32 %v183, 4294901760
    %v540 = vsub.f32 %v183, %v539
    %v541 = vand.u32 %v540, 4294901760
    %v542 = vsub.f32 %v540, %v541
    %v543 = vand.u32 %v542, 4294901760
    %544 = vmatmul.f32.gmra.mxu0 %v543
    %v545 = vpop.f32.mrf.mxu0
    %v546 = vadd.f32 %v95, %v545
    %v547 = vand.u32 %v186, 4294901760
    %v548 = vsub.f32 %v186, %v547
    %v549 = vand.u32 %v548, 4294901760
    %v550 = vsub.f32 %v548, %v549
    %v551 = vand.u32 %v550, 4294901760
    %552 = vmatmul.f32.gmra.mxu0 %v551
    %v553 = vpop.f32.mrf.mxu0
    %v554 = vadd.f32 %v95, %v553
    %v555 = vand.u32 %v189, 4294901760
    %v556 = vsub.f32 %v189, %v555
    %v557 = vand.u32 %v556, 4294901760
    %v558 = vsub.f32 %v556, %v557
    %v559 = vand.u32 %v558, 4294901760
    %560 = vmatmul.f32.gmra.mxu0 %v559
    %v561 = vpop.f32.mrf.mxu0
    %v562 = vadd.f32 %v95, %v561
    %v563 = vand.u32 %v192, 4294901760
    %v564 = vsub.f32 %v192, %v563
    %v565 = vand.u32 %v564, 4294901760
    %v566 = vsub.f32 %v564, %v565
    %v567 = vand.u32 %v566, 4294901760
    %568 = vmatmul.f32.gmra.mxu0 %v567
    %v569 = vpop.f32.mrf.mxu0
    %v570 = vadd.f32 %v95, %v569
    %v571 = vand.u32 %v195, 4294901760
    %v572 = vsub.f32 %v195, %v571
    %v573 = vand.u32 %v572, 4294901760
    %v574 = vsub.f32 %v572, %v573
    %v575 = vand.u32 %v574, 4294901760
    %576 = vmatmul.f32.gmra.mxu0 %v575
    %v577 = vpop.f32.mrf.mxu0
    %v578 = vadd.f32 %v95, %v577
    %v579 = vand.u32 %v198, 4294901760
    %v580 = vsub.f32 %v198, %v579
    %v581 = vand.u32 %v580, 4294901760
    %v582 = vsub.f32 %v580, %v581
    %v583 = vand.u32 %v582, 4294901760
    %584 = vmatmul.f32.gmra.mxu0 %v583
    %v585 = vpop.f32.mrf.mxu0
    %v586 = vadd.f32 %v95, %v585
    %v587 = vand.u32 %v201, 4294901760
    %v588 = vsub.f32 %v201, %v587
    %v589 = vand.u32 %v588, 4294901760
    %v590 = vsub.f32 %v588, %v589
    %v591 = vand.u32 %v590, 4294901760
    %592 = vmatmul.f32.gmra.mxu0 %v591
    %v593 = vpop.f32.mrf.mxu0
    %v594 = vadd.f32 %v95, %v593
    %v595 = vand.u32 %v204, 4294901760
    %v596 = vsub.f32 %v204, %v595
    %v597 = vand.u32 %v596, 4294901760
    %v598 = vsub.f32 %v596, %v597
    %v599 = vand.u32 %v598, 4294901760
    %600 = vmatmul.f32.gmra.mxu0 %v599
    %v601 = vpop.f32.mrf.mxu0
    %v602 = vadd.f32 %v95, %v601
    %v603 = vand.u32 %v207, 4294901760
    %v604 = vsub.f32 %v207, %v603
    %v605 = vand.u32 %v604, 4294901760
    %v606 = vsub.f32 %v604, %v605
    %v607 = vand.u32 %v606, 4294901760
    %608 = vmatmul.f32.gmra.mxu0 %v607
    %v609 = vpop.f32.mrf.mxu0
    %v610 = vadd.f32 %v95, %v609
    %v611 = vand.u32 %v210, 4294901760
    %v612 = vsub.f32 %v210, %v611
    %v613 = vand.u32 %v612, 4294901760
    %v614 = vsub.f32 %v612, %v613
    %v615 = vand.u32 %v614, 4294901760
    %616 = vmatmul.f32.gmra.mxu0 %v615
    %v617 = vpop.f32.mrf.mxu0
    %v618 = vadd.f32 %v95, %v617
    %v619 = vand.u32 %v213, 4294901760
    %v620 = vsub.f32 %v213, %v619
    %v621 = vand.u32 %v620, 4294901760
    %v622 = vsub.f32 %v620, %v621
    %v623 = vand.u32 %v622, 4294901760
    %624 = vmatmul.f32.gmra.mxu0 %v623
    %v625 = vpop.f32.mrf.mxu0
    %v626 = vadd.f32 %v95, %v625
    %v627 = vand.u32 %v216, 4294901760
    %v628 = vsub.f32 %v216, %v627
    %v629 = vand.u32 %v628, 4294901760
    %v630 = vsub.f32 %v628, %v629
    %v631 = vand.u32 %v630, 4294901760
    %632 = vmatmul.f32.gmra.mxu0 %v631
    %v633 = vpop.f32.mrf.mxu0
    %v634 = vadd.f32 %v95, %v633
    %v635 = vand.u32 %v219, 4294901760
    %v636 = vsub.f32 %v219, %v635
    %v637 = vand.u32 %v636, 4294901760
    %v638 = vsub.f32 %v636, %v637
    %v639 = vand.u32 %v638, 4294901760
    %640 = vmatmul.f32.gmra.mxu0 %v639
    %v641 = vpop.f32.mrf.mxu0
    %v642 = vadd.f32 %v95, %v641
    %v643 = vand.u32 %v222, 4294901760
    %v644 = vsub.f32 %v222, %v643
    %v645 = vand.u32 %v644, 4294901760
    %v646 = vsub.f32 %v644, %v645
    %v647 = vand.u32 %v646, 4294901760
    %648 = vmatmul.f32.gmra.mxu0 %v647
    %v649 = vpop.f32.mrf.mxu0
    %v650 = vadd.f32 %v95, %v649
    %v651 = vand.u32 %v225, 4294901760
    %v652 = vsub.f32 %v225, %v651
    %v653 = vand.u32 %v652, 4294901760
    %v654 = vsub.f32 %v652, %v653
    %v655 = vand.u32 %v654, 4294901760
    %656 = vmatmul.f32.gmra.mxu0 %v655
    %v657 = vpop.f32.mrf.mxu0
    %v658 = vadd.f32 %v95, %v657
    %v659 = vand.u32 %v228, 4294901760
    %v660 = vsub.f32 %v228, %v659
    %v661 = vand.u32 %v660, 4294901760
    %v662 = vsub.f32 %v660, %v661
    %v663 = vand.u32 %v662, 4294901760
    %664 = vmatmul.f32.gmra.mxu0 %v663
    %v665 = vpop.f32.mrf.mxu0
    %v666 = vadd.f32 %v95, %v665
    %v667 = vand.u32 %v231, 4294901760
    %v668 = vsub.f32 %v231, %v667
    %v669 = vand.u32 %v668, 4294901760
    %v670 = vsub.f32 %v668, %v669
    %v671 = vand.u32 %v670, 4294901760
    %672 = vmatmul.f32.gmra.mxu0 %v671
    %v673 = vpop.f32.mrf.mxu0
    %v674 = vadd.f32 %v95, %v673
    %v675 = vand.u32 %v234, 4294901760
    %v676 = vsub.f32 %v234, %v675
    %v677 = vand.u32 %v676, 4294901760
    %v678 = vsub.f32 %v676, %v677
    %v679 = vand.u32 %v678, 4294901760
    %680 = vmatmul.f32.gmra.mxu0 %v679
    %v681 = vpop.f32.mrf.mxu0
    %v682 = vadd.f32 %v95, %v681
    %v683 = vand.u32 %v237, 4294901760
    %v684 = vsub.f32 %v237, %v683
    %v685 = vand.u32 %v684, 4294901760
    %v686 = vsub.f32 %v684, %v685
    %v687 = vand.u32 %v686, 4294901760
    %688 = vmatmul.f32.gmra.mxu0 %v687
    %v689 = vpop.f32.mrf.mxu0
    %v690 = vadd.f32 %v95, %v689
    %v691 = vand.u32 %v240, 4294901760
    %v692 = vsub.f32 %v240, %v691
    %v693 = vand.u32 %v692, 4294901760
    %v694 = vsub.f32 %v692, %v693
    %v695 = vand.u32 %v694, 4294901760
    %696 = vmatmul.f32.gmra.mxu0 %v695
    %v697 = vpop.f32.mrf.mxu0
    %v698 = vadd.f32 %v95, %v697
    %v699 = vand.u32 %v243, 4294901760
    %v700 = vsub.f32 %v243, %v699
    %v701 = vand.u32 %v700, 4294901760
    %v702 = vsub.f32 %v700, %v701
    %v703 = vand.u32 %v702, 4294901760
    %704 = vmatmul.f32.gmra.mxu0 %v703
    %v705 = vpop.f32.mrf.mxu0
    %v706 = vadd.f32 %v95, %v705
    %v707 = vand.u32 %v246, 4294901760
    %v708 = vsub.f32 %v246, %v707
    %v709 = vand.u32 %v708, 4294901760
    %v710 = vsub.f32 %v708, %v709
    %v711 = vand.u32 %v710, 4294901760
    %712 = vmatmul.f32.gmra.mxu0 %v711
    %v713 = vpop.f32.mrf.mxu0
    %v714 = vadd.f32 %v95, %v713
    %v715 = vand.u32 %v249, 4294901760
    %v716 = vsub.f32 %v249, %v715
    %v717 = vand.u32 %v716, 4294901760
    %v718 = vsub.f32 %v716, %v717
    %v719 = vand.u32 %v718, 4294901760
    %720 = vmatmul.f32.gmra.mxu0 %v719
    %v721 = vpop.f32.mrf.mxu0
    %v722 = vadd.f32 %v95, %v721
    %v723 = vand.u32 %v252, 4294901760
    %v724 = vsub.f32 %v252, %v723
    %v725 = vand.u32 %v724, 4294901760
    %v726 = vsub.f32 %v724, %v725
    %v727 = vand.u32 %v726, 4294901760
    %728 = vmatmul.f32.gmra.mxu0 %v727
    %v729 = vpop.f32.mrf.mxu0
    %v730 = vadd.f32 %v95, %v729
    %v731 = vand.u32 %v255, 4294901760
    %v732 = vsub.f32 %v255, %v731
    %v733 = vand.u32 %v732, 4294901760
    %v734 = vsub.f32 %v732, %v733
    %v735 = vand.u32 %v734, 4294901760
    %736 = vmatmul.f32.gmra.mxu0 %v735
    %v737 = vpop.f32.mrf.mxu0
    %v738 = vadd.f32 %v95, %v737
    %v739 = vand.u32 %v258, 4294901760
    %v740 = vsub.f32 %v258, %v739
    %v741 = vand.u32 %v740, 4294901760
    %v742 = vsub.f32 %v740, %v741
    %v743 = vand.u32 %v742, 4294901760
    %744 = vmatmul.f32.gmra.mxu0 %v743
    %v745 = vpop.f32.mrf.mxu0
    %v746 = vadd.f32 %v95, %v745
    %v747 = vand.u32 %v261, 4294901760
    %v748 = vsub.f32 %v261, %v747
    %v749 = vand.u32 %v748, 4294901760
    %v750 = vsub.f32 %v748, %v749
    %v751 = vand.u32 %v750, 4294901760
    %752 = vmatmul.f32.gmra.mxu0 %v751
    %v753 = vpop.f32.mrf.mxu0
    %v754 = vadd.f32 %v95, %v753
    %v755 = vand.u32 %v264, 4294901760
    %v756 = vsub.f32 %v264, %v755
    %v757 = vand.u32 %v756, 4294901760
    %v758 = vsub.f32 %v756, %v757
    %v759 = vand.u32 %v758, 4294901760
    %760 = vmatmul.f32.gmra.mxu0 %v759
    %v761 = vpop.f32.mrf.mxu0
    %v762 = vadd.f32 %v95, %v761
    %v763 = vand.u32 %v267, 4294901760
    %v764 = vsub.f32 %v267, %v763
    %v765 = vand.u32 %v764, 4294901760
    %v766 = vsub.f32 %v764, %v765
    %v767 = vand.u32 %v766, 4294901760
    %768 = vmatmul.f32.gmra.mxu0 %v767
    %v769 = vpop.f32.mrf.mxu0
    %v770 = vadd.f32 %v95, %v769
    %v771 = vand.u32 %v270, 4294901760
    %v772 = vsub.f32 %v270, %v771
    %v773 = vand.u32 %v772, 4294901760
    %v774 = vsub.f32 %v772, %v773
    %v775 = vand.u32 %v774, 4294901760
    %776 = vmatmul.f32.gmra.mxu0 %v775
    %v777 = vpop.f32.mrf.mxu0
    %v778 = vadd.f32 %v95, %v777
    %v779 = vand.u32 %v273, 4294901760
    %v780 = vsub.f32 %v273, %v779
    %v781 = vand.u32 %v780, 4294901760
    %v782 = vsub.f32 %v780, %v781
    %v783 = vand.u32 %v782, 4294901760
    %784 = vmatmul.f32.gmra.mxu0 %v783
    %v785 = vpop.f32.mrf.mxu0
    %v786 = vadd.f32 %v95, %v785
    %v787 = vand.u32 %v276, 4294901760
    %v788 = vsub.f32 %v276, %v787
    %v789 = vand.u32 %v788, 4294901760
    %v790 = vsub.f32 %v788, %v789
    %v791 = vand.u32 %v790, 4294901760
    %792 = vmatmul.f32.gmra.mxu0 %v791
    %v793 = vpop.f32.mrf.mxu0
    %v794 = vadd.f32 %v95, %v793
    %v795 = vand.u32 %v279, 4294901760
    %v796 = vsub.f32 %v279, %v795
    %v797 = vand.u32 %v796, 4294901760
    %v798 = vsub.f32 %v796, %v797
    %v799 = vand.u32 %v798, 4294901760
    %800 = vmatmul.f32.gmra.mxu0 %v799
    %v801 = vpop.f32.mrf.mxu0
    %v802 = vadd.f32 %v95, %v801
    %v803 = vand.u32 %v282, 4294901760
    %v804 = vsub.f32 %v282, %v803
    %v805 = vand.u32 %v804, 4294901760
    %v806 = vsub.f32 %v804, %v805
    %v807 = vand.u32 %v806, 4294901760
    %808 = vmatmul.f32.gmra.mxu0 %v807
    %v809 = vpop.f32.mrf.mxu0
    %v810 = vadd.f32 %v95, %v809
    %v811 = vand.u32 %v285, 4294901760
    %v812 = vsub.f32 %v285, %v811
    %v813 = vand.u32 %v812, 4294901760
    %v814 = vsub.f32 %v812, %v813
    %v815 = vand.u32 %v814, 4294901760
    %816 = vmatmul.f32.gmra.mxu0 %v815
    %v817 = vpop.f32.mrf.mxu0
    %v818 = vadd.f32 %v95, %v817
    %v819 = vand.u32 %v288, 4294901760
    %v820 = vsub.f32 %v288, %v819
    %v821 = vand.u32 %v820, 4294901760
    %v822 = vsub.f32 %v820, %v821
    %v823 = vand.u32 %v822, 4294901760
    %824 = vmatmul.f32.gmra.mxu0 %v823
    %v825 = vpop.f32.mrf.mxu0
    %v826 = vadd.f32 %v95, %v825
    %827 = vdwg.mxu0
    %828 = vmatpush.msra.mxu0 0.0
    %829 = vmatpush.msra.mxu0 0.0
    %830 = vmatpush.msra.mxu0 0.0
    %831 = vmatpush.msra.mxu0 0.0
    %832 = vmatpush.msra.mxu0 0.0
    %833 = vmatpush.msra.mxu0 0.0
    %834 = vmatpush.msra.mxu0 0.0
    %835 = vmatpush.msra.mxu0 0.0
    %836 = vmatpush.msra.mxu0 0.0
    %837 = vmatpush.msra.mxu0 0.0
    %838 = vmatpush.msra.mxu0 0.0
    %v839 = vand.u32 %v292, 4294901760
    %v840 = vsub.f32 %v292, %v839
    %v841 = vand.u32 %v840, 4294901760
    %v842 = vsub.f32 %v840, %v841
    %v843 = vand.u32 %v842, 4294901760
    %844 = vmatpush.msra.mxu0 %v843
    %v845 = vand.u32 %v91, 4294901760
    %v846 = vsub.f32 %v91, %v845
    %v847 = vand.u32 %v846, 4294901760
    %v848 = vsub.f32 %v846, %v847
    %v849 = vand.u32 %v848, 4294901760
    %850 = vmatpush.msra.mxu0 %v849
    %v851 = vand.u32 %v90, 4294901760
    %v852 = vsub.f32 %v90, %v851
    %v853 = vand.u32 %v852, 4294901760
    %v854 = vsub.f32 %v852, %v853
    %v855 = vand.u32 %v854, 4294901760
    %856 = vmatpush.msra.mxu0 %v855
    %v857 = vand.u32 %v89, 4294901760
    %v858 = vsub.f32 %v89, %v857
    %v859 = vand.u32 %v858, 4294901760
    %v860 = vsub.f32 %v858, %v859
    %v861 = vand.u32 %v860, 4294901760
    %862 = vmatpush.msra.mxu0 %v861
    %v863 = vand.u32 %v88, 4294901760
    %v864 = vsub.f32 %v88, %v863
    %v865 = vand.u32 %v864, 4294901760
    %v866 = vsub.f32 %v864, %v865
    %v867 = vand.u32 %v866, 4294901760
    %868 = vmatpush.msra.mxu0 %v867
    %v869 = vand.u32 %v99, 4294901760
    %870 = vmatmul.f32.gmra.mxu0 %v869
    %v871 = vpop.f32.mrf.mxu0
    %v872 = vadd.f32 %v322, %v871
    %v873 = vand.u32 %v102, 4294901760
    %874 = vmatmul.f32.gmra.mxu0 %v873
    %v875 = vpop.f32.mrf.mxu0
    %v876 = vadd.f32 %v330, %v875
    %v877 = vand.u32 %v105, 4294901760
    %878 = vmatmul.f32.gmra.mxu0 %v877
    %v879 = vpop.f32.mrf.mxu0
    %v880 = vadd.f32 %v338, %v879
    %v881 = vand.u32 %v108, 4294901760
    %882 = vmatmul.f32.gmra.mxu0 %v881
    %v883 = vpop.f32.mrf.mxu0
    %v884 = vadd.f32 %v346, %v883
    %v885 = vand.u32 %v111, 4294901760
    %886 = vmatmul.f32.gmra.mxu0 %v885
    %v887 = vpop.f32.mrf.mxu0
    %v888 = vadd.f32 %v354, %v887
    %v889 = vand.u32 %v114, 4294901760
    %890 = vmatmul.f32.gmra.mxu0 %v889
    %v891 = vpop.f32.mrf.mxu0
    %v892 = vadd.f32 %v362, %v891
    %v893 = vand.u32 %v117, 4294901760
    %894 = vmatmul.f32.gmra.mxu0 %v893
    %v895 = vpop.f32.mrf.mxu0
    %v896 = vadd.f32 %v370, %v895
    %v897 = vand.u32 %v120, 4294901760
    %898 = vmatmul.f32.gmra.mxu0 %v897
    %v899 = vpop.f32.mrf.mxu0
    %v900 = vadd.f32 %v378, %v899
    %v901 = vand.u32 %v123, 4294901760
    %902 = vmatmul.f32.gmra.mxu0 %v901
    %v903 = vpop.f32.mrf.mxu0
    %v904 = vadd.f32 %v386, %v903
    %v905 = vand.u32 %v126, 4294901760
    %906 = vmatmul.f32.gmra.mxu0 %v905
    %v907 = vpop.f32.mrf.mxu0
    %v908 = vadd.f32 %v394, %v907
    %v909 = vand.u32 %v129, 4294901760
    %910 = vmatmul.f32.gmra.mxu0 %v909
    %v911 = vpop.f32.mrf.mxu0
    %v912 = vadd.f32 %v402, %v911
    %v913 = vand.u32 %v132, 4294901760
    %914 = vmatmul.f32.gmra.mxu0 %v913
    %v915 = vpop.f32.mrf.mxu0
    %v916 = vadd.f32 %v410, %v915
    %v917 = vand.u32 %v135, 4294901760
    %918 = vmatmul.f32.gmra.mxu0 %v917
    %v919 = vpop.f32.mrf.mxu0
    %v920 = vadd.f32 %v418, %v919
    %v921 = vand.u32 %v138, 4294901760
    %922 = vmatmul.f32.gmra.mxu0 %v921
    %v923 = vpop.f32.mrf.mxu0
    %v924 = vadd.f32 %v426, %v923
    %v925 = vand.u32 %v141, 4294901760
    %926 = vmatmul.f32.gmra.mxu0 %v925
    %v927 = vpop.f32.mrf.mxu0
    %v928 = vadd.f32 %v434, %v927
    %v929 = vand.u32 %v144, 4294901760
    %930 = vmatmul.f32.gmra.mxu0 %v929
    %v931 = vpop.f32.mrf.mxu0
    %v932 = vadd.f32 %v442, %v931
    %v933 = vand.u32 %v147, 4294901760
    %934 = vmatmul.f32.gmra.mxu0 %v933
    %v935 = vpop.f32.mrf.mxu0
    %v936 = vadd.f32 %v450, %v935
    %v937 = vand.u32 %v150, 4294901760
    %938 = vmatmul.f32.gmra.mxu0 %v937
    %v939 = vpop.f32.mrf.mxu0
    %v940 = vadd.f32 %v458, %v939
    %v941 = vand.u32 %v153, 4294901760
    %942 = vmatmul.f32.gmra.mxu0 %v941
    %v943 = vpop.f32.mrf.mxu0
    %v944 = vadd.f32 %v466, %v943
    %v945 = vand.u32 %v156, 4294901760
    %946 = vmatmul.f32.gmra.mxu0 %v945
    %v947 = vpop.f32.mrf.mxu0
    %v948 = vadd.f32 %v474, %v947
    %v949 = vand.u32 %v159, 4294901760
    %950 = vmatmul.f32.gmra.mxu0 %v949
    %v951 = vpop.f32.mrf.mxu0
    %v952 = vadd.f32 %v482, %v951
    %v953 = vand.u32 %v162, 4294901760
    %954 = vmatmul.f32.gmra.mxu0 %v953
    %v955 = vpop.f32.mrf.mxu0
    %v956 = vadd.f32 %v490, %v955
    %v957 = vand.u32 %v165, 4294901760
    %958 = vmatmul.f32.gmra.mxu0 %v957
    %v959 = vpop.f32.mrf.mxu0
    %v960 = vadd.f32 %v498, %v959
    %v961 = vand.u32 %v168, 4294901760
    %962 = vmatmul.f32.gmra.mxu0 %v961
    %v963 = vpop.f32.mrf.mxu0
    %v964 = vadd.f32 %v506, %v963
    %v965 = vand.u32 %v171, 4294901760
    %966 = vmatmul.f32.gmra.mxu0 %v965
    %v967 = vpop.f32.mrf.mxu0
    %v968 = vadd.f32 %v514, %v967
    %v969 = vand.u32 %v174, 4294901760
    %970 = vmatmul.f32.gmra.mxu0 %v969
    %v971 = vpop.f32.mrf.mxu0
    %v972 = vadd.f32 %v522, %v971
    %v973 = vand.u32 %v177, 4294901760
    %974 = vmatmul.f32.gmra.mxu0 %v973
    %v975 = vpop.f32.mrf.mxu0
    %v976 = vadd.f32 %v530, %v975
    %v977 = vand.u32 %v180, 4294901760
    %978 = vmatmul.f32.gmra.mxu0 %v977
    %v979 = vpop.f32.mrf.mxu0
    %v980 = vadd.f32 %v538, %v979
    %v981 = vand.u32 %v183, 4294901760
    %982 = vmatmul.f32.gmra.mxu0 %v981
    %v983 = vpop.f32.mrf.mxu0
    %v984 = vadd.f32 %v546, %v983
    %v985 = vand.u32 %v186, 4294901760
    %986 = vmatmul.f32.gmra.mxu0 %v985
    %v987 = vpop.f32.mrf.mxu0
    %v988 = vadd.f32 %v554, %v987
    %v989 = vand.u32 %v189, 4294901760
    %990 = vmatmul.f32.gmra.mxu0 %v989
    %v991 = vpop.f32.mrf.mxu0
    %v992 = vadd.f32 %v562, %v991
    %v993 = vand.u32 %v192, 4294901760
    %994 = vmatmul.f32.gmra.mxu0 %v993
    %v995 = vpop.f32.mrf.mxu0
    %v996 = vadd.f32 %v570, %v995
    %v997 = vand.u32 %v195, 4294901760
    %998 = vmatmul.f32.gmra.mxu0 %v997
    %v999 = vpop.f32.mrf.mxu0
    %v1000 = vadd.f32 %v578, %v999
    %v1001 = vand.u32 %v198, 4294901760
    %1002 = vmatmul.f32.gmra.mxu0 %v1001
    %v1003 = vpop.f32.mrf.mxu0
    %v1004 = vadd.f32 %v586, %v1003
    %v1005 = vand.u32 %v201, 4294901760
    %1006 = vmatmul.f32.gmra.mxu0 %v1005
    %v1007 = vpop.f32.mrf.mxu0
    %v1008 = vadd.f32 %v594, %v1007
    %v1009 = vand.u32 %v204, 4294901760
    %1010 = vmatmul.f32.gmra.mxu0 %v1009
    %v1011 = vpop.f32.mrf.mxu0
    %v1012 = vadd.f32 %v602, %v1011
    %v1013 = vand.u32 %v207, 4294901760
    %1014 = vmatmul.f32.gmra.mxu0 %v1013
    %v1015 = vpop.f32.mrf.mxu0
    %v1016 = vadd.f32 %v610, %v1015
    %v1017 = vand.u32 %v210, 4294901760
    %1018 = vmatmul.f32.gmra.mxu0 %v1017
    %v1019 = vpop.f32.mrf.mxu0
    %v1020 = vadd.f32 %v618, %v1019
    %v1021 = vand.u32 %v213, 4294901760
    %1022 = vmatmul.f32.gmra.mxu0 %v1021
    %v1023 = vpop.f32.mrf.mxu0
    %v1024 = vadd.f32 %v626, %v1023
    %v1025 = vand.u32 %v216, 4294901760
    %1026 = vmatmul.f32.gmra.mxu0 %v1025
    %v1027 = vpop.f32.mrf.mxu0
    %v1028 = vadd.f32 %v634, %v1027
    %v1029 = vand.u32 %v219, 4294901760
    %1030 = vmatmul.f32.gmra.mxu0 %v1029
    %v1031 = vpop.f32.mrf.mxu0
    %v1032 = vadd.f32 %v642, %v1031
    %v1033 = vand.u32 %v222, 4294901760
    %1034 = vmatmul.f32.gmra.mxu0 %v1033
    %v1035 = vpop.f32.mrf.mxu0
    %v1036 = vadd.f32 %v650, %v1035
    %v1037 = vand.u32 %v225, 4294901760
    %1038 = vmatmul.f32.gmra.mxu0 %v1037
    %v1039 = vpop.f32.mrf.mxu0
    %v1040 = vadd.f32 %v658, %v1039
    %v1041 = vand.u32 %v228, 4294901760
    %1042 = vmatmul.f32.gmra.mxu0 %v1041
    %v1043 = vpop.f32.mrf.mxu0
    %v1044 = vadd.f32 %v666, %v1043
    %v1045 = vand.u32 %v231, 4294901760
    %1046 = vmatmul.f32.gmra.mxu0 %v1045
    %v1047 = vpop.f32.mrf.mxu0
    %v1048 = vadd.f32 %v674, %v1047
    %v1049 = vand.u32 %v234, 4294901760
    %1050 = vmatmul.f32.gmra.mxu0 %v1049
    %v1051 = vpop.f32.mrf.mxu0
    %v1052 = vadd.f32 %v682, %v1051
    %v1053 = vand.u32 %v237, 4294901760
    %1054 = vmatmul.f32.gmra.mxu0 %v1053
    %v1055 = vpop.f32.mrf.mxu0
    %v1056 = vadd.f32 %v690, %v1055
    %v1057 = vand.u32 %v240, 4294901760
    %1058 = vmatmul.f32.gmra.mxu0 %v1057
    %v1059 = vpop.f32.mrf.mxu0
    %v1060 = vadd.f32 %v698, %v1059
    %v1061 = vand.u32 %v243, 4294901760
    %1062 = vmatmul.f32.gmra.mxu0 %v1061
    %v1063 = vpop.f32.mrf.mxu0
    %v1064 = vadd.f32 %v706, %v1063
    %v1065 = vand.u32 %v246, 4294901760
    %1066 = vmatmul.f32.gmra.mxu0 %v1065
    %v1067 = vpop.f32.mrf.mxu0
    %v1068 = vadd.f32 %v714, %v1067
    %v1069 = vand.u32 %v249, 4294901760
    %1070 = vmatmul.f32.gmra.mxu0 %v1069
    %v1071 = vpop.f32.mrf.mxu0
    %v1072 = vadd.f32 %v722, %v1071
    %v1073 = vand.u32 %v252, 4294901760
    %1074 = vmatmul.f32.gmra.mxu0 %v1073
    %v1075 = vpop.f32.mrf.mxu0
    %v1076 = vadd.f32 %v730, %v1075
    %v1077 = vand.u32 %v255, 4294901760
    %1078 = vmatmul.f32.gmra.mxu0 %v1077
    %v1079 = vpop.f32.mrf.mxu0
    %v1080 = vadd.f32 %v738, %v1079
    %v1081 = vand.u32 %v258, 4294901760
    %1082 = vmatmul.f32.gmra.mxu0 %v1081
    %v1083 = vpop.f32.mrf.mxu0
    %v1084 = vadd.f32 %v746, %v1083
    %v1085 = vand.u32 %v261, 4294901760
    %1086 = vmatmul.f32.gmra.mxu0 %v1085
    %v1087 = vpop.f32.mrf.mxu0
    %v1088 = vadd.f32 %v754, %v1087
    %v1089 = vand.u32 %v264, 4294901760
    %1090 = vmatmul.f32.gmra.mxu0 %v1089
    %v1091 = vpop.f32.mrf.mxu0
    %v1092 = vadd.f32 %v762, %v1091
    %v1093 = vand.u32 %v267, 4294901760
    %1094 = vmatmul.f32.gmra.mxu0 %v1093
    %v1095 = vpop.f32.mrf.mxu0
    %v1096 = vadd.f32 %v770, %v1095
    %v1097 = vand.u32 %v270, 4294901760
    %1098 = vmatmul.f32.gmra.mxu0 %v1097
    %v1099 = vpop.f32.mrf.mxu0
    %v1100 = vadd.f32 %v778, %v1099
    %v1101 = vand.u32 %v273, 4294901760
    %1102 = vmatmul.f32.gmra.mxu0 %v1101
    %v1103 = vpop.f32.mrf.mxu0
    %v1104 = vadd.f32 %v786, %v1103
    %v1105 = vand.u32 %v276, 4294901760
    %1106 = vmatmul.f32.gmra.mxu0 %v1105
    %v1107 = vpop.f32.mrf.mxu0
    %v1108 = vadd.f32 %v794, %v1107
    %v1109 = vand.u32 %v279, 4294901760
    %1110 = vmatmul.f32.gmra.mxu0 %v1109
    %v1111 = vpop.f32.mrf.mxu0
    %v1112 = vadd.f32 %v802, %v1111
    %v1113 = vand.u32 %v282, 4294901760
    %1114 = vmatmul.f32.gmra.mxu0 %v1113
    %v1115 = vpop.f32.mrf.mxu0
    %v1116 = vadd.f32 %v810, %v1115
    %v1117 = vand.u32 %v285, 4294901760
    %1118 = vmatmul.f32.gmra.mxu0 %v1117
    %v1119 = vpop.f32.mrf.mxu0
    %v1120 = vadd.f32 %v818, %v1119
    %v1121 = vand.u32 %v288, 4294901760
    %1122 = vmatmul.f32.gmra.mxu0 %v1121
    %v1123 = vpop.f32.mrf.mxu0
    %v1124 = vadd.f32 %v826, %v1123
    %1125 = vdwg.mxu0
    %1126 = vmatpush.msra.mxu0 0.0
    %1127 = vmatpush.msra.mxu0 0.0
    %1128 = vmatpush.msra.mxu0 0.0
    %1129 = vmatpush.msra.mxu0 0.0
    %1130 = vmatpush.msra.mxu0 0.0
    %1131 = vmatpush.msra.mxu0 0.0
    %1132 = vmatpush.msra.mxu0 0.0
    %1133 = vmatpush.msra.mxu0 0.0
    %1134 = vmatpush.msra.mxu0 0.0
    %1135 = vmatpush.msra.mxu0 0.0
    %1136 = vmatpush.msra.mxu0 0.0
    %v1137 = vand.u32 %v292, 4294901760
    %v1138 = vsub.f32 %v292, %v1137
    %1139 = vmatpush.msra.mxu0 %v1138
    %v1140 = vand.u32 %v91, 4294901760
    %v1141 = vsub.f32 %v91, %v1140
    %1142 = vmatpush.msra.mxu0 %v1141
    %v1143 = vand.u32 %v90, 4294901760
    %v1144 = vsub.f32 %v90, %v1143
    %1145 = vmatpush.msra.mxu0 %v1144
    %v1146 = vand.u32 %v89, 4294901760
    %v1147 = vsub.f32 %v89, %v1146
    %1148 = vmatpush.msra.mxu0 %v1147
    %v1149 = vand.u32 %v88, 4294901760
    %v1150 = vsub.f32 %v88, %v1149
    %1151 = vmatpush.msra.mxu0 %v1150
    %v1152 = vand.u32 %v99, 4294901760
    %v1153 = vsub.f32 %v99, %v1152
    %1154 = vmatmul.f32.gmra.mxu0 %v1153
    %v1155 = vpop.f32.mrf.mxu0
    %v1156 = vadd.f32 %v872, %v1155
    %v1157 = vand.u32 %v102, 4294901760
    %v1158 = vsub.f32 %v102, %v1157
    %1159 = vmatmul.f32.gmra.mxu0 %v1158
    %v1160 = vpop.f32.mrf.mxu0
    %v1161 = vadd.f32 %v876, %v1160
    %v1162 = vand.u32 %v105, 4294901760
    %v1163 = vsub.f32 %v105, %v1162
    %1164 = vmatmul.f32.gmra.mxu0 %v1163
    %v1165 = vpop.f32.mrf.mxu0
    %v1166 = vadd.f32 %v880, %v1165
    %v1167 = vand.u32 %v108, 4294901760
    %v1168 = vsub.f32 %v108, %v1167
    %1169 = vmatmul.f32.gmra.mxu0 %v1168
    %v1170 = vpop.f32.mrf.mxu0
    %v1171 = vadd.f32 %v884, %v1170
    %v1172 = vand.u32 %v111, 4294901760
    %v1173 = vsub.f32 %v111, %v1172
    %1174 = vmatmul.f32.gmra.mxu0 %v1173
    %v1175 = vpop.f32.mrf.mxu0
    %v1176 = vadd.f32 %v888, %v1175
    %v1177 = vand.u32 %v114, 4294901760
    %v1178 = vsub.f32 %v114, %v1177
    %1179 = vmatmul.f32.gmra.mxu0 %v1178
    %v1180 = vpop.f32.mrf.mxu0
    %v1181 = vadd.f32 %v892, %v1180
    %v1182 = vand.u32 %v117, 4294901760
    %v1183 = vsub.f32 %v117, %v1182
    %1184 = vmatmul.f32.gmra.mxu0 %v1183
    %v1185 = vpop.f32.mrf.mxu0
    %v1186 = vadd.f32 %v896, %v1185
    %v1187 = vand.u32 %v120, 4294901760
    %v1188 = vsub.f32 %v120, %v1187
    %1189 = vmatmul.f32.gmra.mxu0 %v1188
    %v1190 = vpop.f32.mrf.mxu0
    %v1191 = vadd.f32 %v900, %v1190
    %v1192 = vand.u32 %v123, 4294901760
    %v1193 = vsub.f32 %v123, %v1192
    %1194 = vmatmul.f32.gmra.mxu0 %v1193
    %v1195 = vpop.f32.mrf.mxu0
    %v1196 = vadd.f32 %v904, %v1195
    %v1197 = vand.u32 %v126, 4294901760
    %v1198 = vsub.f32 %v126, %v1197
    %1199 = vmatmul.f32.gmra.mxu0 %v1198
    %v1200 = vpop.f32.mrf.mxu0
    %v1201 = vadd.f32 %v908, %v1200
    %v1202 = vand.u32 %v129, 4294901760
    %v1203 = vsub.f32 %v129, %v1202
    %1204 = vmatmul.f32.gmra.mxu0 %v1203
    %v1205 = vpop.f32.mrf.mxu0
    %v1206 = vadd.f32 %v912, %v1205
    %v1207 = vand.u32 %v132, 4294901760
    %v1208 = vsub.f32 %v132, %v1207
    %1209 = vmatmul.f32.gmra.mxu0 %v1208
    %v1210 = vpop.f32.mrf.mxu0
    %v1211 = vadd.f32 %v916, %v1210
    %v1212 = vand.u32 %v135, 4294901760
    %v1213 = vsub.f32 %v135, %v1212
    %1214 = vmatmul.f32.gmra.mxu0 %v1213
    %v1215 = vpop.f32.mrf.mxu0
    %v1216 = vadd.f32 %v920, %v1215
    %v1217 = vand.u32 %v138, 4294901760
    %v1218 = vsub.f32 %v138, %v1217
    %1219 = vmatmul.f32.gmra.mxu0 %v1218
    %v1220 = vpop.f32.mrf.mxu0
    %v1221 = vadd.f32 %v924, %v1220
    %v1222 = vand.u32 %v141, 4294901760
    %v1223 = vsub.f32 %v141, %v1222
    %1224 = vmatmul.f32.gmra.mxu0 %v1223
    %v1225 = vpop.f32.mrf.mxu0
    %v1226 = vadd.f32 %v928, %v1225
    %v1227 = vand.u32 %v144, 4294901760
    %v1228 = vsub.f32 %v144, %v1227
    %1229 = vmatmul.f32.gmra.mxu0 %v1228
    %v1230 = vpop.f32.mrf.mxu0
    %v1231 = vadd.f32 %v932, %v1230
    %v1232 = vand.u32 %v147, 4294901760
    %v1233 = vsub.f32 %v147, %v1232
    %1234 = vmatmul.f32.gmra.mxu0 %v1233
    %v1235 = vpop.f32.mrf.mxu0
    %v1236 = vadd.f32 %v936, %v1235
    %v1237 = vand.u32 %v150, 4294901760
    %v1238 = vsub.f32 %v150, %v1237
    %1239 = vmatmul.f32.gmra.mxu0 %v1238
    %v1240 = vpop.f32.mrf.mxu0
    %v1241 = vadd.f32 %v940, %v1240
    %v1242 = vand.u32 %v153, 4294901760
    %v1243 = vsub.f32 %v153, %v1242
    %1244 = vmatmul.f32.gmra.mxu0 %v1243
    %v1245 = vpop.f32.mrf.mxu0
    %v1246 = vadd.f32 %v944, %v1245
    %v1247 = vand.u32 %v156, 4294901760
    %v1248 = vsub.f32 %v156, %v1247
    %1249 = vmatmul.f32.gmra.mxu0 %v1248
    %v1250 = vpop.f32.mrf.mxu0
    %v1251 = vadd.f32 %v948, %v1250
    %v1252 = vand.u32 %v159, 4294901760
    %v1253 = vsub.f32 %v159, %v1252
    %1254 = vmatmul.f32.gmra.mxu0 %v1253
    %v1255 = vpop.f32.mrf.mxu0
    %v1256 = vadd.f32 %v952, %v1255
    %v1257 = vand.u32 %v162, 4294901760
    %v1258 = vsub.f32 %v162, %v1257
    %1259 = vmatmul.f32.gmra.mxu0 %v1258
    %v1260 = vpop.f32.mrf.mxu0
    %v1261 = vadd.f32 %v956, %v1260
    %v1262 = vand.u32 %v165, 4294901760
    %v1263 = vsub.f32 %v165, %v1262
    %1264 = vmatmul.f32.gmra.mxu0 %v1263
    %v1265 = vpop.f32.mrf.mxu0
    %v1266 = vadd.f32 %v960, %v1265
    %v1267 = vand.u32 %v168, 4294901760
    %v1268 = vsub.f32 %v168, %v1267
    %1269 = vmatmul.f32.gmra.mxu0 %v1268
    %v1270 = vpop.f32.mrf.mxu0
    %v1271 = vadd.f32 %v964, %v1270
    %v1272 = vand.u32 %v171, 4294901760
    %v1273 = vsub.f32 %v171, %v1272
    %1274 = vmatmul.f32.gmra.mxu0 %v1273
    %v1275 = vpop.f32.mrf.mxu0
    %v1276 = vadd.f32 %v968, %v1275
    %v1277 = vand.u32 %v174, 4294901760
    %v1278 = vsub.f32 %v174, %v1277
    %1279 = vmatmul.f32.gmra.mxu0 %v1278
    %v1280 = vpop.f32.mrf.mxu0
    %v1281 = vadd.f32 %v972, %v1280
    %v1282 = vand.u32 %v177, 4294901760
    %v1283 = vsub.f32 %v177, %v1282
    %1284 = vmatmul.f32.gmra.mxu0 %v1283
    %v1285 = vpop.f32.mrf.mxu0
    %v1286 = vadd.f32 %v976, %v1285
    %v1287 = vand.u32 %v180, 4294901760
    %v1288 = vsub.f32 %v180, %v1287
    %1289 = vmatmul.f32.gmra.mxu0 %v1288
    %v1290 = vpop.f32.mrf.mxu0
    %v1291 = vadd.f32 %v980, %v1290
    %v1292 = vand.u32 %v183, 4294901760
    %v1293 = vsub.f32 %v183, %v1292
    %1294 = vmatmul.f32.gmra.mxu0 %v1293
    %v1295 = vpop.f32.mrf.mxu0
    %v1296 = vadd.f32 %v984, %v1295
    %v1297 = vand.u32 %v186, 4294901760
    %v1298 = vsub.f32 %v186, %v1297
    %1299 = vmatmul.f32.gmra.mxu0 %v1298
    %v1300 = vpop.f32.mrf.mxu0
    %v1301 = vadd.f32 %v988, %v1300
    %v1302 = vand.u32 %v189, 4294901760
    %v1303 = vsub.f32 %v189, %v1302
    %1304 = vmatmul.f32.gmra.mxu0 %v1303
    %v1305 = vpop.f32.mrf.mxu0
    %v1306 = vadd.f32 %v992, %v1305
    %v1307 = vand.u32 %v192, 4294901760
    %v1308 = vsub.f32 %v192, %v1307
    %1309 = vmatmul.f32.gmra.mxu0 %v1308
    %v1310 = vpop.f32.mrf.mxu0
    %v1311 = vadd.f32 %v996, %v1310
    %v1312 = vand.u32 %v195, 4294901760
    %v1313 = vsub.f32 %v195, %v1312
    %1314 = vmatmul.f32.gmra.mxu0 %v1313
    %v1315 = vpop.f32.mrf.mxu0
    %v1316 = vadd.f32 %v1000, %v1315
    %v1317 = vand.u32 %v198, 4294901760
    %v1318 = vsub.f32 %v198, %v1317
    %1319 = vmatmul.f32.gmra.mxu0 %v1318
    %v1320 = vpop.f32.mrf.mxu0
    %v1321 = vadd.f32 %v1004, %v1320
    %v1322 = vand.u32 %v201, 4294901760
    %v1323 = vsub.f32 %v201, %v1322
    %1324 = vmatmul.f32.gmra.mxu0 %v1323
    %v1325 = vpop.f32.mrf.mxu0
    %v1326 = vadd.f32 %v1008, %v1325
    %v1327 = vand.u32 %v204, 4294901760
    %v1328 = vsub.f32 %v204, %v1327
    %1329 = vmatmul.f32.gmra.mxu0 %v1328
    %v1330 = vpop.f32.mrf.mxu0
    %v1331 = vadd.f32 %v1012, %v1330
    %v1332 = vand.u32 %v207, 4294901760
    %v1333 = vsub.f32 %v207, %v1332
    %1334 = vmatmul.f32.gmra.mxu0 %v1333
    %v1335 = vpop.f32.mrf.mxu0
    %v1336 = vadd.f32 %v1016, %v1335
    %v1337 = vand.u32 %v210, 4294901760
    %v1338 = vsub.f32 %v210, %v1337
    %1339 = vmatmul.f32.gmra.mxu0 %v1338
    %v1340 = vpop.f32.mrf.mxu0
    %v1341 = vadd.f32 %v1020, %v1340
    %v1342 = vand.u32 %v213, 4294901760
    %v1343 = vsub.f32 %v213, %v1342
    %1344 = vmatmul.f32.gmra.mxu0 %v1343
    %v1345 = vpop.f32.mrf.mxu0
    %v1346 = vadd.f32 %v1024, %v1345
    %v1347 = vand.u32 %v216, 4294901760
    %v1348 = vsub.f32 %v216, %v1347
    %1349 = vmatmul.f32.gmra.mxu0 %v1348
    %v1350 = vpop.f32.mrf.mxu0
    %v1351 = vadd.f32 %v1028, %v1350
    %v1352 = vand.u32 %v219, 4294901760
    %v1353 = vsub.f32 %v219, %v1352
    %1354 = vmatmul.f32.gmra.mxu0 %v1353
    %v1355 = vpop.f32.mrf.mxu0
    %v1356 = vadd.f32 %v1032, %v1355
    %v1357 = vand.u32 %v222, 4294901760
    %v1358 = vsub.f32 %v222, %v1357
    %1359 = vmatmul.f32.gmra.mxu0 %v1358
    %v1360 = vpop.f32.mrf.mxu0
    %v1361 = vadd.f32 %v1036, %v1360
    %v1362 = vand.u32 %v225, 4294901760
    %v1363 = vsub.f32 %v225, %v1362
    %1364 = vmatmul.f32.gmra.mxu0 %v1363
    %v1365 = vpop.f32.mrf.mxu0
    %v1366 = vadd.f32 %v1040, %v1365
    %v1367 = vand.u32 %v228, 4294901760
    %v1368 = vsub.f32 %v228, %v1367
    %1369 = vmatmul.f32.gmra.mxu0 %v1368
    %v1370 = vpop.f32.mrf.mxu0
    %v1371 = vadd.f32 %v1044, %v1370
    %v1372 = vand.u32 %v231, 4294901760
    %v1373 = vsub.f32 %v231, %v1372
    %1374 = vmatmul.f32.gmra.mxu0 %v1373
    %v1375 = vpop.f32.mrf.mxu0
    %v1376 = vadd.f32 %v1048, %v1375
    %v1377 = vand.u32 %v234, 4294901760
    %v1378 = vsub.f32 %v234, %v1377
    %1379 = vmatmul.f32.gmra.mxu0 %v1378
    %v1380 = vpop.f32.mrf.mxu0
    %v1381 = vadd.f32 %v1052, %v1380
    %v1382 = vand.u32 %v237, 4294901760
    %v1383 = vsub.f32 %v237, %v1382
    %1384 = vmatmul.f32.gmra.mxu0 %v1383
    %v1385 = vpop.f32.mrf.mxu0
    %v1386 = vadd.f32 %v1056, %v1385
    %v1387 = vand.u32 %v240, 4294901760
    %v1388 = vsub.f32 %v240, %v1387
    %1389 = vmatmul.f32.gmra.mxu0 %v1388
    %v1390 = vpop.f32.mrf.mxu0
    %v1391 = vadd.f32 %v1060, %v1390
    %v1392 = vand.u32 %v243, 4294901760
    %v1393 = vsub.f32 %v243, %v1392
    %1394 = vmatmul.f32.gmra.mxu0 %v1393
    %v1395 = vpop.f32.mrf.mxu0
    %v1396 = vadd.f32 %v1064, %v1395
    %v1397 = vand.u32 %v246, 4294901760
    %v1398 = vsub.f32 %v246, %v1397
    %1399 = vmatmul.f32.gmra.mxu0 %v1398
    %v1400 = vpop.f32.mrf.mxu0
    %v1401 = vadd.f32 %v1068, %v1400
    %v1402 = vand.u32 %v249, 4294901760
    %v1403 = vsub.f32 %v249, %v1402
    %1404 = vmatmul.f32.gmra.mxu0 %v1403
    %v1405 = vpop.f32.mrf.mxu0
    %v1406 = vadd.f32 %v1072, %v1405
    %v1407 = vand.u32 %v252, 4294901760
    %v1408 = vsub.f32 %v252, %v1407
    %1409 = vmatmul.f32.gmra.mxu0 %v1408
    %v1410 = vpop.f32.mrf.mxu0
    %v1411 = vadd.f32 %v1076, %v1410
    %v1412 = vand.u32 %v255, 4294901760
    %v1413 = vsub.f32 %v255, %v1412
    %1414 = vmatmul.f32.gmra.mxu0 %v1413
    %v1415 = vpop.f32.mrf.mxu0
    %v1416 = vadd.f32 %v1080, %v1415
    %v1417 = vand.u32 %v258, 4294901760
    %v1418 = vsub.f32 %v258, %v1417
    %1419 = vmatmul.f32.gmra.mxu0 %v1418
    %v1420 = vpop.f32.mrf.mxu0
    %v1421 = vadd.f32 %v1084, %v1420
    %v1422 = vand.u32 %v261, 4294901760
    %v1423 = vsub.f32 %v261, %v1422
    %1424 = vmatmul.f32.gmra.mxu0 %v1423
    %v1425 = vpop.f32.mrf.mxu0
    %v1426 = vadd.f32 %v1088, %v1425
    %v1427 = vand.u32 %v264, 4294901760
    %v1428 = vsub.f32 %v264, %v1427
    %1429 = vmatmul.f32.gmra.mxu0 %v1428
    %v1430 = vpop.f32.mrf.mxu0
    %v1431 = vadd.f32 %v1092, %v1430
    %v1432 = vand.u32 %v267, 4294901760
    %v1433 = vsub.f32 %v267, %v1432
    %1434 = vmatmul.f32.gmra.mxu0 %v1433
    %v1435 = vpop.f32.mrf.mxu0
    %v1436 = vadd.f32 %v1096, %v1435
    %v1437 = vand.u32 %v270, 4294901760
    %v1438 = vsub.f32 %v270, %v1437
    %1439 = vmatmul.f32.gmra.mxu0 %v1438
    %v1440 = vpop.f32.mrf.mxu0
    %v1441 = vadd.f32 %v1100, %v1440
    %v1442 = vand.u32 %v273, 4294901760
    %v1443 = vsub.f32 %v273, %v1442
    %1444 = vmatmul.f32.gmra.mxu0 %v1443
    %v1445 = vpop.f32.mrf.mxu0
    %v1446 = vadd.f32 %v1104, %v1445
    %v1447 = vand.u32 %v276, 4294901760
    %v1448 = vsub.f32 %v276, %v1447
    %1449 = vmatmul.f32.gmra.mxu0 %v1448
    %v1450 = vpop.f32.mrf.mxu0
    %v1451 = vadd.f32 %v1108, %v1450
    %v1452 = vand.u32 %v279, 4294901760
    %v1453 = vsub.f32 %v279, %v1452
    %1454 = vmatmul.f32.gmra.mxu0 %v1453
    %v1455 = vpop.f32.mrf.mxu0
    %v1456 = vadd.f32 %v1112, %v1455
    %v1457 = vand.u32 %v282, 4294901760
    %v1458 = vsub.f32 %v282, %v1457
    %1459 = vmatmul.f32.gmra.mxu0 %v1458
    %v1460 = vpop.f32.mrf.mxu0
    %v1461 = vadd.f32 %v1116, %v1460
    %v1462 = vand.u32 %v285, 4294901760
    %v1463 = vsub.f32 %v285, %v1462
    %1464 = vmatmul.f32.gmra.mxu0 %v1463
    %v1465 = vpop.f32.mrf.mxu0
    %v1466 = vadd.f32 %v1120, %v1465
    %v1467 = vand.u32 %v288, 4294901760
    %v1468 = vsub.f32 %v288, %v1467
    %1469 = vmatmul.f32.gmra.mxu0 %v1468
    %v1470 = vpop.f32.mrf.mxu0
    %v1471 = vadd.f32 %v1124, %v1470
    %1472 = vdwg.mxu0
    %1473 = vmatpush.msra.mxu0 0.0
    %1474 = vmatpush.msra.mxu0 0.0
    %1475 = vmatpush.msra.mxu0 0.0
    %1476 = vmatpush.msra.mxu0 0.0
    %1477 = vmatpush.msra.mxu0 0.0
    %1478 = vmatpush.msra.mxu0 0.0
    %1479 = vmatpush.msra.mxu0 0.0
    %1480 = vmatpush.msra.mxu0 0.0
    %1481 = vmatpush.msra.mxu0 0.0
    %1482 = vmatpush.msra.mxu0 0.0
    %1483 = vmatpush.msra.mxu0 0.0
    %v1484 = vand.u32 %v292, 4294901760
    %1485 = vmatpush.msra.mxu0 %v1484
    %v1486 = vand.u32 %v91, 4294901760
    %1487 = vmatpush.msra.mxu0 %v1486
    %v1488 = vand.u32 %v90, 4294901760
    %1489 = vmatpush.msra.mxu0 %v1488
    %v1490 = vand.u32 %v89, 4294901760
    %1491 = vmatpush.msra.mxu0 %v1490
    %v1492 = vand.u32 %v88, 4294901760
    %1493 = vmatpush.msra.mxu0 %v1492
    %v1494 = vand.u32 %v99, 4294901760
    %v1495 = vsub.f32 %v99, %v1494
    %v1496 = vand.u32 %v1495, 4294901760
    %1497 = vmatmul.f32.gmra.mxu0 %v1496
    %v1498 = vpop.f32.mrf.mxu0
    %v1499 = vadd.f32 %v1156, %v1498
    %v1500 = vand.u32 %v102, 4294901760
    %v1501 = vsub.f32 %v102, %v1500
    %v1502 = vand.u32 %v1501, 4294901760
    %1503 = vmatmul.f32.gmra.mxu0 %v1502
    %v1504 = vpop.f32.mrf.mxu0
    %v1505 = vadd.f32 %v1161, %v1504
    %v1506 = vand.u32 %v105, 4294901760
    %v1507 = vsub.f32 %v105, %v1506
    %v1508 = vand.u32 %v1507, 4294901760
    %1509 = vmatmul.f32.gmra.mxu0 %v1508
    %v1510 = vpop.f32.mrf.mxu0
    %v1511 = vadd.f32 %v1166, %v1510
    %v1512 = vand.u32 %v108, 4294901760
    %v1513 = vsub.f32 %v108, %v1512
    %v1514 = vand.u32 %v1513, 4294901760
    %1515 = vmatmul.f32.gmra.mxu0 %v1514
    %v1516 = vpop.f32.mrf.mxu0
    %v1517 = vadd.f32 %v1171, %v1516
    %v1518 = vand.u32 %v111, 4294901760
    %v1519 = vsub.f32 %v111, %v1518
    %v1520 = vand.u32 %v1519, 4294901760
    %1521 = vmatmul.f32.gmra.mxu0 %v1520
    %v1522 = vpop.f32.mrf.mxu0
    %v1523 = vadd.f32 %v1176, %v1522
    %v1524 = vand.u32 %v114, 4294901760
    %v1525 = vsub.f32 %v114, %v1524
    %v1526 = vand.u32 %v1525, 4294901760
    %1527 = vmatmul.f32.gmra.mxu0 %v1526
    %v1528 = vpop.f32.mrf.mxu0
    %v1529 = vadd.f32 %v1181, %v1528
    %v1530 = vand.u32 %v117, 4294901760
    %v1531 = vsub.f32 %v117, %v1530
    %v1532 = vand.u32 %v1531, 4294901760
    %1533 = vmatmul.f32.gmra.mxu0 %v1532
    %v1534 = vpop.f32.mrf.mxu0
    %v1535 = vadd.f32 %v1186, %v1534
    %v1536 = vand.u32 %v120, 4294901760
    %v1537 = vsub.f32 %v120, %v1536
    %v1538 = vand.u32 %v1537, 4294901760
    %1539 = vmatmul.f32.gmra.mxu0 %v1538
    %v1540 = vpop.f32.mrf.mxu0
    %v1541 = vadd.f32 %v1191, %v1540
    %v1542 = vand.u32 %v123, 4294901760
    %v1543 = vsub.f32 %v123, %v1542
    %v1544 = vand.u32 %v1543, 4294901760
    %1545 = vmatmul.f32.gmra.mxu0 %v1544
    %v1546 = vpop.f32.mrf.mxu0
    %v1547 = vadd.f32 %v1196, %v1546
    %v1548 = vand.u32 %v126, 4294901760
    %v1549 = vsub.f32 %v126, %v1548
    %v1550 = vand.u32 %v1549, 4294901760
    %1551 = vmatmul.f32.gmra.mxu0 %v1550
    %v1552 = vpop.f32.mrf.mxu0
    %v1553 = vadd.f32 %v1201, %v1552
    %v1554 = vand.u32 %v129, 4294901760
    %v1555 = vsub.f32 %v129, %v1554
    %v1556 = vand.u32 %v1555, 4294901760
    %1557 = vmatmul.f32.gmra.mxu0 %v1556
    %v1558 = vpop.f32.mrf.mxu0
    %v1559 = vadd.f32 %v1206, %v1558
    %v1560 = vand.u32 %v132, 4294901760
    %v1561 = vsub.f32 %v132, %v1560
    %v1562 = vand.u32 %v1561, 4294901760
    %1563 = vmatmul.f32.gmra.mxu0 %v1562
    %v1564 = vpop.f32.mrf.mxu0
    %v1565 = vadd.f32 %v1211, %v1564
    %v1566 = vand.u32 %v135, 4294901760
    %v1567 = vsub.f32 %v135, %v1566
    %v1568 = vand.u32 %v1567, 4294901760
    %1569 = vmatmul.f32.gmra.mxu0 %v1568
    %v1570 = vpop.f32.mrf.mxu0
    %v1571 = vadd.f32 %v1216, %v1570
    %v1572 = vand.u32 %v138, 4294901760
    %v1573 = vsub.f32 %v138, %v1572
    %v1574 = vand.u32 %v1573, 4294901760
    %1575 = vmatmul.f32.gmra.mxu0 %v1574
    %v1576 = vpop.f32.mrf.mxu0
    %v1577 = vadd.f32 %v1221, %v1576
    %v1578 = vand.u32 %v141, 4294901760
    %v1579 = vsub.f32 %v141, %v1578
    %v1580 = vand.u32 %v1579, 4294901760
    %1581 = vmatmul.f32.gmra.mxu0 %v1580
    %v1582 = vpop.f32.mrf.mxu0
    %v1583 = vadd.f32 %v1226, %v1582
    %v1584 = vand.u32 %v144, 4294901760
    %v1585 = vsub.f32 %v144, %v1584
    %v1586 = vand.u32 %v1585, 4294901760
    %1587 = vmatmul.f32.gmra.mxu0 %v1586
    %v1588 = vpop.f32.mrf.mxu0
    %v1589 = vadd.f32 %v1231, %v1588
    %v1590 = vand.u32 %v147, 4294901760
    %v1591 = vsub.f32 %v147, %v1590
    %v1592 = vand.u32 %v1591, 4294901760
    %1593 = vmatmul.f32.gmra.mxu0 %v1592
    %v1594 = vpop.f32.mrf.mxu0
    %v1595 = vadd.f32 %v1236, %v1594
    %v1596 = vand.u32 %v150, 4294901760
    %v1597 = vsub.f32 %v150, %v1596
    %v1598 = vand.u32 %v1597, 4294901760
    %1599 = vmatmul.f32.gmra.mxu0 %v1598
    %v1600 = vpop.f32.mrf.mxu0
    %v1601 = vadd.f32 %v1241, %v1600
    %v1602 = vand.u32 %v153, 4294901760
    %v1603 = vsub.f32 %v153, %v1602
    %v1604 = vand.u32 %v1603, 4294901760
    %1605 = vmatmul.f32.gmra.mxu0 %v1604
    %v1606 = vpop.f32.mrf.mxu0
    %v1607 = vadd.f32 %v1246, %v1606
    %v1608 = vand.u32 %v156, 4294901760
    %v1609 = vsub.f32 %v156, %v1608
    %v1610 = vand.u32 %v1609, 4294901760
    %1611 = vmatmul.f32.gmra.mxu0 %v1610
    %v1612 = vpop.f32.mrf.mxu0
    %v1613 = vadd.f32 %v1251, %v1612
    %v1614 = vand.u32 %v159, 4294901760
    %v1615 = vsub.f32 %v159, %v1614
    %v1616 = vand.u32 %v1615, 4294901760
    %1617 = vmatmul.f32.gmra.mxu0 %v1616
    %v1618 = vpop.f32.mrf.mxu0
    %v1619 = vadd.f32 %v1256, %v1618
    %v1620 = vand.u32 %v162, 4294901760
    %v1621 = vsub.f32 %v162, %v1620
    %v1622 = vand.u32 %v1621, 4294901760
    %1623 = vmatmul.f32.gmra.mxu0 %v1622
    %v1624 = vpop.f32.mrf.mxu0
    %v1625 = vadd.f32 %v1261, %v1624
    %v1626 = vand.u32 %v165, 4294901760
    %v1627 = vsub.f32 %v165, %v1626
    %v1628 = vand.u32 %v1627, 4294901760
    %1629 = vmatmul.f32.gmra.mxu0 %v1628
    %v1630 = vpop.f32.mrf.mxu0
    %v1631 = vadd.f32 %v1266, %v1630
    %v1632 = vand.u32 %v168, 4294901760
    %v1633 = vsub.f32 %v168, %v1632
    %v1634 = vand.u32 %v1633, 4294901760
    %1635 = vmatmul.f32.gmra.mxu0 %v1634
    %v1636 = vpop.f32.mrf.mxu0
    %v1637 = vadd.f32 %v1271, %v1636
    %v1638 = vand.u32 %v171, 4294901760
    %v1639 = vsub.f32 %v171, %v1638
    %v1640 = vand.u32 %v1639, 4294901760
    %1641 = vmatmul.f32.gmra.mxu0 %v1640
    %v1642 = vpop.f32.mrf.mxu0
    %v1643 = vadd.f32 %v1276, %v1642
    %v1644 = vand.u32 %v174, 4294901760
    %v1645 = vsub.f32 %v174, %v1644
    %v1646 = vand.u32 %v1645, 4294901760
    %1647 = vmatmul.f32.gmra.mxu0 %v1646
    %v1648 = vpop.f32.mrf.mxu0
    %v1649 = vadd.f32 %v1281, %v1648
    %v1650 = vand.u32 %v177, 4294901760
    %v1651 = vsub.f32 %v177, %v1650
    %v1652 = vand.u32 %v1651, 4294901760
    %1653 = vmatmul.f32.gmra.mxu0 %v1652
    %v1654 = vpop.f32.mrf.mxu0
    %v1655 = vadd.f32 %v1286, %v1654
    %v1656 = vand.u32 %v180, 4294901760
    %v1657 = vsub.f32 %v180, %v1656
    %v1658 = vand.u32 %v1657, 4294901760
    %1659 = vmatmul.f32.gmra.mxu0 %v1658
    %v1660 = vpop.f32.mrf.mxu0
    %v1661 = vadd.f32 %v1291, %v1660
    %v1662 = vand.u32 %v183, 4294901760
    %v1663 = vsub.f32 %v183, %v1662
    %v1664 = vand.u32 %v1663, 4294901760
    %1665 = vmatmul.f32.gmra.mxu0 %v1664
    %v1666 = vpop.f32.mrf.mxu0
    %v1667 = vadd.f32 %v1296, %v1666
    %v1668 = vand.u32 %v186, 4294901760
    %v1669 = vsub.f32 %v186, %v1668
    %v1670 = vand.u32 %v1669, 4294901760
    %1671 = vmatmul.f32.gmra.mxu0 %v1670
    %v1672 = vpop.f32.mrf.mxu0
    %v1673 = vadd.f32 %v1301, %v1672
    %v1674 = vand.u32 %v189, 4294901760
    %v1675 = vsub.f32 %v189, %v1674
    %v1676 = vand.u32 %v1675, 4294901760
    %1677 = vmatmul.f32.gmra.mxu0 %v1676
    %v1678 = vpop.f32.mrf.mxu0
    %v1679 = vadd.f32 %v1306, %v1678
    %v1680 = vand.u32 %v192, 4294901760
    %v1681 = vsub.f32 %v192, %v1680
    %v1682 = vand.u32 %v1681, 4294901760
    %1683 = vmatmul.f32.gmra.mxu0 %v1682
    %v1684 = vpop.f32.mrf.mxu0
    %v1685 = vadd.f32 %v1311, %v1684
    %v1686 = vand.u32 %v195, 4294901760
    %v1687 = vsub.f32 %v195, %v1686
    %v1688 = vand.u32 %v1687, 4294901760
    %1689 = vmatmul.f32.gmra.mxu0 %v1688
    %v1690 = vpop.f32.mrf.mxu0
    %v1691 = vadd.f32 %v1316, %v1690
    %v1692 = vand.u32 %v198, 4294901760
    %v1693 = vsub.f32 %v198, %v1692
    %v1694 = vand.u32 %v1693, 4294901760
    %1695 = vmatmul.f32.gmra.mxu0 %v1694
    %v1696 = vpop.f32.mrf.mxu0
    %v1697 = vadd.f32 %v1321, %v1696
    %v1698 = vand.u32 %v201, 4294901760
    %v1699 = vsub.f32 %v201, %v1698
    %v1700 = vand.u32 %v1699, 4294901760
    %1701 = vmatmul.f32.gmra.mxu0 %v1700
    %v1702 = vpop.f32.mrf.mxu0
    %v1703 = vadd.f32 %v1326, %v1702
    %v1704 = vand.u32 %v204, 4294901760
    %v1705 = vsub.f32 %v204, %v1704
    %v1706 = vand.u32 %v1705, 4294901760
    %1707 = vmatmul.f32.gmra.mxu0 %v1706
    %v1708 = vpop.f32.mrf.mxu0
    %v1709 = vadd.f32 %v1331, %v1708
    %v1710 = vand.u32 %v207, 4294901760
    %v1711 = vsub.f32 %v207, %v1710
    %v1712 = vand.u32 %v1711, 4294901760
    %1713 = vmatmul.f32.gmra.mxu0 %v1712
    %v1714 = vpop.f32.mrf.mxu0
    %v1715 = vadd.f32 %v1336, %v1714
    %v1716 = vand.u32 %v210, 4294901760
    %v1717 = vsub.f32 %v210, %v1716
    %v1718 = vand.u32 %v1717, 4294901760
    %1719 = vmatmul.f32.gmra.mxu0 %v1718
    %v1720 = vpop.f32.mrf.mxu0
    %v1721 = vadd.f32 %v1341, %v1720
    %v1722 = vand.u32 %v213, 4294901760
    %v1723 = vsub.f32 %v213, %v1722
    %v1724 = vand.u32 %v1723, 4294901760
    %1725 = vmatmul.f32.gmra.mxu0 %v1724
    %v1726 = vpop.f32.mrf.mxu0
    %v1727 = vadd.f32 %v1346, %v1726
    %v1728 = vand.u32 %v216, 4294901760
    %v1729 = vsub.f32 %v216, %v1728
    %v1730 = vand.u32 %v1729, 4294901760
    %1731 = vmatmul.f32.gmra.mxu0 %v1730
    %v1732 = vpop.f32.mrf.mxu0
    %v1733 = vadd.f32 %v1351, %v1732
    %v1734 = vand.u32 %v219, 4294901760
    %v1735 = vsub.f32 %v219, %v1734
    %v1736 = vand.u32 %v1735, 4294901760
    %1737 = vmatmul.f32.gmra.mxu0 %v1736
    %v1738 = vpop.f32.mrf.mxu0
    %v1739 = vadd.f32 %v1356, %v1738
    %v1740 = vand.u32 %v222, 4294901760
    %v1741 = vsub.f32 %v222, %v1740
    %v1742 = vand.u32 %v1741, 4294901760
    %1743 = vmatmul.f32.gmra.mxu0 %v1742
    %v1744 = vpop.f32.mrf.mxu0
    %v1745 = vadd.f32 %v1361, %v1744
    %v1746 = vand.u32 %v225, 4294901760
    %v1747 = vsub.f32 %v225, %v1746
    %v1748 = vand.u32 %v1747, 4294901760
    %1749 = vmatmul.f32.gmra.mxu0 %v1748
    %v1750 = vpop.f32.mrf.mxu0
    %v1751 = vadd.f32 %v1366, %v1750
    %v1752 = vand.u32 %v228, 4294901760
    %v1753 = vsub.f32 %v228, %v1752
    %v1754 = vand.u32 %v1753, 4294901760
    %1755 = vmatmul.f32.gmra.mxu0 %v1754
    %v1756 = vpop.f32.mrf.mxu0
    %v1757 = vadd.f32 %v1371, %v1756
    %v1758 = vand.u32 %v231, 4294901760
    %v1759 = vsub.f32 %v231, %v1758
    %v1760 = vand.u32 %v1759, 4294901760
    %1761 = vmatmul.f32.gmra.mxu0 %v1760
    %v1762 = vpop.f32.mrf.mxu0
    %v1763 = vadd.f32 %v1376, %v1762
    %v1764 = vand.u32 %v234, 4294901760
    %v1765 = vsub.f32 %v234, %v1764
    %v1766 = vand.u32 %v1765, 4294901760
    %1767 = vmatmul.f32.gmra.mxu0 %v1766
    %v1768 = vpop.f32.mrf.mxu0
    %v1769 = vadd.f32 %v1381, %v1768
    %v1770 = vand.u32 %v237, 4294901760
    %v1771 = vsub.f32 %v237, %v1770
    %v1772 = vand.u32 %v1771, 4294901760
    %1773 = vmatmul.f32.gmra.mxu0 %v1772
    %v1774 = vpop.f32.mrf.mxu0
    %v1775 = vadd.f32 %v1386, %v1774
    %v1776 = vand.u32 %v240, 4294901760
    %v1777 = vsub.f32 %v240, %v1776
    %v1778 = vand.u32 %v1777, 4294901760
    %1779 = vmatmul.f32.gmra.mxu0 %v1778
    %v1780 = vpop.f32.mrf.mxu0
    %v1781 = vadd.f32 %v1391, %v1780
    %v1782 = vand.u32 %v243, 4294901760
    %v1783 = vsub.f32 %v243, %v1782
    %v1784 = vand.u32 %v1783, 4294901760
    %1785 = vmatmul.f32.gmra.mxu0 %v1784
    %v1786 = vpop.f32.mrf.mxu0
    %v1787 = vadd.f32 %v1396, %v1786
    %v1788 = vand.u32 %v246, 4294901760
    %v1789 = vsub.f32 %v246, %v1788
    %v1790 = vand.u32 %v1789, 4294901760
    %1791 = vmatmul.f32.gmra.mxu0 %v1790
    %v1792 = vpop.f32.mrf.mxu0
    %v1793 = vadd.f32 %v1401, %v1792
    %v1794 = vand.u32 %v249, 4294901760
    %v1795 = vsub.f32 %v249, %v1794
    %v1796 = vand.u32 %v1795, 4294901760
    %1797 = vmatmul.f32.gmra.mxu0 %v1796
    %v1798 = vpop.f32.mrf.mxu0
    %v1799 = vadd.f32 %v1406, %v1798
    %v1800 = vand.u32 %v252, 4294901760
    %v1801 = vsub.f32 %v252, %v1800
    %v1802 = vand.u32 %v1801, 4294901760
    %1803 = vmatmul.f32.gmra.mxu0 %v1802
    %v1804 = vpop.f32.mrf.mxu0
    %v1805 = vadd.f32 %v1411, %v1804
    %v1806 = vand.u32 %v255, 4294901760
    %v1807 = vsub.f32 %v255, %v1806
    %v1808 = vand.u32 %v1807, 4294901760
    %1809 = vmatmul.f32.gmra.mxu0 %v1808
    %v1810 = vpop.f32.mrf.mxu0
    %v1811 = vadd.f32 %v1416, %v1810
    %v1812 = vand.u32 %v258, 4294901760
    %v1813 = vsub.f32 %v258, %v1812
    %v1814 = vand.u32 %v1813, 4294901760
    %1815 = vmatmul.f32.gmra.mxu0 %v1814
    %v1816 = vpop.f32.mrf.mxu0
    %v1817 = vadd.f32 %v1421, %v1816
    %v1818 = vand.u32 %v261, 4294901760
    %v1819 = vsub.f32 %v261, %v1818
    %v1820 = vand.u32 %v1819, 4294901760
    %1821 = vmatmul.f32.gmra.mxu0 %v1820
    %v1822 = vpop.f32.mrf.mxu0
    %v1823 = vadd.f32 %v1426, %v1822
    %v1824 = vand.u32 %v264, 4294901760
    %v1825 = vsub.f32 %v264, %v1824
    %v1826 = vand.u32 %v1825, 4294901760
    %1827 = vmatmul.f32.gmra.mxu0 %v1826
    %v1828 = vpop.f32.mrf.mxu0
    %v1829 = vadd.f32 %v1431, %v1828
    %v1830 = vand.u32 %v267, 4294901760
    %v1831 = vsub.f32 %v267, %v1830
    %v1832 = vand.u32 %v1831, 4294901760
    %1833 = vmatmul.f32.gmra.mxu0 %v1832
    %v1834 = vpop.f32.mrf.mxu0
    %v1835 = vadd.f32 %v1436, %v1834
    %v1836 = vand.u32 %v270, 4294901760
    %v1837 = vsub.f32 %v270, %v1836
    %v1838 = vand.u32 %v1837, 4294901760
    %1839 = vmatmul.f32.gmra.mxu0 %v1838
    %v1840 = vpop.f32.mrf.mxu0
    %v1841 = vadd.f32 %v1441, %v1840
    %v1842 = vand.u32 %v273, 4294901760
    %v1843 = vsub.f32 %v273, %v1842
    %v1844 = vand.u32 %v1843, 4294901760
    %1845 = vmatmul.f32.gmra.mxu0 %v1844
    %v1846 = vpop.f32.mrf.mxu0
    %v1847 = vadd.f32 %v1446, %v1846
    %v1848 = vand.u32 %v276, 4294901760
    %v1849 = vsub.f32 %v276, %v1848
    %v1850 = vand.u32 %v1849, 4294901760
    %1851 = vmatmul.f32.gmra.mxu0 %v1850
    %v1852 = vpop.f32.mrf.mxu0
    %v1853 = vadd.f32 %v1451, %v1852
    %v1854 = vand.u32 %v279, 4294901760
    %v1855 = vsub.f32 %v279, %v1854
    %v1856 = vand.u32 %v1855, 4294901760
    %1857 = vmatmul.f32.gmra.mxu0 %v1856
    %v1858 = vpop.f32.mrf.mxu0
    %v1859 = vadd.f32 %v1456, %v1858
    %v1860 = vand.u32 %v282, 4294901760
    %v1861 = vsub.f32 %v282, %v1860
    %v1862 = vand.u32 %v1861, 4294901760
    %1863 = vmatmul.f32.gmra.mxu0 %v1862
    %v1864 = vpop.f32.mrf.mxu0
    %v1865 = vadd.f32 %v1461, %v1864
    %v1866 = vand.u32 %v285, 4294901760
    %v1867 = vsub.f32 %v285, %v1866
    %v1868 = vand.u32 %v1867, 4294901760
    %1869 = vmatmul.f32.gmra.mxu0 %v1868
    %v1870 = vpop.f32.mrf.mxu0
    %v1871 = vadd.f32 %v1466, %v1870
    %v1872 = vand.u32 %v288, 4294901760
    %v1873 = vsub.f32 %v288, %v1872
    %v1874 = vand.u32 %v1873, 4294901760
    %1875 = vmatmul.f32.gmra.mxu0 %v1874
    %v1876 = vpop.f32.mrf.mxu0
    %v1877 = vadd.f32 %v1471, %v1876
    %1878 = vdwg.mxu0
    %1879 = vmatpush.msra.mxu0 0.0
    %1880 = vmatpush.msra.mxu0 0.0
    %1881 = vmatpush.msra.mxu0 0.0
    %1882 = vmatpush.msra.mxu0 0.0
    %1883 = vmatpush.msra.mxu0 0.0
    %1884 = vmatpush.msra.mxu0 0.0
    %1885 = vmatpush.msra.mxu0 0.0
    %1886 = vmatpush.msra.mxu0 0.0
    %1887 = vmatpush.msra.mxu0 0.0
    %1888 = vmatpush.msra.mxu0 0.0
    %1889 = vmatpush.msra.mxu0 0.0
    %v1890 = vand.u32 %v292, 4294901760
    %v1891 = vsub.f32 %v292, %v1890
    %v1892 = vand.u32 %v1891, 4294901760
    %1893 = vmatpush.msra.mxu0 %v1892
    %v1894 = vand.u32 %v91, 4294901760
    %v1895 = vsub.f32 %v91, %v1894
    %v1896 = vand.u32 %v1895, 4294901760
    %1897 = vmatpush.msra.mxu0 %v1896
    %v1898 = vand.u32 %v90, 4294901760
    %v1899 = vsub.f32 %v90, %v1898
    %v1900 = vand.u32 %v1899, 4294901760
    %1901 = vmatpush.msra.mxu0 %v1900
    %v1902 = vand.u32 %v89, 4294901760
    %v1903 = vsub.f32 %v89, %v1902
    %v1904 = vand.u32 %v1903, 4294901760
    %1905 = vmatpush.msra.mxu0 %v1904
    %v1906 = vand.u32 %v88, 4294901760
    %v1907 = vsub.f32 %v88, %v1906
    %v1908 = vand.u32 %v1907, 4294901760
    %1909 = vmatpush.msra.mxu0 %v1908
    %v1910 = vand.u32 %v99, 4294901760
    %1911 = vmatmul.f32.gmra.mxu0 %v1910
    %v1912 = vpop.f32.mrf.mxu0
    %v1913 = vadd.f32 %v1499, %v1912
    %v1914 = vand.u32 %v102, 4294901760
    %1915 = vmatmul.f32.gmra.mxu0 %v1914
    %v1916 = vpop.f32.mrf.mxu0
    %v1917 = vadd.f32 %v1505, %v1916
    %v1918 = vand.u32 %v105, 4294901760
    %1919 = vmatmul.f32.gmra.mxu0 %v1918
    %v1920 = vpop.f32.mrf.mxu0
    %v1921 = vadd.f32 %v1511, %v1920
    %v1922 = vand.u32 %v108, 4294901760
    %1923 = vmatmul.f32.gmra.mxu0 %v1922
    %v1924 = vpop.f32.mrf.mxu0
    %v1925 = vadd.f32 %v1517, %v1924
    %v1926 = vand.u32 %v111, 4294901760
    %1927 = vmatmul.f32.gmra.mxu0 %v1926
    %v1928 = vpop.f32.mrf.mxu0
    %v1929 = vadd.f32 %v1523, %v1928
    %v1930 = vand.u32 %v114, 4294901760
    %1931 = vmatmul.f32.gmra.mxu0 %v1930
    %v1932 = vpop.f32.mrf.mxu0
    %v1933 = vadd.f32 %v1529, %v1932
    %v1934 = vand.u32 %v117, 4294901760
    %1935 = vmatmul.f32.gmra.mxu0 %v1934
    %v1936 = vpop.f32.mrf.mxu0
    %v1937 = vadd.f32 %v1535, %v1936
    %v1938 = vand.u32 %v120, 4294901760
    %1939 = vmatmul.f32.gmra.mxu0 %v1938
    %v1940 = vpop.f32.mrf.mxu0
    %v1941 = vadd.f32 %v1541, %v1940
    %v1942 = vand.u32 %v123, 4294901760
    %1943 = vmatmul.f32.gmra.mxu0 %v1942
    %v1944 = vpop.f32.mrf.mxu0
    %v1945 = vadd.f32 %v1547, %v1944
    %v1946 = vand.u32 %v126, 4294901760
    %1947 = vmatmul.f32.gmra.mxu0 %v1946
    %v1948 = vpop.f32.mrf.mxu0
    %v1949 = vadd.f32 %v1553, %v1948
    %v1950 = vand.u32 %v129, 4294901760
    %1951 = vmatmul.f32.gmra.mxu0 %v1950
    %v1952 = vpop.f32.mrf.mxu0
    %v1953 = vadd.f32 %v1559, %v1952
    %v1954 = vand.u32 %v132, 4294901760
    %1955 = vmatmul.f32.gmra.mxu0 %v1954
    %v1956 = vpop.f32.mrf.mxu0
    %v1957 = vadd.f32 %v1565, %v1956
    %v1958 = vand.u32 %v135, 4294901760
    %1959 = vmatmul.f32.gmra.mxu0 %v1958
    %v1960 = vpop.f32.mrf.mxu0
    %v1961 = vadd.f32 %v1571, %v1960
    %v1962 = vand.u32 %v138, 4294901760
    %1963 = vmatmul.f32.gmra.mxu0 %v1962
    %v1964 = vpop.f32.mrf.mxu0
    %v1965 = vadd.f32 %v1577, %v1964
    %v1966 = vand.u32 %v141, 4294901760
    %1967 = vmatmul.f32.gmra.mxu0 %v1966
    %v1968 = vpop.f32.mrf.mxu0
    %v1969 = vadd.f32 %v1583, %v1968
    %v1970 = vand.u32 %v144, 4294901760
    %1971 = vmatmul.f32.gmra.mxu0 %v1970
    %v1972 = vpop.f32.mrf.mxu0
    %v1973 = vadd.f32 %v1589, %v1972
    %v1974 = vand.u32 %v147, 4294901760
    %1975 = vmatmul.f32.gmra.mxu0 %v1974
    %v1976 = vpop.f32.mrf.mxu0
    %v1977 = vadd.f32 %v1595, %v1976
    %v1978 = vand.u32 %v150, 4294901760
    %1979 = vmatmul.f32.gmra.mxu0 %v1978
    %v1980 = vpop.f32.mrf.mxu0
    %v1981 = vadd.f32 %v1601, %v1980
    %v1982 = vand.u32 %v153, 4294901760
    %1983 = vmatmul.f32.gmra.mxu0 %v1982
    %v1984 = vpop.f32.mrf.mxu0
    %v1985 = vadd.f32 %v1607, %v1984
    %v1986 = vand.u32 %v156, 4294901760
    %1987 = vmatmul.f32.gmra.mxu0 %v1986
    %v1988 = vpop.f32.mrf.mxu0
    %v1989 = vadd.f32 %v1613, %v1988
    %v1990 = vand.u32 %v159, 4294901760
    %1991 = vmatmul.f32.gmra.mxu0 %v1990
    %v1992 = vpop.f32.mrf.mxu0
    %v1993 = vadd.f32 %v1619, %v1992
    %v1994 = vand.u32 %v162, 4294901760
    %1995 = vmatmul.f32.gmra.mxu0 %v1994
    %v1996 = vpop.f32.mrf.mxu0
    %v1997 = vadd.f32 %v1625, %v1996
    %v1998 = vand.u32 %v165, 4294901760
    %1999 = vmatmul.f32.gmra.mxu0 %v1998
    %v2000 = vpop.f32.mrf.mxu0
    %v2001 = vadd.f32 %v1631, %v2000
    %v2002 = vand.u32 %v168, 4294901760
    %2003 = vmatmul.f32.gmra.mxu0 %v2002
    %v2004 = vpop.f32.mrf.mxu0
    %v2005 = vadd.f32 %v1637, %v2004
    %v2006 = vand.u32 %v171, 4294901760
    %2007 = vmatmul.f32.gmra.mxu0 %v2006
    %v2008 = vpop.f32.mrf.mxu0
    %v2009 = vadd.f32 %v1643, %v2008
    %v2010 = vand.u32 %v174, 4294901760
    %2011 = vmatmul.f32.gmra.mxu0 %v2010
    %v2012 = vpop.f32.mrf.mxu0
    %v2013 = vadd.f32 %v1649, %v2012
    %v2014 = vand.u32 %v177, 4294901760
    %2015 = vmatmul.f32.gmra.mxu0 %v2014
    %v2016 = vpop.f32.mrf.mxu0
    %v2017 = vadd.f32 %v1655, %v2016
    %v2018 = vand.u32 %v180, 4294901760
    %2019 = vmatmul.f32.gmra.mxu0 %v2018
    %v2020 = vpop.f32.mrf.mxu0
    %v2021 = vadd.f32 %v1661, %v2020
    %v2022 = vand.u32 %v183, 4294901760
    %2023 = vmatmul.f32.gmra.mxu0 %v2022
    %v2024 = vpop.f32.mrf.mxu0
    %v2025 = vadd.f32 %v1667, %v2024
    %v2026 = vand.u32 %v186, 4294901760
    %2027 = vmatmul.f32.gmra.mxu0 %v2026
    %v2028 = vpop.f32.mrf.mxu0
    %v2029 = vadd.f32 %v1673, %v2028
    %v2030 = vand.u32 %v189, 4294901760
    %2031 = vmatmul.f32.gmra.mxu0 %v2030
    %v2032 = vpop.f32.mrf.mxu0
    %v2033 = vadd.f32 %v1679, %v2032
    %v2034 = vand.u32 %v192, 4294901760
    %2035 = vmatmul.f32.gmra.mxu0 %v2034
    %v2036 = vpop.f32.mrf.mxu0
    %v2037 = vadd.f32 %v1685, %v2036
    %v2038 = vand.u32 %v195, 4294901760
    %2039 = vmatmul.f32.gmra.mxu0 %v2038
    %v2040 = vpop.f32.mrf.mxu0
    %v2041 = vadd.f32 %v1691, %v2040
    %v2042 = vand.u32 %v198, 4294901760
    %2043 = vmatmul.f32.gmra.mxu0 %v2042
    %v2044 = vpop.f32.mrf.mxu0
    %v2045 = vadd.f32 %v1697, %v2044
    %v2046 = vand.u32 %v201, 4294901760
    %2047 = vmatmul.f32.gmra.mxu0 %v2046
    %v2048 = vpop.f32.mrf.mxu0
    %v2049 = vadd.f32 %v1703, %v2048
    %v2050 = vand.u32 %v204, 4294901760
    %2051 = vmatmul.f32.gmra.mxu0 %v2050
    %v2052 = vpop.f32.mrf.mxu0
    %v2053 = vadd.f32 %v1709, %v2052
    %v2054 = vand.u32 %v207, 4294901760
    %2055 = vmatmul.f32.gmra.mxu0 %v2054
    %v2056 = vpop.f32.mrf.mxu0
    %v2057 = vadd.f32 %v1715, %v2056
    %v2058 = vand.u32 %v210, 4294901760
    %2059 = vmatmul.f32.gmra.mxu0 %v2058
    %v2060 = vpop.f32.mrf.mxu0
    %v2061 = vadd.f32 %v1721, %v2060
    %v2062 = vand.u32 %v213, 4294901760
    %2063 = vmatmul.f32.gmra.mxu0 %v2062
    %v2064 = vpop.f32.mrf.mxu0
    %v2065 = vadd.f32 %v1727, %v2064
    %v2066 = vand.u32 %v216, 4294901760
    %2067 = vmatmul.f32.gmra.mxu0 %v2066
    %v2068 = vpop.f32.mrf.mxu0
    %v2069 = vadd.f32 %v1733, %v2068
    %v2070 = vand.u32 %v219, 4294901760
    %2071 = vmatmul.f32.gmra.mxu0 %v2070
    %v2072 = vpop.f32.mrf.mxu0
    %v2073 = vadd.f32 %v1739, %v2072
    %v2074 = vand.u32 %v222, 4294901760
    %2075 = vmatmul.f32.gmra.mxu0 %v2074
    %v2076 = vpop.f32.mrf.mxu0
    %v2077 = vadd.f32 %v1745, %v2076
    %v2078 = vand.u32 %v225, 4294901760
    %2079 = vmatmul.f32.gmra.mxu0 %v2078
    %v2080 = vpop.f32.mrf.mxu0
    %v2081 = vadd.f32 %v1751, %v2080
    %v2082 = vand.u32 %v228, 4294901760
    %2083 = vmatmul.f32.gmra.mxu0 %v2082
    %v2084 = vpop.f32.mrf.mxu0
    %v2085 = vadd.f32 %v1757, %v2084
    %v2086 = vand.u32 %v231, 4294901760
    %2087 = vmatmul.f32.gmra.mxu0 %v2086
    %v2088 = vpop.f32.mrf.mxu0
    %v2089 = vadd.f32 %v1763, %v2088
    %v2090 = vand.u32 %v234, 4294901760
    %2091 = vmatmul.f32.gmra.mxu0 %v2090
    %v2092 = vpop.f32.mrf.mxu0
    %v2093 = vadd.f32 %v1769, %v2092
    %v2094 = vand.u32 %v237, 4294901760
    %2095 = vmatmul.f32.gmra.mxu0 %v2094
    %v2096 = vpop.f32.mrf.mxu0
    %v2097 = vadd.f32 %v1775, %v2096
    %v2098 = vand.u32 %v240, 4294901760
    %2099 = vmatmul.f32.gmra.mxu0 %v2098
    %v2100 = vpop.f32.mrf.mxu0
    %v2101 = vadd.f32 %v1781, %v2100
    %v2102 = vand.u32 %v243, 4294901760
    %2103 = vmatmul.f32.gmra.mxu0 %v2102
    %v2104 = vpop.f32.mrf.mxu0
    %v2105 = vadd.f32 %v1787, %v2104
    %v2106 = vand.u32 %v246, 4294901760
    %2107 = vmatmul.f32.gmra.mxu0 %v2106
    %v2108 = vpop.f32.mrf.mxu0
    %v2109 = vadd.f32 %v1793, %v2108
    %v2110 = vand.u32 %v249, 4294901760
    %2111 = vmatmul.f32.gmra.mxu0 %v2110
    %v2112 = vpop.f32.mrf.mxu0
    %v2113 = vadd.f32 %v1799, %v2112
    %v2114 = vand.u32 %v252, 4294901760
    %2115 = vmatmul.f32.gmra.mxu0 %v2114
    %v2116 = vpop.f32.mrf.mxu0
    %v2117 = vadd.f32 %v1805, %v2116
    %v2118 = vand.u32 %v255, 4294901760
    %2119 = vmatmul.f32.gmra.mxu0 %v2118
    %v2120 = vpop.f32.mrf.mxu0
    %v2121 = vadd.f32 %v1811, %v2120
    %v2122 = vand.u32 %v258, 4294901760
    %2123 = vmatmul.f32.gmra.mxu0 %v2122
    %v2124 = vpop.f32.mrf.mxu0
    %v2125 = vadd.f32 %v1817, %v2124
    %v2126 = vand.u32 %v261, 4294901760
    %2127 = vmatmul.f32.gmra.mxu0 %v2126
    %v2128 = vpop.f32.mrf.mxu0
    %v2129 = vadd.f32 %v1823, %v2128
    %v2130 = vand.u32 %v264, 4294901760
    %2131 = vmatmul.f32.gmra.mxu0 %v2130
    %v2132 = vpop.f32.mrf.mxu0
    %v2133 = vadd.f32 %v1829, %v2132
    %v2134 = vand.u32 %v267, 4294901760
    %2135 = vmatmul.f32.gmra.mxu0 %v2134
    %v2136 = vpop.f32.mrf.mxu0
    %v2137 = vadd.f32 %v1835, %v2136
    %v2138 = vand.u32 %v270, 4294901760
    %2139 = vmatmul.f32.gmra.mxu0 %v2138
    %v2140 = vpop.f32.mrf.mxu0
    %v2141 = vadd.f32 %v1841, %v2140
    %v2142 = vand.u32 %v273, 4294901760
    %2143 = vmatmul.f32.gmra.mxu0 %v2142
    %v2144 = vpop.f32.mrf.mxu0
    %v2145 = vadd.f32 %v1847, %v2144
    %v2146 = vand.u32 %v276, 4294901760
    %2147 = vmatmul.f32.gmra.mxu0 %v2146
    %v2148 = vpop.f32.mrf.mxu0
    %v2149 = vadd.f32 %v1853, %v2148
    %v2150 = vand.u32 %v279, 4294901760
    %2151 = vmatmul.f32.gmra.mxu0 %v2150
    %v2152 = vpop.f32.mrf.mxu0
    %v2153 = vadd.f32 %v1859, %v2152
    %v2154 = vand.u32 %v282, 4294901760
    %2155 = vmatmul.f32.gmra.mxu0 %v2154
    %v2156 = vpop.f32.mrf.mxu0
    %v2157 = vadd.f32 %v1865, %v2156
    %v2158 = vand.u32 %v285, 4294901760
    %2159 = vmatmul.f32.gmra.mxu0 %v2158
    %v2160 = vpop.f32.mrf.mxu0
    %v2161 = vadd.f32 %v1871, %v2160
    %v2162 = vand.u32 %v288, 4294901760
    %2163 = vmatmul.f32.gmra.mxu0 %v2162
    %v2164 = vpop.f32.mrf.mxu0
    %v2165 = vadd.f32 %v1877, %v2164
    %2166 = vdwg.mxu0
    %2167 = vmatpush.msra.mxu0 0.0
    %2168 = vmatpush.msra.mxu0 0.0
    %2169 = vmatpush.msra.mxu0 0.0
    %2170 = vmatpush.msra.mxu0 0.0
    %2171 = vmatpush.msra.mxu0 0.0
    %2172 = vmatpush.msra.mxu0 0.0
    %2173 = vmatpush.msra.mxu0 0.0
    %2174 = vmatpush.msra.mxu0 0.0
    %2175 = vmatpush.msra.mxu0 0.0
    %2176 = vmatpush.msra.mxu0 0.0
    %2177 = vmatpush.msra.mxu0 0.0
    %v2178 = vand.u32 %v292, 4294901760
    %2179 = vmatpush.msra.mxu0 %v2178
    %v2180 = vand.u32 %v91, 4294901760
    %2181 = vmatpush.msra.mxu0 %v2180
    %v2182 = vand.u32 %v90, 4294901760
    %2183 = vmatpush.msra.mxu0 %v2182
    %v2184 = vand.u32 %v89, 4294901760
    %2185 = vmatpush.msra.mxu0 %v2184
    %v2186 = vand.u32 %v88, 4294901760
    %2187 = vmatpush.msra.mxu0 %v2186
    %v2188 = vand.u32 %v99, 4294901760
    %2189 = vmatmul.f32.gmra.mxu0 %v2188
    %v2190 = vpop.f32.mrf.mxu0
    %v2191 = vadd.f32 %v1913, %v2190
    %v2192 = vand.u32 %v102, 4294901760
    %2193 = vmatmul.f32.gmra.mxu0 %v2192
    %v2194 = vpop.f32.mrf.mxu0
    %v2195 = vadd.f32 %v1917, %v2194
    %v2196 = vand.u32 %v105, 4294901760
    %2197 = vmatmul.f32.gmra.mxu0 %v2196
    %v2198 = vpop.f32.mrf.mxu0
    %v2199 = vadd.f32 %v1921, %v2198
    %v2200 = vand.u32 %v108, 4294901760
    %2201 = vmatmul.f32.gmra.mxu0 %v2200
    %v2202 = vpop.f32.mrf.mxu0
    %v2203 = vadd.f32 %v1925, %v2202
    %v2204 = vand.u32 %v111, 4294901760
    %2205 = vmatmul.f32.gmra.mxu0 %v2204
    %v2206 = vpop.f32.mrf.mxu0
    %v2207 = vadd.f32 %v1929, %v2206
    %v2208 = vand.u32 %v114, 4294901760
    %2209 = vmatmul.f32.gmra.mxu0 %v2208
    %v2210 = vpop.f32.mrf.mxu0
    %v2211 = vadd.f32 %v1933, %v2210
    %v2212 = vand.u32 %v117, 4294901760
    %2213 = vmatmul.f32.gmra.mxu0 %v2212
    %v2214 = vpop.f32.mrf.mxu0
    %v2215 = vadd.f32 %v1937, %v2214
    %v2216 = vand.u32 %v120, 4294901760
    %2217 = vmatmul.f32.gmra.mxu0 %v2216
    %v2218 = vpop.f32.mrf.mxu0
    %v2219 = vadd.f32 %v1941, %v2218
    %v2220 = vand.u32 %v123, 4294901760
    %2221 = vmatmul.f32.gmra.mxu0 %v2220
    %v2222 = vpop.f32.mrf.mxu0
    %v2223 = vadd.f32 %v1945, %v2222
    %v2224 = vand.u32 %v126, 4294901760
    %2225 = vmatmul.f32.gmra.mxu0 %v2224
    %v2226 = vpop.f32.mrf.mxu0
    %v2227 = vadd.f32 %v1949, %v2226
    %v2228 = vand.u32 %v129, 4294901760
    %2229 = vmatmul.f32.gmra.mxu0 %v2228
    %v2230 = vpop.f32.mrf.mxu0
    %v2231 = vadd.f32 %v1953, %v2230
    %v2232 = vand.u32 %v132, 4294901760
    %2233 = vmatmul.f32.gmra.mxu0 %v2232
    %v2234 = vpop.f32.mrf.mxu0
    %v2235 = vadd.f32 %v1957, %v2234
    %v2236 = vand.u32 %v135, 4294901760
    %2237 = vmatmul.f32.gmra.mxu0 %v2236
    %v2238 = vpop.f32.mrf.mxu0
    %v2239 = vadd.f32 %v1961, %v2238
    %v2240 = vand.u32 %v138, 4294901760
    %2241 = vmatmul.f32.gmra.mxu0 %v2240
    %v2242 = vpop.f32.mrf.mxu0
    %v2243 = vadd.f32 %v1965, %v2242
    %v2244 = vand.u32 %v141, 4294901760
    %2245 = vmatmul.f32.gmra.mxu0 %v2244
    %v2246 = vpop.f32.mrf.mxu0
    %v2247 = vadd.f32 %v1969, %v2246
    %v2248 = vand.u32 %v144, 4294901760
    %2249 = vmatmul.f32.gmra.mxu0 %v2248
    %v2250 = vpop.f32.mrf.mxu0
    %v2251 = vadd.f32 %v1973, %v2250
    %v2252 = vand.u32 %v147, 4294901760
    %2253 = vmatmul.f32.gmra.mxu0 %v2252
    %v2254 = vpop.f32.mrf.mxu0
    %v2255 = vadd.f32 %v1977, %v2254
    %v2256 = vand.u32 %v150, 4294901760
    %2257 = vmatmul.f32.gmra.mxu0 %v2256
    %v2258 = vpop.f32.mrf.mxu0
    %v2259 = vadd.f32 %v1981, %v2258
    %v2260 = vand.u32 %v153, 4294901760
    %2261 = vmatmul.f32.gmra.mxu0 %v2260
    %v2262 = vpop.f32.mrf.mxu0
    %v2263 = vadd.f32 %v1985, %v2262
    %v2264 = vand.u32 %v156, 4294901760
    %2265 = vmatmul.f32.gmra.mxu0 %v2264
    %v2266 = vpop.f32.mrf.mxu0
    %v2267 = vadd.f32 %v1989, %v2266
    %v2268 = vand.u32 %v159, 4294901760
    %2269 = vmatmul.f32.gmra.mxu0 %v2268
    %v2270 = vpop.f32.mrf.mxu0
    %v2271 = vadd.f32 %v1993, %v2270
    %v2272 = vand.u32 %v162, 4294901760
    %2273 = vmatmul.f32.gmra.mxu0 %v2272
    %v2274 = vpop.f32.mrf.mxu0
    %v2275 = vadd.f32 %v1997, %v2274
    %v2276 = vand.u32 %v165, 4294901760
    %2277 = vmatmul.f32.gmra.mxu0 %v2276
    %v2278 = vpop.f32.mrf.mxu0
    %v2279 = vadd.f32 %v2001, %v2278
    %v2280 = vand.u32 %v168, 4294901760
    %2281 = vmatmul.f32.gmra.mxu0 %v2280
    %v2282 = vpop.f32.mrf.mxu0
    %v2283 = vadd.f32 %v2005, %v2282
    %v2284 = vand.u32 %v171, 4294901760
    %2285 = vmatmul.f32.gmra.mxu0 %v2284
    %v2286 = vpop.f32.mrf.mxu0
    %v2287 = vadd.f32 %v2009, %v2286
    %v2288 = vand.u32 %v174, 4294901760
    %2289 = vmatmul.f32.gmra.mxu0 %v2288
    %v2290 = vpop.f32.mrf.mxu0
    %v2291 = vadd.f32 %v2013, %v2290
    %v2292 = vand.u32 %v177, 4294901760
    %2293 = vmatmul.f32.gmra.mxu0 %v2292
    %v2294 = vpop.f32.mrf.mxu0
    %v2295 = vadd.f32 %v2017, %v2294
    %v2296 = vand.u32 %v180, 4294901760
    %2297 = vmatmul.f32.gmra.mxu0 %v2296
    %v2298 = vpop.f32.mrf.mxu0
    %v2299 = vadd.f32 %v2021, %v2298
    %v2300 = vand.u32 %v183, 4294901760
    %2301 = vmatmul.f32.gmra.mxu0 %v2300
    %v2302 = vpop.f32.mrf.mxu0
    %v2303 = vadd.f32 %v2025, %v2302
    %v2304 = vand.u32 %v186, 4294901760
    %2305 = vmatmul.f32.gmra.mxu0 %v2304
    %v2306 = vpop.f32.mrf.mxu0
    %v2307 = vadd.f32 %v2029, %v2306
    %v2308 = vand.u32 %v189, 4294901760
    %2309 = vmatmul.f32.gmra.mxu0 %v2308
    %v2310 = vpop.f32.mrf.mxu0
    %v2311 = vadd.f32 %v2033, %v2310
    %v2312 = vand.u32 %v192, 4294901760
    %2313 = vmatmul.f32.gmra.mxu0 %v2312
    %v2314 = vpop.f32.mrf.mxu0
    %v2315 = vadd.f32 %v2037, %v2314
    %v2316 = vand.u32 %v195, 4294901760
    %2317 = vmatmul.f32.gmra.mxu0 %v2316
    %v2318 = vpop.f32.mrf.mxu0
    %v2319 = vadd.f32 %v2041, %v2318
    %v2320 = vand.u32 %v198, 4294901760
    %2321 = vmatmul.f32.gmra.mxu0 %v2320
    %v2322 = vpop.f32.mrf.mxu0
    %v2323 = vadd.f32 %v2045, %v2322
    %v2324 = vand.u32 %v201, 4294901760
    %2325 = vmatmul.f32.gmra.mxu0 %v2324
    %v2326 = vpop.f32.mrf.mxu0
    %v2327 = vadd.f32 %v2049, %v2326
    %v2328 = vand.u32 %v204, 4294901760
    %2329 = vmatmul.f32.gmra.mxu0 %v2328
    %v2330 = vpop.f32.mrf.mxu0
    %v2331 = vadd.f32 %v2053, %v2330
    %v2332 = vand.u32 %v207, 4294901760
    %2333 = vmatmul.f32.gmra.mxu0 %v2332
    %v2334 = vpop.f32.mrf.mxu0
    %v2335 = vadd.f32 %v2057, %v2334
    %v2336 = vand.u32 %v210, 4294901760
    %2337 = vmatmul.f32.gmra.mxu0 %v2336
    %v2338 = vpop.f32.mrf.mxu0
    %v2339 = vadd.f32 %v2061, %v2338
    %v2340 = vand.u32 %v213, 4294901760
    %2341 = vmatmul.f32.gmra.mxu0 %v2340
    %v2342 = vpop.f32.mrf.mxu0
    %v2343 = vadd.f32 %v2065, %v2342
    %v2344 = vand.u32 %v216, 4294901760
    %2345 = vmatmul.f32.gmra.mxu0 %v2344
    %v2346 = vpop.f32.mrf.mxu0
    %v2347 = vadd.f32 %v2069, %v2346
    %v2348 = vand.u32 %v219, 4294901760
    %2349 = vmatmul.f32.gmra.mxu0 %v2348
    %v2350 = vpop.f32.mrf.mxu0
    %v2351 = vadd.f32 %v2073, %v2350
    %v2352 = vand.u32 %v222, 4294901760
    %2353 = vmatmul.f32.gmra.mxu0 %v2352
    %v2354 = vpop.f32.mrf.mxu0
    %v2355 = vadd.f32 %v2077, %v2354
    %v2356 = vand.u32 %v225, 4294901760
    %2357 = vmatmul.f32.gmra.mxu0 %v2356
    %v2358 = vpop.f32.mrf.mxu0
    %v2359 = vadd.f32 %v2081, %v2358
    %v2360 = vand.u32 %v228, 4294901760
    %2361 = vmatmul.f32.gmra.mxu0 %v2360
    %v2362 = vpop.f32.mrf.mxu0
    %v2363 = vadd.f32 %v2085, %v2362
    %v2364 = vand.u32 %v231, 4294901760
    %2365 = vmatmul.f32.gmra.mxu0 %v2364
    %v2366 = vpop.f32.mrf.mxu0
    %v2367 = vadd.f32 %v2089, %v2366
    %v2368 = vand.u32 %v234, 4294901760
    %2369 = vmatmul.f32.gmra.mxu0 %v2368
    %v2370 = vpop.f32.mrf.mxu0
    %v2371 = vadd.f32 %v2093, %v2370
    %v2372 = vand.u32 %v237, 4294901760
    %2373 = vmatmul.f32.gmra.mxu0 %v2372
    %v2374 = vpop.f32.mrf.mxu0
    %v2375 = vadd.f32 %v2097, %v2374
    %v2376 = vand.u32 %v240, 4294901760
    %2377 = vmatmul.f32.gmra.mxu0 %v2376
    %v2378 = vpop.f32.mrf.mxu0
    %v2379 = vadd.f32 %v2101, %v2378
    %v2380 = vand.u32 %v243, 4294901760
    %2381 = vmatmul.f32.gmra.mxu0 %v2380
    %v2382 = vpop.f32.mrf.mxu0
    %v2383 = vadd.f32 %v2105, %v2382
    %v2384 = vand.u32 %v246, 4294901760
    %2385 = vmatmul.f32.gmra.mxu0 %v2384
    %v2386 = vpop.f32.mrf.mxu0
    %v2387 = vadd.f32 %v2109, %v2386
    %v2388 = vand.u32 %v249, 4294901760
    %2389 = vmatmul.f32.gmra.mxu0 %v2388
    %v2390 = vpop.f32.mrf.mxu0
    %v2391 = vadd.f32 %v2113, %v2390
    %v2392 = vand.u32 %v252, 4294901760
    %2393 = vmatmul.f32.gmra.mxu0 %v2392
    %v2394 = vpop.f32.mrf.mxu0
    %v2395 = vadd.f32 %v2117, %v2394
    %v2396 = vand.u32 %v255, 4294901760
    %2397 = vmatmul.f32.gmra.mxu0 %v2396
    %v2398 = vpop.f32.mrf.mxu0
    %v2399 = vadd.f32 %v2121, %v2398
    %v2400 = vand.u32 %v258, 4294901760
    %2401 = vmatmul.f32.gmra.mxu0 %v2400
    %v2402 = vpop.f32.mrf.mxu0
    %v2403 = vadd.f32 %v2125, %v2402
    %v2404 = vand.u32 %v261, 4294901760
    %2405 = vmatmul.f32.gmra.mxu0 %v2404
    %v2406 = vpop.f32.mrf.mxu0
    %v2407 = vadd.f32 %v2129, %v2406
    %v2408 = vand.u32 %v264, 4294901760
    %2409 = vmatmul.f32.gmra.mxu0 %v2408
    %v2410 = vpop.f32.mrf.mxu0
    %v2411 = vadd.f32 %v2133, %v2410
    %v2412 = vand.u32 %v267, 4294901760
    %2413 = vmatmul.f32.gmra.mxu0 %v2412
    %v2414 = vpop.f32.mrf.mxu0
    %v2415 = vadd.f32 %v2137, %v2414
    %v2416 = vand.u32 %v270, 4294901760
    %2417 = vmatmul.f32.gmra.mxu0 %v2416
    %v2418 = vpop.f32.mrf.mxu0
    %v2419 = vadd.f32 %v2141, %v2418
    %v2420 = vand.u32 %v273, 4294901760
    %2421 = vmatmul.f32.gmra.mxu0 %v2420
    %v2422 = vpop.f32.mrf.mxu0
    %v2423 = vadd.f32 %v2145, %v2422
    %v2424 = vand.u32 %v276, 4294901760
    %2425 = vmatmul.f32.gmra.mxu0 %v2424
    %v2426 = vpop.f32.mrf.mxu0
    %v2427 = vadd.f32 %v2149, %v2426
    %v2428 = vand.u32 %v279, 4294901760
    %2429 = vmatmul.f32.gmra.mxu0 %v2428
    %v2430 = vpop.f32.mrf.mxu0
    %v2431 = vadd.f32 %v2153, %v2430
    %v2432 = vand.u32 %v282, 4294901760
    %2433 = vmatmul.f32.gmra.mxu0 %v2432
    %v2434 = vpop.f32.mrf.mxu0
    %v2435 = vadd.f32 %v2157, %v2434
    %v2436 = vand.u32 %v285, 4294901760
    %2437 = vmatmul.f32.gmra.mxu0 %v2436
    %v2438 = vpop.f32.mrf.mxu0
    %v2439 = vadd.f32 %v2161, %v2438
    %v2440 = vand.u32 %v288, 4294901760
    %2441 = vmatmul.f32.gmra.mxu0 %v2440
    %v2442 = vpop.f32.mrf.mxu0
    %v2443 = vadd.f32 %v2165, %v2442
    %2444 = vdwg.mxu0
    %v2445 = vmax.f32 %v2191, 0.0
    %v2446 = vmax.f32 %v2195, 0.0
    %v2447 = vmax.f32 %v2199, 0.0
    %v2448 = vmax.f32 %v2203, 0.0
    %v2449 = vmax.f32 %v2207, 0.0
    %v2450 = vmax.f32 %v2211, 0.0
    %v2451 = vmax.f32 %v2215, 0.0
    %v2452 = vmax.f32 %v2219, 0.0
    %v2453 = vmax.f32 %v2223, 0.0
    %v2454 = vmax.f32 %v2227, 0.0
    %v2455 = vmax.f32 %v2231, 0.0
    %v2456 = vmax.f32 %v2235, 0.0
    %v2457 = vmax.f32 %v2239, 0.0
    %v2458 = vmax.f32 %v2243, 0.0
    %v2459 = vmax.f32 %v2247, 0.0
    %v2460 = vmax.f32 %v2251, 0.0
    %v2461 = vmax.f32 %v2255, 0.0
    %v2462 = vmax.f32 %v2259, 0.0
    %v2463 = vmax.f32 %v2263, 0.0
    %v2464 = vmax.f32 %v2267, 0.0
    %v2465 = vmax.f32 %v2271, 0.0
    %v2466 = vmax.f32 %v2275, 0.0
    %v2467 = vmax.f32 %v2279, 0.0
    %v2468 = vmax.f32 %v2283, 0.0
    %v2469 = vmax.f32 %v2287, 0.0
    %v2470 = vmax.f32 %v2291, 0.0
    %v2471 = vmax.f32 %v2295, 0.0
    %v2472 = vmax.f32 %v2299, 0.0
    %v2473 = vmax.f32 %v2303, 0.0
    %v2474 = vmax.f32 %v2307, 0.0
    %v2475 = vmax.f32 %v2311, 0.0
    %v2476 = vmax.f32 %v2315, 0.0
    %v2477 = vmax.f32 %v2319, 0.0
    %v2478 = vmax.f32 %v2323, 0.0
    %v2479 = vmax.f32 %v2327, 0.0
    %v2480 = vmax.f32 %v2331, 0.0
    %v2481 = vmax.f32 %v2335, 0.0
    %v2482 = vmax.f32 %v2339, 0.0
    %v2483 = vmax.f32 %v2343, 0.0
    %v2484 = vmax.f32 %v2347, 0.0
    %v2485 = vmax.f32 %v2351, 0.0
    %v2486 = vmax.f32 %v2355, 0.0
    %v2487 = vmax.f32 %v2359, 0.0
    %v2488 = vmax.f32 %v2363, 0.0
    %v2489 = vmax.f32 %v2367, 0.0
    %v2490 = vmax.f32 %v2371, 0.0
    %v2491 = vmax.f32 %v2375, 0.0
    %v2492 = vmax.f32 %v2379, 0.0
    %v2493 = vmax.f32 %v2383, 0.0
    %v2494 = vmax.f32 %v2387, 0.0
    %v2495 = vmax.f32 %v2391, 0.0
    %v2496 = vmax.f32 %v2395, 0.0
    %v2497 = vmax.f32 %v2399, 0.0
    %v2498 = vmax.f32 %v2403, 0.0
    %v2499 = vmax.f32 %v2407, 0.0
    %v2500 = vmax.f32 %v2411, 0.0
    %v2501 = vmax.f32 %v2415, 0.0
    %v2502 = vmax.f32 %v2419, 0.0
    %v2503 = vmax.f32 %v2423, 0.0
    %v2504 = vmax.f32 %v2427, 0.0
    %v2505 = vmax.f32 %v2431, 0.0
    %v2506 = vmax.f32 %v2435, 0.0
    %v2507 = vmax.f32 %v2439, 0.0
    %v2508 = vmax.f32 %v2443, 0.0
    %v2509 = vld [vmem:[%s3] sm:$0xff]
    %2511 = vst [vmem:[#allocation1] ss:$4 sm:$0xff] %v2509
    %v2512 = vld.sshfl [vmem:[#allocation1] sm:$0xff pattern:$0x73625140]
    %v2513 = vld.sshfl [vmem:[#allocation1 + $0x8] sm:$0xff pattern:$0x73625140]
    %v2514 = vld.sshfl [vmem:[#allocation1 + $0x10] sm:$0xff pattern:$0x73625140]
    %v2515 = vld.sshfl [vmem:[#allocation1 + $0x18] sm:$0xff pattern:$0x73625140]
    %v2520 = vand.u32 %v2460, 4294901760
    %2521 = vmatpush.msra.mxu0 %v2520
    %v2522 = vand.u32 %v2459, 4294901760
    %2523 = vmatpush.msra.mxu0 %v2522
    %v2524 = vand.u32 %v2458, 4294901760
    %2525 = vmatpush.msra.mxu0 %v2524
    %v2526 = vand.u32 %v2457, 4294901760
    %2527 = vmatpush.msra.mxu0 %v2526
    %v2528 = vand.u32 %v2456, 4294901760
    %2529 = vmatpush.msra.mxu0 %v2528
    %v2530 = vand.u32 %v2455, 4294901760
    %2531 = vmatpush.msra.mxu0 %v2530
    %v2532 = vand.u32 %v2454, 4294901760
    %2533 = vmatpush.msra.mxu0 %v2532
    %v2534 = vand.u32 %v2453, 4294901760
    %2535 = vmatpush.msra.mxu0 %v2534
    %v2536 = vand.u32 %v2452, 4294901760
    %2537 = vmatpush.msra.mxu0 %v2536
    %v2538 = vand.u32 %v2451, 4294901760
    %2539 = vmatpush.msra.mxu0 %v2538
    %v2540 = vand.u32 %v2450, 4294901760
    %2541 = vmatpush.msra.mxu0 %v2540
    %v2542 = vand.u32 %v2449, 4294901760
    %2543 = vmatpush.msra.mxu0 %v2542
    %v2544 = vand.u32 %v2448, 4294901760
    %2545 = vmatpush.msra.mxu0 %v2544
    %v2546 = vand.u32 %v2447, 4294901760
    %2547 = vmatpush.msra.mxu0 %v2546
    %v2548 = vand.u32 %v2446, 4294901760
    %2549 = vmatpush.msra.mxu0 %v2548
    %v2550 = vand.u32 %v2445, 4294901760
    %2551 = vmatpush.msra.mxu0 %v2550
    %v2552 = vand.u32 %v2512, 4294901760
    %v2553 = vsub.f32 %v2512, %v2552
    %v2554 = vand.u32 %v2553, 4294901760
    %v2555 = vsub.f32 %v2553, %v2554
    %v2556 = vand.u32 %v2555, 4294901760
    %2557 = vmatmul.f32.gmra.mxu0 %v2556
    %v2558 = vpop.f32.mrf.mxu0
    %v2559 = vadd.f32 0.0, %v2558
    %2560 = vdwg.mxu0
    %v2561 = vand.u32 %v2460, 4294901760
    %v2562 = vsub.f32 %v2460, %v2561
    %v2563 = vand.u32 %v2562, 4294901760
    %v2564 = vsub.f32 %v2562, %v2563
    %v2565 = vand.u32 %v2564, 4294901760
    %2566 = vmatpush.msra.mxu0 %v2565
    %v2567 = vand.u32 %v2459, 4294901760
    %v2568 = vsub.f32 %v2459, %v2567
    %v2569 = vand.u32 %v2568, 4294901760
    %v2570 = vsub.f32 %v2568, %v2569
    %v2571 = vand.u32 %v2570, 4294901760
    %2572 = vmatpush.msra.mxu0 %v2571
    %v2573 = vand.u32 %v2458, 4294901760
    %v2574 = vsub.f32 %v2458, %v2573
    %v2575 = vand.u32 %v2574, 4294901760
    %v2576 = vsub.f32 %v2574, %v2575
    %v2577 = vand.u32 %v2576, 4294901760
    %2578 = vmatpush.msra.mxu0 %v2577
    %v2579 = vand.u32 %v2457, 4294901760
    %v2580 = vsub.f32 %v2457, %v2579
    %v2581 = vand.u32 %v2580, 4294901760
    %v2582 = vsub.f32 %v2580, %v2581
    %v2583 = vand.u32 %v2582, 4294901760
    %2584 = vmatpush.msra.mxu0 %v2583
    %v2585 = vand.u32 %v2456, 4294901760
    %v2586 = vsub.f32 %v2456, %v2585
    %v2587 = vand.u32 %v2586, 4294901760
    %v2588 = vsub.f32 %v2586, %v2587
    %v2589 = vand.u32 %v2588, 4294901760
    %2590 = vmatpush.msra.mxu0 %v2589
    %v2591 = vand.u32 %v2455, 4294901760
    %v2592 = vsub.f32 %v2455, %v2591
    %v2593 = vand.u32 %v2592, 4294901760
    %v2594 = vsub.f32 %v2592, %v2593
    %v2595 = vand.u32 %v2594, 4294901760
    %2596 = vmatpush.msra.mxu0 %v2595
    %v2597 = vand.u32 %v2454, 4294901760
    %v2598 = vsub.f32 %v2454, %v2597
    %v2599 = vand.u32 %v2598, 4294901760
    %v2600 = vsub.f32 %v2598, %v2599
    %v2601 = vand.u32 %v2600, 4294901760
    %2602 = vmatpush.msra.mxu0 %v2601
    %v2603 = vand.u32 %v2453, 4294901760
    %v2604 = vsub.f32 %v2453, %v2603
    %v2605 = vand.u32 %v2604, 4294901760
    %v2606 = vsub.f32 %v2604, %v2605
    %v2607 = vand.u32 %v2606, 4294901760
    %2608 = vmatpush.msra.mxu0 %v2607
    %v2609 = vand.u32 %v2452, 4294901760
    %v2610 = vsub.f32 %v2452, %v2609
    %v2611 = vand.u32 %v2610, 4294901760
    %v2612 = vsub.f32 %v2610, %v2611
    %v2613 = vand.u32 %v2612, 4294901760
    %2614 = vmatpush.msra.mxu0 %v2613
    %v2615 = vand.u32 %v2451, 4294901760
    %v2616 = vsub.f32 %v2451, %v2615
    %v2617 = vand.u32 %v2616, 4294901760
    %v2618 = vsub.f32 %v2616, %v2617
    %v2619 = vand.u32 %v2618, 4294901760
    %2620 = vmatpush.msra.mxu0 %v2619
    %v2621 = vand.u32 %v2450, 4294901760
    %v2622 = vsub.f32 %v2450, %v2621
    %v2623 = vand.u32 %v2622, 4294901760
    %v2624 = vsub.f32 %v2622, %v2623
    %v2625 = vand.u32 %v2624, 4294901760
    %2626 = vmatpush.msra.mxu0 %v2625
    %v2627 = vand.u32 %v2449, 4294901760
    %v2628 = vsub.f32 %v2449, %v2627
    %v2629 = vand.u32 %v2628, 4294901760
    %v2630 = vsub.f32 %v2628, %v2629
    %v2631 = vand.u32 %v2630, 4294901760
    %2632 = vmatpush.msra.mxu0 %v2631
    %v2633 = vand.u32 %v2448, 4294901760
    %v2634 = vsub.f32 %v2448, %v2633
    %v2635 = vand.u32 %v2634, 4294901760
    %v2636 = vsub.f32 %v2634, %v2635
    %v2637 = vand.u32 %v2636, 4294901760
    %2638 = vmatpush.msra.mxu0 %v2637
    %v2639 = vand.u32 %v2447, 4294901760
    %v2640 = vsub.f32 %v2447, %v2639
    %v2641 = vand.u32 %v2640, 4294901760
    %v2642 = vsub.f32 %v2640, %v2641
    %v2643 = vand.u32 %v2642, 4294901760
    %2644 = vmatpush.msra.mxu0 %v2643
    %v2645 = vand.u32 %v2446, 4294901760
    %v2646 = vsub.f32 %v2446, %v2645
    %v2647 = vand.u32 %v2646, 4294901760
    %v2648 = vsub.f32 %v2646, %v2647
    %v2649 = vand.u32 %v2648, 4294901760
    %2650 = vmatpush.msra.mxu0 %v2649
    %v2651 = vand.u32 %v2445, 4294901760
    %v2652 = vsub.f32 %v2445, %v2651
    %v2653 = vand.u32 %v2652, 4294901760
    %v2654 = vsub.f32 %v2652, %v2653
    %v2655 = vand.u32 %v2654, 4294901760
    %2656 = vmatpush.msra.mxu0 %v2655
    %v2657 = vand.u32 %v2512, 4294901760
    %2658 = vmatmul.f32.gmra.mxu0 %v2657
    %v2659 = vpop.f32.mrf.mxu0
    %v2660 = vadd.f32 %v2559, %v2659
    %2661 = vdwg.mxu0
    %v2662 = vand.u32 %v2460, 4294901760
    %v2663 = vsub.f32 %v2460, %v2662
    %2664 = vmatpush.msra.mxu0 %v2663
    %v2665 = vand.u32 %v2459, 4294901760
    %v2666 = vsub.f32 %v2459, %v2665
    %2667 = vmatpush.msra.mxu0 %v2666
    %v2668 = vand.u32 %v2458, 4294901760
    %v2669 = vsub.f32 %v2458, %v2668
    %2670 = vmatpush.msra.mxu0 %v2669
    %v2671 = vand.u32 %v2457, 4294901760
    %v2672 = vsub.f32 %v2457, %v2671
    %2673 = vmatpush.msra.mxu0 %v2672
    %v2674 = vand.u32 %v2456, 4294901760
    %v2675 = vsub.f32 %v2456, %v2674
    %2676 = vmatpush.msra.mxu0 %v2675
    %v2677 = vand.u32 %v2455, 4294901760
    %v2678 = vsub.f32 %v2455, %v2677
    %2679 = vmatpush.msra.mxu0 %v2678
    %v2680 = vand.u32 %v2454, 4294901760
    %v2681 = vsub.f32 %v2454, %v2680
    %2682 = vmatpush.msra.mxu0 %v2681
    %v2683 = vand.u32 %v2453, 4294901760
    %v2684 = vsub.f32 %v2453, %v2683
    %2685 = vmatpush.msra.mxu0 %v2684
    %v2686 = vand.u32 %v2452, 4294901760
    %v2687 = vsub.f32 %v2452, %v2686
    %2688 = vmatpush.msra.mxu0 %v2687
    %v2689 = vand.u32 %v2451, 4294901760
    %v2690 = vsub.f32 %v2451, %v2689
    %2691 = vmatpush.msra.mxu0 %v2690
    %v2692 = vand.u32 %v2450, 4294901760
    %v2693 = vsub.f32 %v2450, %v2692
    %2694 = vmatpush.msra.mxu0 %v2693
    %v2695 = vand.u32 %v2449, 4294901760
    %v2696 = vsub.f32 %v2449, %v2695
    %2697 = vmatpush.msra.mxu0 %v2696
    %v2698 = vand.u32 %v2448, 4294901760
    %v2699 = vsub.f32 %v2448, %v2698
    %2700 = vmatpush.msra.mxu0 %v2699
    %v2701 = vand.u32 %v2447, 4294901760
    %v2702 = vsub.f32 %v2447, %v2701
    %2703 = vmatpush.msra.mxu0 %v2702
    %v2704 = vand.u32 %v2446, 4294901760
    %v2705 = vsub.f32 %v2446, %v2704
    %2706 = vmatpush.msra.mxu0 %v2705
    %v2707 = vand.u32 %v2445, 4294901760
    %v2708 = vsub.f32 %v2445, %v2707
    %2709 = vmatpush.msra.mxu0 %v2708
    %v2710 = vand.u32 %v2512, 4294901760
    %v2711 = vsub.f32 %v2512, %v2710
    %2712 = vmatmul.f32.gmra.mxu0 %v2711
    %v2713 = vpop.f32.mrf.mxu0
    %v2714 = vadd.f32 %v2660, %v2713
    %2715 = vdwg.mxu0
    %v2716 = vand.u32 %v2460, 4294901760
    %2717 = vmatpush.msra.mxu0 %v2716
    %v2718 = vand.u32 %v2459, 4294901760
    %2719 = vmatpush.msra.mxu0 %v2718
    %v2720 = vand.u32 %v2458, 4294901760
    %2721 = vmatpush.msra.mxu0 %v2720
    %v2722 = vand.u32 %v2457, 4294901760
    %2723 = vmatpush.msra.mxu0 %v2722
    %v2724 = vand.u32 %v2456, 4294901760
    %2725 = vmatpush.msra.mxu0 %v2724
    %v2726 = vand.u32 %v2455, 4294901760
    %2727 = vmatpush.msra.mxu0 %v2726
    %v2728 = vand.u32 %v2454, 4294901760
    %2729 = vmatpush.msra.mxu0 %v2728
    %v2730 = vand.u32 %v2453, 4294901760
    %2731 = vmatpush.msra.mxu0 %v2730
    %v2732 = vand.u32 %v2452, 4294901760
    %2733 = vmatpush.msra.mxu0 %v2732
    %v2734 = vand.u32 %v2451, 4294901760
    %2735 = vmatpush.msra.mxu0 %v2734
    %v2736 = vand.u32 %v2450, 4294901760
    %2737 = vmatpush.msra.mxu0 %v2736
    %v2738 = vand.u32 %v2449, 4294901760
    %2739 = vmatpush.msra.mxu0 %v2738
    %v2740 = vand.u32 %v2448, 4294901760
    %2741 = vmatpush.msra.mxu0 %v2740
    %v2742 = vand.u32 %v2447, 4294901760
    %2743 = vmatpush.msra.mxu0 %v2742
    %v2744 = vand.u32 %v2446, 4294901760
    %2745 = vmatpush.msra.mxu0 %v2744
    %v2746 = vand.u32 %v2445, 4294901760
    %2747 = vmatpush.msra.mxu0 %v2746
    %v2748 = vand.u32 %v2512, 4294901760
    %v2749 = vsub.f32 %v2512, %v2748
    %v2750 = vand.u32 %v2749, 4294901760
    %2751 = vmatmul.f32.gmra.mxu0 %v2750
    %v2752 = vpop.f32.mrf.mxu0
    %v2753 = vadd.f32 %v2714, %v2752
    %2754 = vdwg.mxu0
    %v2755 = vand.u32 %v2460, 4294901760
    %v2756 = vsub.f32 %v2460, %v2755
    %v2757 = vand.u32 %v2756, 4294901760
    %2758 = vmatpush.msra.mxu0 %v2757
    %v2759 = vand.u32 %v2459, 4294901760
    %v2760 = vsub.f32 %v2459, %v2759
    %v2761 = vand.u32 %v2760, 4294901760
    %2762 = vmatpush.msra.mxu0 %v2761
    %v2763 = vand.u32 %v2458, 4294901760
    %v2764 = vsub.f32 %v2458, %v2763
    %v2765 = vand.u32 %v2764, 4294901760
    %2766 = vmatpush.msra.mxu0 %v2765
    %v2767 = vand.u32 %v2457, 4294901760
    %v2768 = vsub.f32 %v2457, %v2767
    %v2769 = vand.u32 %v2768, 4294901760
    %2770 = vmatpush.msra.mxu0 %v2769
    %v2771 = vand.u32 %v2456, 4294901760
    %v2772 = vsub.f32 %v2456, %v2771
    %v2773 = vand.u32 %v2772, 4294901760
    %2774 = vmatpush.msra.mxu0 %v2773
    %v2775 = vand.u32 %v2455, 4294901760
    %v2776 = vsub.f32 %v2455, %v2775
    %v2777 = vand.u32 %v2776, 4294901760
    %2778 = vmatpush.msra.mxu0 %v2777
    %v2779 = vand.u32 %v2454, 4294901760
    %v2780 = vsub.f32 %v2454, %v2779
    %v2781 = vand.u32 %v2780, 4294901760
    %2782 = vmatpush.msra.mxu0 %v2781
    %v2783 = vand.u32 %v2453, 4294901760
    %v2784 = vsub.f32 %v2453, %v2783
    %v2785 = vand.u32 %v2784, 4294901760
    %2786 = vmatpush.msra.mxu0 %v2785
    %v2787 = vand.u32 %v2452, 4294901760
    %v2788 = vsub.f32 %v2452, %v2787
    %v2789 = vand.u32 %v2788, 4294901760
    %2790 = vmatpush.msra.mxu0 %v2789
    %v2791 = vand.u32 %v2451, 4294901760
    %v2792 = vsub.f32 %v2451, %v2791
    %v2793 = vand.u32 %v2792, 4294901760
    %2794 = vmatpush.msra.mxu0 %v2793
    %v2795 = vand.u32 %v2450, 4294901760
    %v2796 = vsub.f32 %v2450, %v2795
    %v2797 = vand.u32 %v2796, 4294901760
    %2798 = vmatpush.msra.mxu0 %v2797
    %v2799 = vand.u32 %v2449, 4294901760
    %v2800 = vsub.f32 %v2449, %v2799
    %v2801 = vand.u32 %v2800, 4294901760
    %2802 = vmatpush.msra.mxu0 %v2801
    %v2803 = vand.u32 %v2448, 4294901760
    %v2804 = vsub.f32 %v2448, %v2803
    %v2805 = vand.u32 %v2804, 4294901760
    %2806 = vmatpush.msra.mxu0 %v2805
    %v2807 = vand.u32 %v2447, 4294901760
    %v2808 = vsub.f32 %v2447, %v2807
    %v2809 = vand.u32 %v2808, 4294901760
    %2810 = vmatpush.msra.mxu0 %v2809
    %v2811 = vand.u32 %v2446, 4294901760
    %v2812 = vsub.f32 %v2446, %v2811
    %v2813 = vand.u32 %v2812, 4294901760
    %2814 = vmatpush.msra.mxu0 %v2813
    %v2815 = vand.u32 %v2445, 4294901760
    %v2816 = vsub.f32 %v2445, %v2815
    %v2817 = vand.u32 %v2816, 4294901760
    %2818 = vmatpush.msra.mxu0 %v2817
    %v2819 = vand.u32 %v2512, 4294901760
    %2820 = vmatmul.f32.gmra.mxu0 %v2819
    %v2821 = vpop.f32.mrf.mxu0
    %v2822 = vadd.f32 %v2753, %v2821
    %2823 = vdwg.mxu0
    %v2824 = vand.u32 %v2460, 4294901760
    %2825 = vmatpush.msra.mxu0 %v2824
    %v2826 = vand.u32 %v2459, 4294901760
    %2827 = vmatpush.msra.mxu0 %v2826
    %v2828 = vand.u32 %v2458, 4294901760
    %2829 = vmatpush.msra.mxu0 %v2828
    %v2830 = vand.u32 %v2457, 4294901760
    %2831 = vmatpush.msra.mxu0 %v2830
    %v2832 = vand.u32 %v2456, 4294901760
    %2833 = vmatpush.msra.mxu0 %v2832
    %v2834 = vand.u32 %v2455, 4294901760
    %2835 = vmatpush.msra.mxu0 %v2834
    %v2836 = vand.u32 %v2454, 4294901760
    %2837 = vmatpush.msra.mxu0 %v2836
    %v2838 = vand.u32 %v2453, 4294901760
    %2839 = vmatpush.msra.mxu0 %v2838
    %v2840 = vand.u32 %v2452, 4294901760
    %2841 = vmatpush.msra.mxu0 %v2840
    %v2842 = vand.u32 %v2451, 4294901760
    %2843 = vmatpush.msra.mxu0 %v2842
    %v2844 = vand.u32 %v2450, 4294901760
    %2845 = vmatpush.msra.mxu0 %v2844
    %v2846 = vand.u32 %v2449, 4294901760
    %2847 = vmatpush.msra.mxu0 %v2846
    %v2848 = vand.u32 %v2448, 4294901760
    %2849 = vmatpush.msra.mxu0 %v2848
    %v2850 = vand.u32 %v2447, 4294901760
    %2851 = vmatpush.msra.mxu0 %v2850
    %v2852 = vand.u32 %v2446, 4294901760
    %2853 = vmatpush.msra.mxu0 %v2852
    %v2854 = vand.u32 %v2445, 4294901760
    %2855 = vmatpush.msra.mxu0 %v2854
    %v2856 = vand.u32 %v2512, 4294901760
    %2857 = vmatmul.f32.gmra.mxu0 %v2856
    %v2858 = vpop.f32.mrf.mxu0
    %v2859 = vadd.f32 %v2822, %v2858
    %2860 = vdwg.mxu0
    %v2861 = vand.u32 %v2476, 4294901760
    %2862 = vmatpush.msra.mxu0 %v2861
    %v2863 = vand.u32 %v2475, 4294901760
    %2864 = vmatpush.msra.mxu0 %v2863
    %v2865 = vand.u32 %v2474, 4294901760
    %2866 = vmatpush.msra.mxu0 %v2865
    %v2867 = vand.u32 %v2473, 4294901760
    %2868 = vmatpush.msra.mxu0 %v2867
    %v2869 = vand.u32 %v2472, 4294901760
    %2870 = vmatpush.msra.mxu0 %v2869
    %v2871 = vand.u32 %v2471, 4294901760
    %2872 = vmatpush.msra.mxu0 %v2871
    %v2873 = vand.u32 %v2470, 4294901760
    %2874 = vmatpush.msra.mxu0 %v2873
    %v2875 = vand.u32 %v2469, 4294901760
    %2876 = vmatpush.msra.mxu0 %v2875
    %v2877 = vand.u32 %v2468, 4294901760
    %2878 = vmatpush.msra.mxu0 %v2877
    %v2879 = vand.u32 %v2467, 4294901760
    %2880 = vmatpush.msra.mxu0 %v2879
    %v2881 = vand.u32 %v2466, 4294901760
    %2882 = vmatpush.msra.mxu0 %v2881
    %v2883 = vand.u32 %v2465, 4294901760
    %2884 = vmatpush.msra.mxu0 %v2883
    %v2885 = vand.u32 %v2464, 4294901760
    %2886 = vmatpush.msra.mxu0 %v2885
    %v2887 = vand.u32 %v2463, 4294901760
    %2888 = vmatpush.msra.mxu0 %v2887
    %v2889 = vand.u32 %v2462, 4294901760
    %2890 = vmatpush.msra.mxu0 %v2889
    %v2891 = vand.u32 %v2461, 4294901760
    %2892 = vmatpush.msra.mxu0 %v2891
    %v2893 = vand.u32 %v2513, 4294901760
    %v2894 = vsub.f32 %v2513, %v2893
    %v2895 = vand.u32 %v2894, 4294901760
    %v2896 = vsub.f32 %v2894, %v2895
    %v2897 = vand.u32 %v2896, 4294901760
    %2898 = vmatmul.f32.gmra.mxu0 %v2897
    %v2899 = vpop.f32.mrf.mxu0
    %v2900 = vadd.f32 %v2859, %v2899
    %2901 = vdwg.mxu0
    %v2902 = vand.u32 %v2476, 4294901760
    %v2903 = vsub.f32 %v2476, %v2902
    %v2904 = vand.u32 %v2903, 4294901760
    %v2905 = vsub.f32 %v2903, %v2904
    %v2906 = vand.u32 %v2905, 4294901760
    %2907 = vmatpush.msra.mxu0 %v2906
    %v2908 = vand.u32 %v2475, 4294901760
    %v2909 = vsub.f32 %v2475, %v2908
    %v2910 = vand.u32 %v2909, 4294901760
    %v2911 = vsub.f32 %v2909, %v2910
    %v2912 = vand.u32 %v2911, 4294901760
    %2913 = vmatpush.msra.mxu0 %v2912
    %v2914 = vand.u32 %v2474, 4294901760
    %v2915 = vsub.f32 %v2474, %v2914
    %v2916 = vand.u32 %v2915, 4294901760
    %v2917 = vsub.f32 %v2915, %v2916
    %v2918 = vand.u32 %v2917, 4294901760
    %2919 = vmatpush.msra.mxu0 %v2918
    %v2920 = vand.u32 %v2473, 4294901760
    %v2921 = vsub.f32 %v2473, %v2920
    %v2922 = vand.u32 %v2921, 4294901760
    %v2923 = vsub.f32 %v2921, %v2922
    %v2924 = vand.u32 %v2923, 4294901760
    %2925 = vmatpush.msra.mxu0 %v2924
    %v2926 = vand.u32 %v2472, 4294901760
    %v2927 = vsub.f32 %v2472, %v2926
    %v2928 = vand.u32 %v2927, 4294901760
    %v2929 = vsub.f32 %v2927, %v2928
    %v2930 = vand.u32 %v2929, 4294901760
    %2931 = vmatpush.msra.mxu0 %v2930
    %v2932 = vand.u32 %v2471, 4294901760
    %v2933 = vsub.f32 %v2471, %v2932
    %v2934 = vand.u32 %v2933, 4294901760
    %v2935 = vsub.f32 %v2933, %v2934
    %v2936 = vand.u32 %v2935, 4294901760
    %2937 = vmatpush.msra.mxu0 %v2936
    %v2938 = vand.u32 %v2470, 4294901760
    %v2939 = vsub.f32 %v2470, %v2938
    %v2940 = vand.u32 %v2939, 4294901760
    %v2941 = vsub.f32 %v2939, %v2940
    %v2942 = vand.u32 %v2941, 4294901760
    %2943 = vmatpush.msra.mxu0 %v2942
    %v2944 = vand.u32 %v2469, 4294901760
    %v2945 = vsub.f32 %v2469, %v2944
    %v2946 = vand.u32 %v2945, 4294901760
    %v2947 = vsub.f32 %v2945, %v2946
    %v2948 = vand.u32 %v2947, 4294901760
    %2949 = vmatpush.msra.mxu0 %v2948
    %v2950 = vand.u32 %v2468, 4294901760
    %v2951 = vsub.f32 %v2468, %v2950
    %v2952 = vand.u32 %v2951, 4294901760
    %v2953 = vsub.f32 %v2951, %v2952
    %v2954 = vand.u32 %v2953, 4294901760
    %2955 = vmatpush.msra.mxu0 %v2954
    %v2956 = vand.u32 %v2467, 4294901760
    %v2957 = vsub.f32 %v2467, %v2956
    %v2958 = vand.u32 %v2957, 4294901760
    %v2959 = vsub.f32 %v2957, %v2958
    %v2960 = vand.u32 %v2959, 4294901760
    %2961 = vmatpush.msra.mxu0 %v2960
    %v2962 = vand.u32 %v2466, 4294901760
    %v2963 = vsub.f32 %v2466, %v2962
    %v2964 = vand.u32 %v2963, 4294901760
    %v2965 = vsub.f32 %v2963, %v2964
    %v2966 = vand.u32 %v2965, 4294901760
    %2967 = vmatpush.msra.mxu0 %v2966
    %v2968 = vand.u32 %v2465, 4294901760
    %v2969 = vsub.f32 %v2465, %v2968
    %v2970 = vand.u32 %v2969, 4294901760
    %v2971 = vsub.f32 %v2969, %v2970
    %v2972 = vand.u32 %v2971, 4294901760
    %2973 = vmatpush.msra.mxu0 %v2972
    %v2974 = vand.u32 %v2464, 4294901760
    %v2975 = vsub.f32 %v2464, %v2974
    %v2976 = vand.u32 %v2975, 4294901760
    %v2977 = vsub.f32 %v2975, %v2976
    %v2978 = vand.u32 %v2977, 4294901760
    %2979 = vmatpush.msra.mxu0 %v2978
    %v2980 = vand.u32 %v2463, 4294901760
    %v2981 = vsub.f32 %v2463, %v2980
    %v2982 = vand.u32 %v2981, 4294901760
    %v2983 = vsub.f32 %v2981, %v2982
    %v2984 = vand.u32 %v2983, 4294901760
    %2985 = vmatpush.msra.mxu0 %v2984
    %v2986 = vand.u32 %v2462, 4294901760
    %v2987 = vsub.f32 %v2462, %v2986
    %v2988 = vand.u32 %v2987, 4294901760
    %v2989 = vsub.f32 %v2987, %v2988
    %v2990 = vand.u32 %v2989, 4294901760
    %2991 = vmatpush.msra.mxu0 %v2990
    %v2992 = vand.u32 %v2461, 4294901760
    %v2993 = vsub.f32 %v2461, %v2992
    %v2994 = vand.u32 %v2993, 4294901760
    %v2995 = vsub.f32 %v2993, %v2994
    %v2996 = vand.u32 %v2995, 4294901760
    %2997 = vmatpush.msra.mxu0 %v2996
    %v2998 = vand.u32 %v2513, 4294901760
    %2999 = vmatmul.f32.gmra.mxu0 %v2998
    %v3000 = vpop.f32.mrf.mxu0
    %v3001 = vadd.f32 %v2900, %v3000
    %3002 = vdwg.mxu0
    %v3003 = vand.u32 %v2476, 4294901760
    %v3004 = vsub.f32 %v2476, %v3003
    %3005 = vmatpush.msra.mxu0 %v3004
    %v3006 = vand.u32 %v2475, 4294901760
    %v3007 = vsub.f32 %v2475, %v3006
    %3008 = vmatpush.msra.mxu0 %v3007
    %v3009 = vand.u32 %v2474, 4294901760
    %v3010 = vsub.f32 %v2474, %v3009
    %3011 = vmatpush.msra.mxu0 %v3010
    %v3012 = vand.u32 %v2473, 4294901760
    %v3013 = vsub.f32 %v2473, %v3012
    %3014 = vmatpush.msra.mxu0 %v3013
    %v3015 = vand.u32 %v2472, 4294901760
    %v3016 = vsub.f32 %v2472, %v3015
    %3017 = vmatpush.msra.mxu0 %v3016
    %v3018 = vand.u32 %v2471, 4294901760
    %v3019 = vsub.f32 %v2471, %v3018
    %3020 = vmatpush.msra.mxu0 %v3019
    %v3021 = vand.u32 %v2470, 4294901760
    %v3022 = vsub.f32 %v2470, %v3021
    %3023 = vmatpush.msra.mxu0 %v3022
    %v3024 = vand.u32 %v2469, 4294901760
    %v3025 = vsub.f32 %v2469, %v3024
    %3026 = vmatpush.msra.mxu0 %v3025
    %v3027 = vand.u32 %v2468, 4294901760
    %v3028 = vsub.f32 %v2468, %v3027
    %3029 = vmatpush.msra.mxu0 %v3028
    %v3030 = vand.u32 %v2467, 4294901760
    %v3031 = vsub.f32 %v2467, %v3030
    %3032 = vmatpush.msra.mxu0 %v3031
    %v3033 = vand.u32 %v2466, 4294901760
    %v3034 = vsub.f32 %v2466, %v3033
    %3035 = vmatpush.msra.mxu0 %v3034
    %v3036 = vand.u32 %v2465, 4294901760
    %v3037 = vsub.f32 %v2465, %v3036
    %3038 = vmatpush.msra.mxu0 %v3037
    %v3039 = vand.u32 %v2464, 4294901760
    %v3040 = vsub.f32 %v2464, %v3039
    %3041 = vmatpush.msra.mxu0 %v3040
    %v3042 = vand.u32 %v2463, 4294901760
    %v3043 = vsub.f32 %v2463, %v3042
    %3044 = vmatpush.msra.mxu0 %v3043
    %v3045 = vand.u32 %v2462, 4294901760
    %v3046 = vsub.f32 %v2462, %v3045
    %3047 = vmatpush.msra.mxu0 %v3046
    %v3048 = vand.u32 %v2461, 4294901760
    %v3049 = vsub.f32 %v2461, %v3048
    %3050 = vmatpush.msra.mxu0 %v3049
    %v3051 = vand.u32 %v2513, 4294901760
    %v3052 = vsub.f32 %v2513, %v3051
    %3053 = vmatmul.f32.gmra.mxu0 %v3052
    %v3054 = vpop.f32.mrf.mxu0
    %v3055 = vadd.f32 %v3001, %v3054
    %3056 = vdwg.mxu0
    %v3057 = vand.u32 %v2476, 4294901760
    %3058 = vmatpush.msra.mxu0 %v3057
    %v3059 = vand.u32 %v2475, 4294901760
    %3060 = vmatpush.msra.mxu0 %v3059
    %v3061 = vand.u32 %v2474, 4294901760
    %3062 = vmatpush.msra.mxu0 %v3061
    %v3063 = vand.u32 %v2473, 4294901760
    %3064 = vmatpush.msra.mxu0 %v3063
    %v3065 = vand.u32 %v2472, 4294901760
    %3066 = vmatpush.msra.mxu0 %v3065
    %v3067 = vand.u32 %v2471, 4294901760
    %3068 = vmatpush.msra.mxu0 %v3067
    %v3069 = vand.u32 %v2470, 4294901760
    %3070 = vmatpush.msra.mxu0 %v3069
    %v3071 = vand.u32 %v2469, 4294901760
    %3072 = vmatpush.msra.mxu0 %v3071
    %v3073 = vand.u32 %v2468, 4294901760
    %3074 = vmatpush.msra.mxu0 %v3073
    %v3075 = vand.u32 %v2467, 4294901760
    %3076 = vmatpush.msra.mxu0 %v3075
    %v3077 = vand.u32 %v2466, 4294901760
    %3078 = vmatpush.msra.mxu0 %v3077
    %v3079 = vand.u32 %v2465, 4294901760
    %3080 = vmatpush.msra.mxu0 %v3079
    %v3081 = vand.u32 %v2464, 4294901760
    %3082 = vmatpush.msra.mxu0 %v3081
    %v3083 = vand.u32 %v2463, 4294901760
    %3084 = vmatpush.msra.mxu0 %v3083
    %v3085 = vand.u32 %v2462, 4294901760
    %3086 = vmatpush.msra.mxu0 %v3085
    %v3087 = vand.u32 %v2461, 4294901760
    %3088 = vmatpush.msra.mxu0 %v3087
    %v3089 = vand.u32 %v2513, 4294901760
    %v3090 = vsub.f32 %v2513, %v3089
    %v3091 = vand.u32 %v3090, 4294901760
    %3092 = vmatmul.f32.gmra.mxu0 %v3091
    %v3093 = vpop.f32.mrf.mxu0
    %v3094 = vadd.f32 %v3055, %v3093
    %3095 = vdwg.mxu0
    %v3096 = vand.u32 %v2476, 4294901760
    %v3097 = vsub.f32 %v2476, %v3096
    %v3098 = vand.u32 %v3097, 4294901760
    %3099 = vmatpush.msra.mxu0 %v3098
    %v3100 = vand.u32 %v2475, 4294901760
    %v3101 = vsub.f32 %v2475, %v3100
    %v3102 = vand.u32 %v3101, 4294901760
    %3103 = vmatpush.msra.mxu0 %v3102
    %v3104 = vand.u32 %v2474, 4294901760
    %v3105 = vsub.f32 %v2474, %v3104
    %v3106 = vand.u32 %v3105, 4294901760
    %3107 = vmatpush.msra.mxu0 %v3106
    %v3108 = vand.u32 %v2473, 4294901760
    %v3109 = vsub.f32 %v2473, %v3108
    %v3110 = vand.u32 %v3109, 4294901760
    %3111 = vmatpush.msra.mxu0 %v3110
    %v3112 = vand.u32 %v2472, 4294901760
    %v3113 = vsub.f32 %v2472, %v3112
    %v3114 = vand.u32 %v3113, 4294901760
    %3115 = vmatpush.msra.mxu0 %v3114
    %v3116 = vand.u32 %v2471, 4294901760
    %v3117 = vsub.f32 %v2471, %v3116
    %v3118 = vand.u32 %v3117, 4294901760
    %3119 = vmatpush.msra.mxu0 %v3118
    %v3120 = vand.u32 %v2470, 4294901760
    %v3121 = vsub.f32 %v2470, %v3120
    %v3122 = vand.u32 %v3121, 4294901760
    %3123 = vmatpush.msra.mxu0 %v3122
    %v3124 = vand.u32 %v2469, 4294901760
    %v3125 = vsub.f32 %v2469, %v3124
    %v3126 = vand.u32 %v3125, 4294901760
    %3127 = vmatpush.msra.mxu0 %v3126
    %v3128 = vand.u32 %v2468, 4294901760
    %v3129 = vsub.f32 %v2468, %v3128
    %v3130 = vand.u32 %v3129, 4294901760
    %3131 = vmatpush.msra.mxu0 %v3130
    %v3132 = vand.u32 %v2467, 4294901760
    %v3133 = vsub.f32 %v2467, %v3132
    %v3134 = vand.u32 %v3133, 4294901760
    %3135 = vmatpush.msra.mxu0 %v3134
    %v3136 = vand.u32 %v2466, 4294901760
    %v3137 = vsub.f32 %v2466, %v3136
    %v3138 = vand.u32 %v3137, 4294901760
    %3139 = vmatpush.msra.mxu0 %v3138
    %v3140 = vand.u32 %v2465, 4294901760
    %v3141 = vsub.f32 %v2465, %v3140
    %v3142 = vand.u32 %v3141, 4294901760
    %3143 = vmatpush.msra.mxu0 %v3142
    %v3144 = vand.u32 %v2464, 4294901760
    %v3145 = vsub.f32 %v2464, %v3144
    %v3146 = vand.u32 %v3145, 4294901760
    %3147 = vmatpush.msra.mxu0 %v3146
    %v3148 = vand.u32 %v2463, 4294901760
    %v3149 = vsub.f32 %v2463, %v3148
    %v3150 = vand.u32 %v3149, 4294901760
    %3151 = vmatpush.msra.mxu0 %v3150
    %v3152 = vand.u32 %v2462, 4294901760
    %v3153 = vsub.f32 %v2462, %v3152
    %v3154 = vand.u32 %v3153, 4294901760
    %3155 = vmatpush.msra.mxu0 %v3154
    %v3156 = vand.u32 %v2461, 4294901760
    %v3157 = vsub.f32 %v2461, %v3156
    %v3158 = vand.u32 %v3157, 4294901760
    %3159 = vmatpush.msra.mxu0 %v3158
    %v3160 = vand.u32 %v2513, 4294901760
    %3161 = vmatmul.f32.gmra.mxu0 %v3160
    %v3162 = vpop.f32.mrf.mxu0
    %v3163 = vadd.f32 %v3094, %v3162
    %3164 = vdwg.mxu0
    %v3165 = vand.u32 %v2476, 4294901760
    %3166 = vmatpush.msra.mxu0 %v3165
    %v3167 = vand.u32 %v2475, 4294901760
    %3168 = vmatpush.msra.mxu0 %v3167
    %v3169 = vand.u32 %v2474, 4294901760
    %3170 = vmatpush.msra.mxu0 %v3169
    %v3171 = vand.u32 %v2473, 4294901760
    %3172 = vmatpush.msra.mxu0 %v3171
    %v3173 = vand.u32 %v2472, 4294901760
    %3174 = vmatpush.msra.mxu0 %v3173
    %v3175 = vand.u32 %v2471, 4294901760
    %3176 = vmatpush.msra.mxu0 %v3175
    %v3177 = vand.u32 %v2470, 4294901760
    %3178 = vmatpush.msra.mxu0 %v3177
    %v3179 = vand.u32 %v2469, 4294901760
    %3180 = vmatpush.msra.mxu0 %v3179
    %v3181 = vand.u32 %v2468, 4294901760
    %3182 = vmatpush.msra.mxu0 %v3181
    %v3183 = vand.u32 %v2467, 4294901760
    %3184 = vmatpush.msra.mxu0 %v3183
    %v3185 = vand.u32 %v2466, 4294901760
    %3186 = vmatpush.msra.mxu0 %v3185
    %v3187 = vand.u32 %v2465, 4294901760
    %3188 = vmatpush.msra.mxu0 %v3187
    %v3189 = vand.u32 %v2464, 4294901760
    %3190 = vmatpush.msra.mxu0 %v3189
    %v3191 = vand.u32 %v2463, 4294901760
    %3192 = vmatpush.msra.mxu0 %v3191
    %v3193 = vand.u32 %v2462, 4294901760
    %3194 = vmatpush.msra.mxu0 %v3193
    %v3195 = vand.u32 %v2461, 4294901760
    %3196 = vmatpush.msra.mxu0 %v3195
    %v3197 = vand.u32 %v2513, 4294901760
    %3198 = vmatmul.f32.gmra.mxu0 %v3197
    %v3199 = vpop.f32.mrf.mxu0
    %v3200 = vadd.f32 %v3163, %v3199
    %3201 = vdwg.mxu0
    %v3202 = vand.u32 %v2492, 4294901760
    %3203 = vmatpush.msra.mxu0 %v3202
    %v3204 = vand.u32 %v2491, 4294901760
    %3205 = vmatpush.msra.mxu0 %v3204
    %v3206 = vand.u32 %v2490, 4294901760
    %3207 = vmatpush.msra.mxu0 %v3206
    %v3208 = vand.u32 %v2489, 4294901760
    %3209 = vmatpush.msra.mxu0 %v3208
    %v3210 = vand.u32 %v2488, 4294901760
    %3211 = vmatpush.msra.mxu0 %v3210
    %v3212 = vand.u32 %v2487, 4294901760
    %3213 = vmatpush.msra.mxu0 %v3212
    %v3214 = vand.u32 %v2486, 4294901760
    %3215 = vmatpush.msra.mxu0 %v3214
    %v3216 = vand.u32 %v2485, 4294901760
    %3217 = vmatpush.msra.mxu0 %v3216
    %v3218 = vand.u32 %v2484, 4294901760
    %3219 = vmatpush.msra.mxu0 %v3218
    %v3220 = vand.u32 %v2483, 4294901760
    %3221 = vmatpush.msra.mxu0 %v3220
    %v3222 = vand.u32 %v2482, 4294901760
    %3223 = vmatpush.msra.mxu0 %v3222
    %v3224 = vand.u32 %v2481, 4294901760
    %3225 = vmatpush.msra.mxu0 %v3224
    %v3226 = vand.u32 %v2480, 4294901760
    %3227 = vmatpush.msra.mxu0 %v3226
    %v3228 = vand.u32 %v2479, 4294901760
    %3229 = vmatpush.msra.mxu0 %v3228
    %v3230 = vand.u32 %v2478, 4294901760
    %3231 = vmatpush.msra.mxu0 %v3230
    %v3232 = vand.u32 %v2477, 4294901760
    %3233 = vmatpush.msra.mxu0 %v3232
    %v3234 = vand.u32 %v2514, 4294901760
    %v3235 = vsub.f32 %v2514, %v3234
    %v3236 = vand.u32 %v3235, 4294901760
    %v3237 = vsub.f32 %v3235, %v3236
    %v3238 = vand.u32 %v3237, 4294901760
    %3239 = vmatmul.f32.gmra.mxu0 %v3238
    %v3240 = vpop.f32.mrf.mxu0
    %v3241 = vadd.f32 %v3200, %v3240
    %3242 = vdwg.mxu0
    %v3243 = vand.u32 %v2492, 4294901760
    %v3244 = vsub.f32 %v2492, %v3243
    %v3245 = vand.u32 %v3244, 4294901760
    %v3246 = vsub.f32 %v3244, %v3245
    %v3247 = vand.u32 %v3246, 4294901760
    %3248 = vmatpush.msra.mxu0 %v3247
    %v3249 = vand.u32 %v2491, 4294901760
    %v3250 = vsub.f32 %v2491, %v3249
    %v3251 = vand.u32 %v3250, 4294901760
    %v3252 = vsub.f32 %v3250, %v3251
    %v3253 = vand.u32 %v3252, 4294901760
    %3254 = vmatpush.msra.mxu0 %v3253
    %v3255 = vand.u32 %v2490, 4294901760
    %v3256 = vsub.f32 %v2490, %v3255
    %v3257 = vand.u32 %v3256, 4294901760
    %v3258 = vsub.f32 %v3256, %v3257
    %v3259 = vand.u32 %v3258, 4294901760
    %3260 = vmatpush.msra.mxu0 %v3259
    %v3261 = vand.u32 %v2489, 4294901760
    %v3262 = vsub.f32 %v2489, %v3261
    %v3263 = vand.u32 %v3262, 4294901760
    %v3264 = vsub.f32 %v3262, %v3263
    %v3265 = vand.u32 %v3264, 4294901760
    %3266 = vmatpush.msra.mxu0 %v3265
    %v3267 = vand.u32 %v2488, 4294901760
    %v3268 = vsub.f32 %v2488, %v3267
    %v3269 = vand.u32 %v3268, 4294901760
    %v3270 = vsub.f32 %v3268, %v3269
    %v3271 = vand.u32 %v3270, 4294901760
    %3272 = vmatpush.msra.mxu0 %v3271
    %v3273 = vand.u32 %v2487, 4294901760
    %v3274 = vsub.f32 %v2487, %v3273
    %v3275 = vand.u32 %v3274, 4294901760
    %v3276 = vsub.f32 %v3274, %v3275
    %v3277 = vand.u32 %v3276, 4294901760
    %3278 = vmatpush.msra.mxu0 %v3277
    %v3279 = vand.u32 %v2486, 4294901760
    %v3280 = vsub.f32 %v2486, %v3279
    %v3281 = vand.u32 %v3280, 4294901760
    %v3282 = vsub.f32 %v3280, %v3281
    %v3283 = vand.u32 %v3282, 4294901760
    %3284 = vmatpush.msra.mxu0 %v3283
    %v3285 = vand.u32 %v2485, 4294901760
    %v3286 = vsub.f32 %v2485, %v3285
    %v3287 = vand.u32 %v3286, 4294901760
    %v3288 = vsub.f32 %v3286, %v3287
    %v3289 = vand.u32 %v3288, 4294901760
    %3290 = vmatpush.msra.mxu0 %v3289
    %v3291 = vand.u32 %v2484, 4294901760
    %v3292 = vsub.f32 %v2484, %v3291
    %v3293 = vand.u32 %v3292, 4294901760
    %v3294 = vsub.f32 %v3292, %v3293
    %v3295 = vand.u32 %v3294, 4294901760
    %3296 = vmatpush.msra.mxu0 %v3295
    %v3297 = vand.u32 %v2483, 4294901760
    %v3298 = vsub.f32 %v2483, %v3297
    %v3299 = vand.u32 %v3298, 4294901760
    %v3300 = vsub.f32 %v3298, %v3299
    %v3301 = vand.u32 %v3300, 4294901760
    %3302 = vmatpush.msra.mxu0 %v3301
    %v3303 = vand.u32 %v2482, 4294901760
    %v3304 = vsub.f32 %v2482, %v3303
    %v3305 = vand.u32 %v3304, 4294901760
    %v3306 = vsub.f32 %v3304, %v3305
    %v3307 = vand.u32 %v3306, 4294901760
    %3308 = vmatpush.msra.mxu0 %v3307
    %v3309 = vand.u32 %v2481, 4294901760
    %v3310 = vsub.f32 %v2481, %v3309
    %v3311 = vand.u32 %v3310, 4294901760
    %v3312 = vsub.f32 %v3310, %v3311
    %v3313 = vand.u32 %v3312, 4294901760
    %3314 = vmatpush.msra.mxu0 %v3313
    %v3315 = vand.u32 %v2480, 4294901760
    %v3316 = vsub.f32 %v2480, %v3315
    %v3317 = vand.u32 %v3316, 4294901760
    %v3318 = vsub.f32 %v3316, %v3317
    %v3319 = vand.u32 %v3318, 4294901760
    %3320 = vmatpush.msra.mxu0 %v3319
    %v3321 = vand.u32 %v2479, 4294901760
    %v3322 = vsub.f32 %v2479, %v3321
    %v3323 = vand.u32 %v3322, 4294901760
    %v3324 = vsub.f32 %v3322, %v3323
    %v3325 = vand.u32 %v3324, 4294901760
    %3326 = vmatpush.msra.mxu0 %v3325
    %v3327 = vand.u32 %v2478, 4294901760
    %v3328 = vsub.f32 %v2478, %v3327
    %v3329 = vand.u32 %v3328, 4294901760
    %v3330 = vsub.f32 %v3328, %v3329
    %v3331 = vand.u32 %v3330, 4294901760
    %3332 = vmatpush.msra.mxu0 %v3331
    %v3333 = vand.u32 %v2477, 4294901760
    %v3334 = vsub.f32 %v2477, %v3333
    %v3335 = vand.u32 %v3334, 4294901760
    %v3336 = vsub.f32 %v3334, %v3335
    %v3337 = vand.u32 %v3336, 4294901760
    %3338 = vmatpush.msra.mxu0 %v3337
    %v3339 = vand.u32 %v2514, 4294901760
    %3340 = vmatmul.f32.gmra.mxu0 %v3339
    %v3341 = vpop.f32.mrf.mxu0
    %v3342 = vadd.f32 %v3241, %v3341
    %3343 = vdwg.mxu0
    %v3344 = vand.u32 %v2492, 4294901760
    %v3345 = vsub.f32 %v2492, %v3344
    %3346 = vmatpush.msra.mxu0 %v3345
    %v3347 = vand.u32 %v2491, 4294901760
    %v3348 = vsub.f32 %v2491, %v3347
    %3349 = vmatpush.msra.mxu0 %v3348
    %v3350 = vand.u32 %v2490, 4294901760
    %v3351 = vsub.f32 %v2490, %v3350
    %3352 = vmatpush.msra.mxu0 %v3351
    %v3353 = vand.u32 %v2489, 4294901760
    %v3354 = vsub.f32 %v2489, %v3353
    %3355 = vmatpush.msra.mxu0 %v3354
    %v3356 = vand.u32 %v2488, 4294901760
    %v3357 = vsub.f32 %v2488, %v3356
    %3358 = vmatpush.msra.mxu0 %v3357
    %v3359 = vand.u32 %v2487, 4294901760
    %v3360 = vsub.f32 %v2487, %v3359
    %3361 = vmatpush.msra.mxu0 %v3360
    %v3362 = vand.u32 %v2486, 4294901760
    %v3363 = vsub.f32 %v2486, %v3362
    %3364 = vmatpush.msra.mxu0 %v3363
    %v3365 = vand.u32 %v2485, 4294901760
    %v3366 = vsub.f32 %v2485, %v3365
    %3367 = vmatpush.msra.mxu0 %v3366
    %v3368 = vand.u32 %v2484, 4294901760
    %v3369 = vsub.f32 %v2484, %v3368
    %3370 = vmatpush.msra.mxu0 %v3369
    %v3371 = vand.u32 %v2483, 4294901760
    %v3372 = vsub.f32 %v2483, %v3371
    %3373 = vmatpush.msra.mxu0 %v3372
    %v3374 = vand.u32 %v2482, 4294901760
    %v3375 = vsub.f32 %v2482, %v3374
    %3376 = vmatpush.msra.mxu0 %v3375
    %v3377 = vand.u32 %v2481, 4294901760
    %v3378 = vsub.f32 %v2481, %v3377
    %3379 = vmatpush.msra.mxu0 %v3378
    %v3380 = vand.u32 %v2480, 4294901760
    %v3381 = vsub.f32 %v2480, %v3380
    %3382 = vmatpush.msra.mxu0 %v3381
    %v3383 = vand.u32 %v2479, 4294901760
    %v3384 = vsub.f32 %v2479, %v3383
    %3385 = vmatpush.msra.mxu0 %v3384
    %v3386 = vand.u32 %v2478, 4294901760
    %v3387 = vsub.f32 %v2478, %v3386
    %3388 = vmatpush.msra.mxu0 %v3387
    %v3389 = vand.u32 %v2477, 4294901760
    %v3390 = vsub.f32 %v2477, %v3389
    %3391 = vmatpush.msra.mxu0 %v3390
    %v3392 = vand.u32 %v2514, 4294901760
    %v3393 = vsub.f32 %v2514, %v3392
    %3394 = vmatmul.f32.gmra.mxu0 %v3393
    %v3395 = vpop.f32.mrf.mxu0
    %v3396 = vadd.f32 %v3342, %v3395
    %3397 = vdwg.mxu0
    %v3398 = vand.u32 %v2492, 4294901760
    %3399 = vmatpush.msra.mxu0 %v3398
    %v3400 = vand.u32 %v2491, 4294901760
    %3401 = vmatpush.msra.mxu0 %v3400
    %v3402 = vand.u32 %v2490, 4294901760
    %3403 = vmatpush.msra.mxu0 %v3402
    %v3404 = vand.u32 %v2489, 4294901760
    %3405 = vmatpush.msra.mxu0 %v3404
    %v3406 = vand.u32 %v2488, 4294901760
    %3407 = vmatpush.msra.mxu0 %v3406
    %v3408 = vand.u32 %v2487, 4294901760
    %3409 = vmatpush.msra.mxu0 %v3408
    %v3410 = vand.u32 %v2486, 4294901760
    %3411 = vmatpush.msra.mxu0 %v3410
    %v3412 = vand.u32 %v2485, 4294901760
    %3413 = vmatpush.msra.mxu0 %v3412
    %v3414 = vand.u32 %v2484, 4294901760
    %3415 = vmatpush.msra.mxu0 %v3414
    %v3416 = vand.u32 %v2483, 4294901760
    %3417 = vmatpush.msra.mxu0 %v3416
    %v3418 = vand.u32 %v2482, 4294901760
    %3419 = vmatpush.msra.mxu0 %v3418
    %v3420 = vand.u32 %v2481, 4294901760
    %3421 = vmatpush.msra.mxu0 %v3420
    %v3422 = vand.u32 %v2480, 4294901760
    %3423 = vmatpush.msra.mxu0 %v3422
    %v3424 = vand.u32 %v2479, 4294901760
    %3425 = vmatpush.msra.mxu0 %v3424
    %v3426 = vand.u32 %v2478, 4294901760
    %3427 = vmatpush.msra.mxu0 %v3426
    %v3428 = vand.u32 %v2477, 4294901760
    %3429 = vmatpush.msra.mxu0 %v3428
    %v3430 = vand.u32 %v2514, 4294901760
    %v3431 = vsub.f32 %v2514, %v3430
    %v3432 = vand.u32 %v3431, 4294901760
    %3433 = vmatmul.f32.gmra.mxu0 %v3432
    %v3434 = vpop.f32.mrf.mxu0
    %v3435 = vadd.f32 %v3396, %v3434
    %3436 = vdwg.mxu0
    %v3437 = vand.u32 %v2492, 4294901760
    %v3438 = vsub.f32 %v2492, %v3437
    %v3439 = vand.u32 %v3438, 4294901760
    %3440 = vmatpush.msra.mxu0 %v3439
    %v3441 = vand.u32 %v2491, 4294901760
    %v3442 = vsub.f32 %v2491, %v3441
    %v3443 = vand.u32 %v3442, 4294901760
    %3444 = vmatpush.msra.mxu0 %v3443
    %v3445 = vand.u32 %v2490, 4294901760
    %v3446 = vsub.f32 %v2490, %v3445
    %v3447 = vand.u32 %v3446, 4294901760
    %3448 = vmatpush.msra.mxu0 %v3447
    %v3449 = vand.u32 %v2489, 4294901760
    %v3450 = vsub.f32 %v2489, %v3449
    %v3451 = vand.u32 %v3450, 4294901760
    %3452 = vmatpush.msra.mxu0 %v3451
    %v3453 = vand.u32 %v2488, 4294901760
    %v3454 = vsub.f32 %v2488, %v3453
    %v3455 = vand.u32 %v3454, 4294901760
    %3456 = vmatpush.msra.mxu0 %v3455
    %v3457 = vand.u32 %v2487, 4294901760
    %v3458 = vsub.f32 %v2487, %v3457
    %v3459 = vand.u32 %v3458, 4294901760
    %3460 = vmatpush.msra.mxu0 %v3459
    %v3461 = vand.u32 %v2486, 4294901760
    %v3462 = vsub.f32 %v2486, %v3461
    %v3463 = vand.u32 %v3462, 4294901760
    %3464 = vmatpush.msra.mxu0 %v3463
    %v3465 = vand.u32 %v2485, 4294901760
    %v3466 = vsub.f32 %v2485, %v3465
    %v3467 = vand.u32 %v3466, 4294901760
    %3468 = vmatpush.msra.mxu0 %v3467
    %v3469 = vand.u32 %v2484, 4294901760
    %v3470 = vsub.f32 %v2484, %v3469
    %v3471 = vand.u32 %v3470, 4294901760
    %3472 = vmatpush.msra.mxu0 %v3471
    %v3473 = vand.u32 %v2483, 4294901760
    %v3474 = vsub.f32 %v2483, %v3473
    %v3475 = vand.u32 %v3474, 4294901760
    %3476 = vmatpush.msra.mxu0 %v3475
    %v3477 = vand.u32 %v2482, 4294901760
    %v3478 = vsub.f32 %v2482, %v3477
    %v3479 = vand.u32 %v3478, 4294901760
    %3480 = vmatpush.msra.mxu0 %v3479
    %v3481 = vand.u32 %v2481, 4294901760
    %v3482 = vsub.f32 %v2481, %v3481
    %v3483 = vand.u32 %v3482, 4294901760
    %3484 = vmatpush.msra.mxu0 %v3483
    %v3485 = vand.u32 %v2480, 4294901760
    %v3486 = vsub.f32 %v2480, %v3485
    %v3487 = vand.u32 %v3486, 4294901760
    %3488 = vmatpush.msra.mxu0 %v3487
    %v3489 = vand.u32 %v2479, 4294901760
    %v3490 = vsub.f32 %v2479, %v3489
    %v3491 = vand.u32 %v3490, 4294901760
    %3492 = vmatpush.msra.mxu0 %v3491
    %v3493 = vand.u32 %v2478, 4294901760
    %v3494 = vsub.f32 %v2478, %v3493
    %v3495 = vand.u32 %v3494, 4294901760
    %3496 = vmatpush.msra.mxu0 %v3495
    %v3497 = vand.u32 %v2477, 4294901760
    %v3498 = vsub.f32 %v2477, %v3497
    %v3499 = vand.u32 %v3498, 4294901760
    %3500 = vmatpush.msra.mxu0 %v3499
    %v3501 = vand.u32 %v2514, 4294901760
    %3502 = vmatmul.f32.gmra.mxu0 %v3501
    %v3503 = vpop.f32.mrf.mxu0
    %v3504 = vadd.f32 %v3435, %v3503
    %3505 = vdwg.mxu0
    %v3506 = vand.u32 %v2492, 4294901760
    %3507 = vmatpush.msra.mxu0 %v3506
    %v3508 = vand.u32 %v2491, 4294901760
    %3509 = vmatpush.msra.mxu0 %v3508
    %v3510 = vand.u32 %v2490, 4294901760
    %3511 = vmatpush.msra.mxu0 %v3510
    %v3512 = vand.u32 %v2489, 4294901760
    %3513 = vmatpush.msra.mxu0 %v3512
    %v3514 = vand.u32 %v2488, 4294901760
    %3515 = vmatpush.msra.mxu0 %v3514
    %v3516 = vand.u32 %v2487, 4294901760
    %3517 = vmatpush.msra.mxu0 %v3516
    %v3518 = vand.u32 %v2486, 4294901760
    %3519 = vmatpush.msra.mxu0 %v3518
    %v3520 = vand.u32 %v2485, 4294901760
    %3521 = vmatpush.msra.mxu0 %v3520
    %v3522 = vand.u32 %v2484, 4294901760
    %3523 = vmatpush.msra.mxu0 %v3522
    %v3524 = vand.u32 %v2483, 4294901760
    %3525 = vmatpush.msra.mxu0 %v3524
    %v3526 = vand.u32 %v2482, 4294901760
    %3527 = vmatpush.msra.mxu0 %v3526
    %v3528 = vand.u32 %v2481, 4294901760
    %3529 = vmatpush.msra.mxu0 %v3528
    %v3530 = vand.u32 %v2480, 4294901760
    %3531 = vmatpush.msra.mxu0 %v3530
    %v3532 = vand.u32 %v2479, 4294901760
    %3533 = vmatpush.msra.mxu0 %v3532
    %v3534 = vand.u32 %v2478, 4294901760
    %3535 = vmatpush.msra.mxu0 %v3534
    %v3536 = vand.u32 %v2477, 4294901760
    %3537 = vmatpush.msra.mxu0 %v3536
    %v3538 = vand.u32 %v2514, 4294901760
    %3539 = vmatmul.f32.gmra.mxu0 %v3538
    %v3540 = vpop.f32.mrf.mxu0
    %v3541 = vadd.f32 %v3504, %v3540
    %3542 = vdwg.mxu0
    %v3543 = vand.u32 %v2508, 4294901760
    %3544 = vmatpush.msra.mxu0 %v3543
    %v3545 = vand.u32 %v2507, 4294901760
    %3546 = vmatpush.msra.mxu0 %v3545
    %v3547 = vand.u32 %v2506, 4294901760
    %3548 = vmatpush.msra.mxu0 %v3547
    %v3549 = vand.u32 %v2505, 4294901760
    %3550 = vmatpush.msra.mxu0 %v3549
    %v3551 = vand.u32 %v2504, 4294901760
    %3552 = vmatpush.msra.mxu0 %v3551
    %v3553 = vand.u32 %v2503, 4294901760
    %3554 = vmatpush.msra.mxu0 %v3553
    %v3555 = vand.u32 %v2502, 4294901760
    %3556 = vmatpush.msra.mxu0 %v3555
    %v3557 = vand.u32 %v2501, 4294901760
    %3558 = vmatpush.msra.mxu0 %v3557
    %v3559 = vand.u32 %v2500, 4294901760
    %3560 = vmatpush.msra.mxu0 %v3559
    %v3561 = vand.u32 %v2499, 4294901760
    %3562 = vmatpush.msra.mxu0 %v3561
    %v3563 = vand.u32 %v2498, 4294901760
    %3564 = vmatpush.msra.mxu0 %v3563
    %v3565 = vand.u32 %v2497, 4294901760
    %3566 = vmatpush.msra.mxu0 %v3565
    %v3567 = vand.u32 %v2496, 4294901760
    %3568 = vmatpush.msra.mxu0 %v3567
    %v3569 = vand.u32 %v2495, 4294901760
    %3570 = vmatpush.msra.mxu0 %v3569
    %v3571 = vand.u32 %v2494, 4294901760
    %3572 = vmatpush.msra.mxu0 %v3571
    %v3573 = vand.u32 %v2493, 4294901760
    %3574 = vmatpush.msra.mxu0 %v3573
    %v3575 = vand.u32 %v2515, 4294901760
    %v3576 = vsub.f32 %v2515, %v3575
    %v3577 = vand.u32 %v3576, 4294901760
    %v3578 = vsub.f32 %v3576, %v3577
    %v3579 = vand.u32 %v3578, 4294901760
    %3580 = vmatmul.f32.gmra.mxu0 %v3579
    %v3581 = vpop.f32.mrf.mxu0
    %v3582 = vadd.f32 %v3541, %v3581
    %3583 = vdwg.mxu0
    %v3584 = vand.u32 %v2508, 4294901760
    %v3585 = vsub.f32 %v2508, %v3584
    %v3586 = vand.u32 %v3585, 4294901760
    %v3587 = vsub.f32 %v3585, %v3586
    %v3588 = vand.u32 %v3587, 4294901760
    %3589 = vmatpush.msra.mxu0 %v3588
    %v3590 = vand.u32 %v2507, 4294901760
    %v3591 = vsub.f32 %v2507, %v3590
    %v3592 = vand.u32 %v3591, 4294901760
    %v3593 = vsub.f32 %v3591, %v3592
    %v3594 = vand.u32 %v3593, 4294901760
    %3595 = vmatpush.msra.mxu0 %v3594
    %v3596 = vand.u32 %v2506, 4294901760
    %v3597 = vsub.f32 %v2506, %v3596
    %v3598 = vand.u32 %v3597, 4294901760
    %v3599 = vsub.f32 %v3597, %v3598
    %v3600 = vand.u32 %v3599, 4294901760
    %3601 = vmatpush.msra.mxu0 %v3600
    %v3602 = vand.u32 %v2505, 4294901760
    %v3603 = vsub.f32 %v2505, %v3602
    %v3604 = vand.u32 %v3603, 4294901760
    %v3605 = vsub.f32 %v3603, %v3604
    %v3606 = vand.u32 %v3605, 4294901760
    %3607 = vmatpush.msra.mxu0 %v3606
    %v3608 = vand.u32 %v2504, 4294901760
    %v3609 = vsub.f32 %v2504, %v3608
    %v3610 = vand.u32 %v3609, 4294901760
    %v3611 = vsub.f32 %v3609, %v3610
    %v3612 = vand.u32 %v3611, 4294901760
    %3613 = vmatpush.msra.mxu0 %v3612
    %v3614 = vand.u32 %v2503, 4294901760
    %v3615 = vsub.f32 %v2503, %v3614
    %v3616 = vand.u32 %v3615, 4294901760
    %v3617 = vsub.f32 %v3615, %v3616
    %v3618 = vand.u32 %v3617, 4294901760
    %3619 = vmatpush.msra.mxu0 %v3618
    %v3620 = vand.u32 %v2502, 4294901760
    %v3621 = vsub.f32 %v2502, %v3620
    %v3622 = vand.u32 %v3621, 4294901760
    %v3623 = vsub.f32 %v3621, %v3622
    %v3624 = vand.u32 %v3623, 4294901760
    %3625 = vmatpush.msra.mxu0 %v3624
    %v3626 = vand.u32 %v2501, 4294901760
    %v3627 = vsub.f32 %v2501, %v3626
    %v3628 = vand.u32 %v3627, 4294901760
    %v3629 = vsub.f32 %v3627, %v3628
    %v3630 = vand.u32 %v3629, 4294901760
    %3631 = vmatpush.msra.mxu0 %v3630
    %v3632 = vand.u32 %v2500, 4294901760
    %v3633 = vsub.f32 %v2500, %v3632
    %v3634 = vand.u32 %v3633, 4294901760
    %v3635 = vsub.f32 %v3633, %v3634
    %v3636 = vand.u32 %v3635, 4294901760
    %3637 = vmatpush.msra.mxu0 %v3636
    %v3638 = vand.u32 %v2499, 4294901760
    %v3639 = vsub.f32 %v2499, %v3638
    %v3640 = vand.u32 %v3639, 4294901760
    %v3641 = vsub.f32 %v3639, %v3640
    %v3642 = vand.u32 %v3641, 4294901760
    %3643 = vmatpush.msra.mxu0 %v3642
    %v3644 = vand.u32 %v2498, 4294901760
    %v3645 = vsub.f32 %v2498, %v3644
    %v3646 = vand.u32 %v3645, 4294901760
    %v3647 = vsub.f32 %v3645, %v3646
    %v3648 = vand.u32 %v3647, 4294901760
    %3649 = vmatpush.msra.mxu0 %v3648
    %v3650 = vand.u32 %v2497, 4294901760
    %v3651 = vsub.f32 %v2497, %v3650
    %v3652 = vand.u32 %v3651, 4294901760
    %v3653 = vsub.f32 %v3651, %v3652
    %v3654 = vand.u32 %v3653, 4294901760
    %3655 = vmatpush.msra.mxu0 %v3654
    %v3656 = vand.u32 %v2496, 4294901760
    %v3657 = vsub.f32 %v2496, %v3656
    %v3658 = vand.u32 %v3657, 4294901760
    %v3659 = vsub.f32 %v3657, %v3658
    %v3660 = vand.u32 %v3659, 4294901760
    %3661 = vmatpush.msra.mxu0 %v3660
    %v3662 = vand.u32 %v2495, 4294901760
    %v3663 = vsub.f32 %v2495, %v3662
    %v3664 = vand.u32 %v3663, 4294901760
    %v3665 = vsub.f32 %v3663, %v3664
    %v3666 = vand.u32 %v3665, 4294901760
    %3667 = vmatpush.msra.mxu0 %v3666
    %v3668 = vand.u32 %v2494, 4294901760
    %v3669 = vsub.f32 %v2494, %v3668
    %v3670 = vand.u32 %v3669, 4294901760
    %v3671 = vsub.f32 %v3669, %v3670
    %v3672 = vand.u32 %v3671, 4294901760
    %3673 = vmatpush.msra.mxu0 %v3672
    %v3674 = vand.u32 %v2493, 4294901760
    %v3675 = vsub.f32 %v2493, %v3674
    %v3676 = vand.u32 %v3675, 4294901760
    %v3677 = vsub.f32 %v3675, %v3676
    %v3678 = vand.u32 %v3677, 4294901760
    %3679 = vmatpush.msra.mxu0 %v3678
    %v3680 = vand.u32 %v2515, 4294901760
    %3681 = vmatmul.f32.gmra.mxu0 %v3680
    %v3682 = vpop.f32.mrf.mxu0
    %v3683 = vadd.f32 %v3582, %v3682
    %3684 = vdwg.mxu0
    %v3685 = vand.u32 %v2508, 4294901760
    %v3686 = vsub.f32 %v2508, %v3685
    %3687 = vmatpush.msra.mxu0 %v3686
    %v3688 = vand.u32 %v2507, 4294901760
    %v3689 = vsub.f32 %v2507, %v3688
    %3690 = vmatpush.msra.mxu0 %v3689
    %v3691 = vand.u32 %v2506, 4294901760
    %v3692 = vsub.f32 %v2506, %v3691
    %3693 = vmatpush.msra.mxu0 %v3692
    %v3694 = vand.u32 %v2505, 4294901760
    %v3695 = vsub.f32 %v2505, %v3694
    %3696 = vmatpush.msra.mxu0 %v3695
    %v3697 = vand.u32 %v2504, 4294901760
    %v3698 = vsub.f32 %v2504, %v3697
    %3699 = vmatpush.msra.mxu0 %v3698
    %v3700 = vand.u32 %v2503, 4294901760
    %v3701 = vsub.f32 %v2503, %v3700
    %3702 = vmatpush.msra.mxu0 %v3701
    %v3703 = vand.u32 %v2502, 4294901760
    %v3704 = vsub.f32 %v2502, %v3703
    %3705 = vmatpush.msra.mxu0 %v3704
    %v3706 = vand.u32 %v2501, 4294901760
    %v3707 = vsub.f32 %v2501, %v3706
    %3708 = vmatpush.msra.mxu0 %v3707
    %v3709 = vand.u32 %v2500, 4294901760
    %v3710 = vsub.f32 %v2500, %v3709
    %3711 = vmatpush.msra.mxu0 %v3710
    %v3712 = vand.u32 %v2499, 4294901760
    %v3713 = vsub.f32 %v2499, %v3712
    %3714 = vmatpush.msra.mxu0 %v3713
    %v3715 = vand.u32 %v2498, 4294901760
    %v3716 = vsub.f32 %v2498, %v3715
    %3717 = vmatpush.msra.mxu0 %v3716
    %v3718 = vand.u32 %v2497, 4294901760
    %v3719 = vsub.f32 %v2497, %v3718
    %3720 = vmatpush.msra.mxu0 %v3719
    %v3721 = vand.u32 %v2496, 4294901760
    %v3722 = vsub.f32 %v2496, %v3721
    %3723 = vmatpush.msra.mxu0 %v3722
    %v3724 = vand.u32 %v2495, 4294901760
    %v3725 = vsub.f32 %v2495, %v3724
    %3726 = vmatpush.msra.mxu0 %v3725
    %v3727 = vand.u32 %v2494, 4294901760
    %v3728 = vsub.f32 %v2494, %v3727
    %3729 = vmatpush.msra.mxu0 %v3728
    %v3730 = vand.u32 %v2493, 4294901760
    %v3731 = vsub.f32 %v2493, %v3730
    %3732 = vmatpush.msra.mxu0 %v3731
    %v3733 = vand.u32 %v2515, 4294901760
    %v3734 = vsub.f32 %v2515, %v3733
    %3735 = vmatmul.f32.gmra.mxu0 %v3734
    %v3736 = vpop.f32.mrf.mxu0
    %v3737 = vadd.f32 %v3683, %v3736
    %3738 = vdwg.mxu0
    %v3739 = vand.u32 %v2508, 4294901760
    %3740 = vmatpush.msra.mxu0 %v3739
    %v3741 = vand.u32 %v2507, 4294901760
    %3742 = vmatpush.msra.mxu0 %v3741
    %v3743 = vand.u32 %v2506, 4294901760
    %3744 = vmatpush.msra.mxu0 %v3743
    %v3745 = vand.u32 %v2505, 4294901760
    %3746 = vmatpush.msra.mxu0 %v3745
    %v3747 = vand.u32 %v2504, 4294901760
    %3748 = vmatpush.msra.mxu0 %v3747
    %v3749 = vand.u32 %v2503, 4294901760
    %3750 = vmatpush.msra.mxu0 %v3749
    %v3751 = vand.u32 %v2502, 4294901760
    %3752 = vmatpush.msra.mxu0 %v3751
    %v3753 = vand.u32 %v2501, 4294901760
    %3754 = vmatpush.msra.mxu0 %v3753
    %v3755 = vand.u32 %v2500, 4294901760
    %3756 = vmatpush.msra.mxu0 %v3755
    %v3757 = vand.u32 %v2499, 4294901760
    %3758 = vmatpush.msra.mxu0 %v3757
    %v3759 = vand.u32 %v2498, 4294901760
    %3760 = vmatpush.msra.mxu0 %v3759
    %v3761 = vand.u32 %v2497, 4294901760
    %3762 = vmatpush.msra.mxu0 %v3761
    %v3763 = vand.u32 %v2496, 4294901760
    %3764 = vmatpush.msra.mxu0 %v3763
    %v3765 = vand.u32 %v2495, 4294901760
    %3766 = vmatpush.msra.mxu0 %v3765
    %v3767 = vand.u32 %v2494, 4294901760
    %3768 = vmatpush.msra.mxu0 %v3767
    %v3769 = vand.u32 %v2493, 4294901760
    %3770 = vmatpush.msra.mxu0 %v3769
    %v3771 = vand.u32 %v2515, 4294901760
    %v3772 = vsub.f32 %v2515, %v3771
    %v3773 = vand.u32 %v3772, 4294901760
    %3774 = vmatmul.f32.gmra.mxu0 %v3773
    %v3775 = vpop.f32.mrf.mxu0
    %v3776 = vadd.f32 %v3737, %v3775
    %3777 = vdwg.mxu0
    %v3778 = vand.u32 %v2508, 4294901760
    %v3779 = vsub.f32 %v2508, %v3778
    %v3780 = vand.u32 %v3779, 4294901760
    %3781 = vmatpush.msra.mxu0 %v3780
    %v3782 = vand.u32 %v2507, 4294901760
    %v3783 = vsub.f32 %v2507, %v3782
    %v3784 = vand.u32 %v3783, 4294901760
    %3785 = vmatpush.msra.mxu0 %v3784
    %v3786 = vand.u32 %v2506, 4294901760
    %v3787 = vsub.f32 %v2506, %v3786
    %v3788 = vand.u32 %v3787, 4294901760
    %3789 = vmatpush.msra.mxu0 %v3788
    %v3790 = vand.u32 %v2505, 4294901760
    %v3791 = vsub.f32 %v2505, %v3790
    %v3792 = vand.u32 %v3791, 4294901760
    %3793 = vmatpush.msra.mxu0 %v3792
    %v3794 = vand.u32 %v2504, 4294901760
    %v3795 = vsub.f32 %v2504, %v3794
    %v3796 = vand.u32 %v3795, 4294901760
    %3797 = vmatpush.msra.mxu0 %v3796
    %v3798 = vand.u32 %v2503, 4294901760
    %v3799 = vsub.f32 %v2503, %v3798
    %v3800 = vand.u32 %v3799, 4294901760
    %3801 = vmatpush.msra.mxu0 %v3800
    %v3802 = vand.u32 %v2502, 4294901760
    %v3803 = vsub.f32 %v2502, %v3802
    %v3804 = vand.u32 %v3803, 4294901760
    %3805 = vmatpush.msra.mxu0 %v3804
    %v3806 = vand.u32 %v2501, 4294901760
    %v3807 = vsub.f32 %v2501, %v3806
    %v3808 = vand.u32 %v3807, 4294901760
    %3809 = vmatpush.msra.mxu0 %v3808
    %v3810 = vand.u32 %v2500, 4294901760
    %v3811 = vsub.f32 %v2500, %v3810
    %v3812 = vand.u32 %v3811, 4294901760
    %3813 = vmatpush.msra.mxu0 %v3812
    %v3814 = vand.u32 %v2499, 4294901760
    %v3815 = vsub.f32 %v2499, %v3814
    %v3816 = vand.u32 %v3815, 4294901760
    %3817 = vmatpush.msra.mxu0 %v3816
    %v3818 = vand.u32 %v2498, 4294901760
    %v3819 = vsub.f32 %v2498, %v3818
    %v3820 = vand.u32 %v3819, 4294901760
    %3821 = vmatpush.msra.mxu0 %v3820
    %v3822 = vand.u32 %v2497, 4294901760
    %v3823 = vsub.f32 %v2497, %v3822
    %v3824 = vand.u32 %v3823, 4294901760
    %3825 = vmatpush.msra.mxu0 %v3824
    %v3826 = vand.u32 %v2496, 4294901760
    %v3827 = vsub.f32 %v2496, %v3826
    %v3828 = vand.u32 %v3827, 4294901760
    %3829 = vmatpush.msra.mxu0 %v3828
    %v3830 = vand.u32 %v2495, 4294901760
    %v3831 = vsub.f32 %v2495, %v3830
    %v3832 = vand.u32 %v3831, 4294901760
    %3833 = vmatpush.msra.mxu0 %v3832
    %v3834 = vand.u32 %v2494, 4294901760
    %v3835 = vsub.f32 %v2494, %v3834
    %v3836 = vand.u32 %v3835, 4294901760
    %3837 = vmatpush.msra.mxu0 %v3836
    %v3838 = vand.u32 %v2493, 4294901760
    %v3839 = vsub.f32 %v2493, %v3838
    %v3840 = vand.u32 %v3839, 4294901760
    %3841 = vmatpush.msra.mxu0 %v3840
    %v3842 = vand.u32 %v2515, 4294901760
    %3843 = vmatmul.f32.gmra.mxu0 %v3842
    %v3844 = vpop.f32.mrf.mxu0
    %v3845 = vadd.f32 %v3776, %v3844
    %3846 = vdwg.mxu0
    %v3847 = vand.u32 %v2508, 4294901760
    %3848 = vmatpush.msra.mxu0 %v3847
    %v3849 = vand.u32 %v2507, 4294901760
    %3850 = vmatpush.msra.mxu0 %v3849
    %v3851 = vand.u32 %v2506, 4294901760
    %3852 = vmatpush.msra.mxu0 %v3851
    %v3853 = vand.u32 %v2505, 4294901760
    %3854 = vmatpush.msra.mxu0 %v3853
    %v3855 = vand.u32 %v2504, 4294901760
    %3856 = vmatpush.msra.mxu0 %v3855
    %v3857 = vand.u32 %v2503, 4294901760
    %3858 = vmatpush.msra.mxu0 %v3857
    %v3859 = vand.u32 %v2502, 4294901760
    %3860 = vmatpush.msra.mxu0 %v3859
    %v3861 = vand.u32 %v2501, 4294901760
    %3862 = vmatpush.msra.mxu0 %v3861
    %v3863 = vand.u32 %v2500, 4294901760
    %3864 = vmatpush.msra.mxu0 %v3863
    %v3865 = vand.u32 %v2499, 4294901760
    %3866 = vmatpush.msra.mxu0 %v3865
    %v3867 = vand.u32 %v2498, 4294901760
    %3868 = vmatpush.msra.mxu0 %v3867
    %v3869 = vand.u32 %v2497, 4294901760
    %3870 = vmatpush.msra.mxu0 %v3869
    %v3871 = vand.u32 %v2496, 4294901760
    %3872 = vmatpush.msra.mxu0 %v3871
    %v3873 = vand.u32 %v2495, 4294901760
    %3874 = vmatpush.msra.mxu0 %v3873
    %v3875 = vand.u32 %v2494, 4294901760
    %3876 = vmatpush.msra.mxu0 %v3875
    %v3877 = vand.u32 %v2493, 4294901760
    %3878 = vmatpush.msra.mxu0 %v3877
    %v3879 = vand.u32 %v2515, 4294901760
    %3880 = vmatmul.f32.gmra.mxu0 %v3879
    %v3881 = vpop.f32.mrf.mxu0
    %v3882 = vadd.f32 %v3845, %v3881
    %3883 = vdwg.mxu0
    %v3884 = vld [vmem:[%s4] sm:$0xff]
    %v3885 = vld [vmem:[%s5] sm:$0x1]
    %v3887 = vperm.slane %v3885, 0
    %vm3889 = vcmask 64512
    %v3891 = vsel %vm3889, %v3882, 0
    %3893 = vmatpush.msra.mxu0 0.0
    %3894 = vmatpush.msra.mxu0 0.0
    %3895 = vmatpush.msra.mxu0 0.0
    %3896 = vmatpush.msra.mxu0 0.0
    %3897 = vmatpush.msra.mxu0 0.0
    %3898 = vmatpush.msra.mxu0 0.0
    %3899 = vmatpush.msra.mxu0 0.0
    %3900 = vmatpush.msra.mxu0 0.0
    %3901 = vmatpush.msra.mxu0 0.0
    %3902 = vmatpush.msra.mxu0 0.0
    %3903 = vmatpush.msra.mxu0 0.0
    %3904 = vmatpush.msra.mxu0 0.0
    %3905 = vmatpush.msra.mxu0 0.0
    %3906 = vmatpush.msra.mxu0 0.0
    %3907 = vmatpush.msra.mxu0 0.0
    %v3908 = vand.u32 %v3884, 4294901760
    %3909 = vmatpush.msra.mxu0 %v3908
    %v3910 = vand.u32 %v3891, 4294901760
    %v3911 = vsub.f32 %v3891, %v3910
    %v3912 = vand.u32 %v3911, 4294901760
    %v3913 = vsub.f32 %v3911, %v3912
    %v3914 = vand.u32 %v3913, 4294901760
    %3915 = vmatmul.f32.gmra.mxu0 %v3914
    %v3916 = vpop.f32.mrf.mxu0
    %v3917 = vadd.f32 %v3887, %v3916
    %3918 = vdwg.mxu0
    %3919 = vmatpush.msra.mxu0 0.0
    %3920 = vmatpush.msra.mxu0 0.0
    %3921 = vmatpush.msra.mxu0 0.0
    %3922 = vmatpush.msra.mxu0 0.0
    %3923 = vmatpush.msra.mxu0 0.0
    %3924 = vmatpush.msra.mxu0 0.0
    %3925 = vmatpush.msra.mxu0 0.0
    %3926 = vmatpush.msra.mxu0 0.0
    %3927 = vmatpush.msra.mxu0 0.0
    %3928 = vmatpush.msra.mxu0 0.0
    %3929 = vmatpush.msra.mxu0 0.0
    %3930 = vmatpush.msra.mxu0 0.0
    %3931 = vmatpush.msra.mxu0 0.0
    %3932 = vmatpush.msra.mxu0 0.0
    %3933 = vmatpush.msra.mxu0 0.0
    %v3934 = vand.u32 %v3884, 4294901760
    %v3935 = vsub.f32 %v3884, %v3934
    %v3936 = vand.u32 %v3935, 4294901760
    %v3937 = vsub.f32 %v3935, %v3936
    %v3938 = vand.u32 %v3937, 4294901760
    %3939 = vmatpush.msra.mxu0 %v3938
    %v3940 = vand.u32 %v3891, 4294901760
    %3941 = vmatmul.f32.gmra.mxu0 %v3940
    %v3942 = vpop.f32.mrf.mxu0
    %v3943 = vadd.f32 %v3917, %v3942
    %3944 = vdwg.mxu0
    %3945 = vmatpush.msra.mxu0 0.0
    %3946 = vmatpush.msra.mxu0 0.0
    %3947 = vmatpush.msra.mxu0 0.0
    %3948 = vmatpush.msra.mxu0 0.0
    %3949 = vmatpush.msra.mxu0 0.0
    %3950 = vmatpush.msra.mxu0 0.0
    %3951 = vmatpush.msra.mxu0 0.0
    %3952 = vmatpush.msra.mxu0 0.0
    %3953 = vmatpush.msra.mxu0 0.0
    %3954 = vmatpush.msra.mxu0 0.0
    %3955 = vmatpush.msra.mxu0 0.0
    %3956 = vmatpush.msra.mxu0 0.0
    %3957 = vmatpush.msra.mxu0 0.0
    %3958 = vmatpush.msra.mxu0 0.0
    %3959 = vmatpush.msra.mxu0 0.0
    %v3960 = vand.u32 %v3884, 4294901760
    %v3961 = vsub.f32 %v3884, %v3960
    %3962 = vmatpush.msra.mxu0 %v3961
    %v3963 = vand.u32 %v3891, 4294901760
    %v3964 = vsub.f32 %v3891, %v3963
    %3965 = vmatmul.f32.gmra.mxu0 %v3964
    %v3966 = vpop.f32.mrf.mxu0
    %v3967 = vadd.f32 %v3943, %v3966
    %3968 = vdwg.mxu0
    %3969 = vmatpush.msra.mxu0 0.0
    %3970 = vmatpush.msra.mxu0 0.0
    %3971 = vmatpush.msra.mxu0 0.0
    %3972 = vmatpush.msra.mxu0 0.0
    %3973 = vmatpush.msra.mxu0 0.0
    %3974 = vmatpush.msra.mxu0 0.0
    %3975 = vmatpush.msra.mxu0 0.0
    %3976 = vmatpush.msra.mxu0 0.0
    %3977 = vmatpush.msra.mxu0 0.0
    %3978 = vmatpush.msra.mxu0 0.0
    %3979 = vmatpush.msra.mxu0 0.0
    %3980 = vmatpush.msra.mxu0 0.0
    %3981 = vmatpush.msra.mxu0 0.0
    %3982 = vmatpush.msra.mxu0 0.0
    %3983 = vmatpush.msra.mxu0 0.0
    %v3984 = vand.u32 %v3884, 4294901760
    %3985 = vmatpush.msra.mxu0 %v3984
    %v3986 = vand.u32 %v3891, 4294901760
    %v3987 = vsub.f32 %v3891, %v3986
    %v3988 = vand.u32 %v3987, 4294901760
    %3989 = vmatmul.f32.gmra.mxu0 %v3988
    %v3990 = vpop.f32.mrf.mxu0
    %v3991 = vadd.f32 %v3967, %v3990
    %3992 = vdwg.mxu0
    %3993 = vmatpush.msra.mxu0 0.0
    %3994 = vmatpush.msra.mxu0 0.0
    %3995 = vmatpush.msra.mxu0 0.0
    %3996 = vmatpush.msra.mxu0 0.0
    %3997 = vmatpush.msra.mxu0 0.0
    %3998 = vmatpush.msra.mxu0 0.0
    %3999 = vmatpush.msra.mxu0 0.0
    %4000 = vmatpush.msra.mxu0 0.0
    %4001 = vmatpush.msra.mxu0 0.0
    %4002 = vmatpush.msra.mxu0 0.0
    %4003 = vmatpush.msra.mxu0 0.0
    %4004 = vmatpush.msra.mxu0 0.0
    %4005 = vmatpush.msra.mxu0 0.0
    %4006 = vmatpush.msra.mxu0 0.0
    %4007 = vmatpush.msra.mxu0 0.0
    %v4008 = vand.u32 %v3884, 4294901760
    %v4009 = vsub.f32 %v3884, %v4008
    %v4010 = vand.u32 %v4009, 4294901760
    %4011 = vmatpush.msra.mxu0 %v4010
    %v4012 = vand.u32 %v3891, 4294901760
    %4013 = vmatmul.f32.gmra.mxu0 %v4012
    %v4014 = vpop.f32.mrf.mxu0
    %v4015 = vadd.f32 %v3991, %v4014
    %4016 = vdwg.mxu0
    %4017 = vmatpush.msra.mxu0 0.0
    %4018 = vmatpush.msra.mxu0 0.0
    %4019 = vmatpush.msra.mxu0 0.0
    %4020 = vmatpush.msra.mxu0 0.0
    %4021 = vmatpush.msra.mxu0 0.0
    %4022 = vmatpush.msra.mxu0 0.0
    %4023 = vmatpush.msra.mxu0 0.0
    %4024 = vmatpush.msra.mxu0 0.0
    %4025 = vmatpush.msra.mxu0 0.0
    %4026 = vmatpush.msra.mxu0 0.0
    %4027 = vmatpush.msra.mxu0 0.0
    %4028 = vmatpush.msra.mxu0 0.0
    %4029 = vmatpush.msra.mxu0 0.0
    %4030 = vmatpush.msra.mxu0 0.0
    %4031 = vmatpush.msra.mxu0 0.0
    %v4032 = vand.u32 %v3884, 4294901760
    %4033 = vmatpush.msra.mxu0 %v4032
    %v4034 = vand.u32 %v3891, 4294901760
    %4035 = vmatmul.f32.gmra.mxu0 %v4034
    %v4036 = vpop.f32.mrf.mxu0
    %v4037 = vadd.f32 %v4015, %v4036
    %4038 = vdwg.mxu0
    %4039 = vst [vmem:[#allocation2] sm:$0x3] %v4037
    // Predicated region
    $region26: #{fused_cnn_forward.1} parent=1 // pred_check
      _
    $region27: #{fused_cnn_forward.1} parent=1 // pred_check_branch
      %4041 = sbr.rel (0) target = $region29
    $region28: #{fused_cnn_forward.1} parent=1 // pred_region
      %4043 = vsyncadd [#allocation3], 0
      %s4045 = sshll.u32 [#allocation2], 4
      %s4046 = int_to_ptr.vmem [resolvable:$true] %s4045
      %s4047 = sshll.u32 %s6, 4
      %s4048 = int_to_ptr.hbm [resolvable:$true] %s4047
      %4050 = dma.vmem_to_hbm [thread:$0]  %s4046, 32, %s4048, [#allocation3]
    $region29: #{fused_cnn_forward.1} parent=1 // pred_fallthru
      _
    // Predicated region
    $region30: #{fused_cnn_forward.1} parent=1 // pred_check
      _
    $region31: #{fused_cnn_forward.1} parent=1 // pred_check_branch
      %4052 = sbr.rel (0) target = $region33
    $region32: #{fused_cnn_forward.1} parent=1 // pred_region
      %4054 = dma.done [#allocation3], 32
    $region33: #{fused_cnn_forward.1} parent=1 // pred_fallthru
      _
    %4055 = vsyncpa [#allocation3], 1

</llo_original>
